<compile_context>
chip_gen: v6e
topology: v6e:2x2x1
jax: 0.10.0
libtpu: 0.0.40
codegen_flags: <defaults>
</compile_context>

<pallas_src>
import math

import jax
import jax.numpy as jnp
from jax.experimental import pallas as pl
from jax.experimental.pallas import tpu as pltpu

# ----------------------------- model config ---------------------------------
VOCAB = 64
B, S, H = 2, 8, 32          # batch, seq, hidden
NUM_HEADS = 2
DH = H // NUM_HEADS
NHS = NUM_HEADS * S         # head-stacked attention rows per batch
INTER = 64                  # FFN intermediate size
NUM_LAYERS = 2
NUM_LABELS = 4
LN_EPS = 1e-12
LANE = 128                  # lane-dense padding
OUT_W = 2 * LANE            # [ cls (H, zero-padded to 128) | logits (padded to 128) ]

_SQRT_HALF = 0.7071067811865476
_ATTN_SCALE = 1.0 / math.sqrt(DH)
_MASK_NEG = -1e9            # finite additive-mask constant (bf16-safe)


# --------------------------- in-kernel helpers -------------------------------
def _erf_approx(x):
    # Abramowitz & Stegun 7.1.26, |err| < 1.5e-7. Only exp/abs/mul/add/div,
    # so it lowers cleanly on all TPU generations (VPU + EUP).
    p = 0.3275911
    a1, a2, a3, a4, a5 = (0.254829592, -0.284496736, 1.421413741,
                          -1.453152027, 1.061405429)
    sign = jnp.where(x >= 0.0, 1.0, -1.0)
    ax = jnp.abs(x)
    t = 1.0 / (1.0 + p * ax)
    poly = ((((a5 * t + a4) * t + a3) * t + a2) * t + a1) * t
    return sign * (1.0 - poly * jnp.exp(-ax * ax))


def _gelu_exact(x):
    # Exact (erf) GELU, matching HuggingFace BERT numerics (to polynomial tol).
    return 0.5 * x * (1.0 + _erf_approx(x * _SQRT_HALF))


def _layernorm(x, g, b):
    mu = jnp.mean(x, axis=-1, keepdims=True)
    var = jnp.mean(jnp.square(x - mu), axis=-1, keepdims=True)
    return (x - mu) * jax.lax.rsqrt(var + LN_EPS) * g + b


# ------------------------------ fused kernel ---------------------------------
def _bert_fused_kernel(
    # scalar prefetch (SMEM)
    ids_ref,                                     # (B, S) int32
    # inputs (VMEM)
    mask_ref, pool_ref, word_emb_ref, pos_type_ref,
    emb_g_ref, emb_b_ref,
    wqkv_ref, bqkv_ref, wo_ref, bo_ref, ln1_g_ref, ln1_b_ref,
    w1_ref, b1_ref, w2_ref, b2_ref, ln2_g_ref, ln2_b_ref,
    wcomb_ref, bcomb_ref,
    # output
    out_ref,
):
    b = pl.program_id(0)

    # ---- embeddings: one-hot gather on the MXU + pos/type add + LayerNorm ----
    # TODO(synk): at real VOCAB size use a scalar-prefetch-driven row gather
    # instead of the one-hot matmul.
    vocab_iota = jax.lax.broadcasted_iota(jnp.int32, (S, VOCAB), 1)
    row_iota = jax.lax.broadcasted_iota(jnp.int32, (S, VOCAB), 0)
    ids_mat = jnp.zeros((S, VOCAB), jnp.int32)
    for s in range(S):                           # S scalar SMEM reads + selects
        ids_mat = jnp.where(row_iota == s, ids_ref[b, s], ids_mat)
    one_hot = (vocab_iota == ids_mat).astype(jnp.float32)           # (S, VOCAB)
    tok = jnp.dot(one_hot, word_emb_ref[...],
                  preferred_element_type=jnp.float32)               # (S, H)
    x = _layernorm(tok + pos_type_ref[...], emb_g_ref[...], emb_b_ref[...])
    # embedding dropout -> identity (eval)

    # block-diagonal (per-head) + key-padding additive mask, read once
    attn_bias = mask_ref[...]                                       # (NHS, NHS)

    # ---- transformer layers (statically unrolled, weights VMEM-resident) -----
    for l in range(NUM_LAYERS):
        # fused QKV projection: one (H, 3H) matmul
        qkv = jnp.dot(x, wqkv_ref[l],
                      preferred_element_type=jnp.float32) + bqkv_ref[l]  # (S, 3H)
        q = qkv[:, 0:H]
        k = qkv[:, H:2 * H]
        v = qkv[:, 2 * H:3 * H]

        # stack heads along rows -> (NHS, DH); pure vreg relayout, no VMEM scratch
        q_st = jnp.concatenate([q[:, h * DH:(h + 1) * DH] for h in range(NUM_HEADS)], axis=0)
        k_st = jnp.concatenate([k[:, h * DH:(h + 1) * DH] for h in range(NUM_HEADS)], axis=0)
        v_st = jnp.concatenate([v[:, h * DH:(h + 1) * DH] for h in range(NUM_HEADS)], axis=0)

        # one block-masked attention matmul for all heads of this batch element
        scores = jax.lax.dot_general(
            q_st, k_st, (((1,), (1,)), ((), ())),
            preferred_element_type=jnp.float32)                      # (NHS, NHS)
        scores = scores * _ATTN_SCALE + attn_bias
        m = jnp.max(scores, axis=-1, keepdims=True)
        e = jnp.exp(scores - m)
        denom = jnp.sum(e, axis=-1, keepdims=True)
        p = e * pl.reciprocal(denom, approx=True)
        ctx_st = jnp.dot(p, v_st, preferred_element_type=jnp.float32)  # (NHS, DH)

        # un-stack heads back to (S, H)
        ctx = jnp.concatenate(
            [ctx_st[h * S:(h + 1) * S, :] for h in range(NUM_HEADS)], axis=1)

        attn = jnp.dot(ctx, wo_ref[l],
                       preferred_element_type=jnp.float32) + bo_ref[l]
        x = _layernorm(x + attn, ln1_g_ref[l], ln1_b_ref[l])

        ff = jnp.dot(x, w1_ref[l], preferred_element_type=jnp.float32) + b1_ref[l]
        ff = _gelu_exact(ff)
        ff = jnp.dot(ff, w2_ref[l], preferred_element_type=jnp.float32) + b2_ref[l]
        x = _layernorm(x + ff, ln2_g_ref[l], ln2_b_ref[l])

    # ---- mean over tokens [1:] (as a matmul) + [identity | classifier] -------
    # pool_ref rows are identical -> every output row carries the same result,
    # giving a fully lane/sublane-dense (S, OUT_W) store (no masked vst).
    cls_all = jnp.dot(pool_ref[...], x, preferred_element_type=jnp.float32)  # (S, H)
    # Dropout(p=0.1) -> identity in eval mode.
    out_all = jnp.dot(cls_all, wcomb_ref[...],
                      preferred_element_type=jnp.float32) + bcomb_ref[...]   # (S, OUT_W)
    out_ref[...] = out_all.astype(out_ref.dtype)


# --------------------------- parameter creation ------------------------------
def init_params(key):
    def nrm(k, shape):
        return 0.02 * jax.random.normal(k, shape, dtype=jnp.float32)

    ks = iter(jax.random.split(key, 12))
    return {
        "word_emb": nrm(next(ks), (VOCAB, H)),
        "pos_emb": nrm(next(ks), (S, H)),
        "type_emb": nrm(next(ks), (2, H)),
        "emb_ln_g": jnp.ones((1, H), jnp.float32),
        "emb_ln_b": jnp.zeros((1, H), jnp.float32),
        # per-layer weights stacked along a leading layer axis
        "wqkv": nrm(next(ks), (NUM_LAYERS, H, 3 * H)),
        "bqkv": jnp.zeros((NUM_LAYERS, 1, 3 * H), jnp.float32),
        "wo": nrm(next(ks), (NUM_LAYERS, H, H)),
        "bo": jnp.zeros((NUM_LAYERS, 1, H), jnp.float32),
        "ln1_g": jnp.ones((NUM_LAYERS, 1, H), jnp.float32),
        "ln1_b": jnp.zeros((NUM_LAYERS, 1, H), jnp.float32),
        "w1": nrm(next(ks), (NUM_LAYERS, H, INTER)),
        "b1": jnp.zeros((NUM_LAYERS, 1, INTER), jnp.float32),
        "w2": nrm(next(ks), (NUM_LAYERS, INTER, H)),
        "b2": jnp.zeros((NUM_LAYERS, 1, H), jnp.float32),
        "ln2_g": jnp.ones((NUM_LAYERS, 1, H), jnp.float32),
        "ln2_b": jnp.zeros((NUM_LAYERS, 1, H), jnp.float32),
        "wc": nrm(next(ks), (H, NUM_LABELS)),
        "bc": jnp.zeros((NUM_LABELS,), jnp.float32),
    }


# ------------------------------ full forward ---------------------------------
def bert_for_model_forward(params, input_ids, attention_mask):
    """Equivalent of BertForModel.forward(X) -> (CLSEmbedding, logits)."""
    Bsz, Sq = input_ids.shape
    ids = input_ids.astype(jnp.int32)                                # (B, S) -> SMEM

    # Block-diagonal-over-heads + key-padding additive mask, built once per
    # forward (hoisted out of all per-layer / per-head work).
    neg = jnp.float32(_MASK_NEG)
    key_pad = (1.0 - attention_mask.astype(jnp.float32)) * neg       # (B, S)
    r = jnp.arange(NHS)
    same_head = (r[:, None] // Sq) == (r[None, :] // Sq)             # (NHS, NHS)
    block_mask = jnp.where(same_head, 0.0, neg)
    pad_cols = jnp.tile(key_pad, (1, NUM_HEADS))                     # (B, NHS)
    mask_full = (block_mask[None, :, :] + pad_cols[:, None, :]).reshape(Bsz * NHS, NHS)

    # position + token-type(0) embedding rows, passed once as (S, H)
    pos_type = params["pos_emb"][:Sq] + params["type_emb"][0][None, :]

    # pooling matrix: mean over tokens [1:], replicated to S identical rows so
    # the classifier stage emits a fully dense (S, OUT_W) slab.
    # TODO(synk): mean over tokens[1:] divides by (Sq-1); degenerate for Sq==1.
    pool_row = jnp.concatenate(
        [jnp.zeros((1,), jnp.float32),
         jnp.full((Sq - 1,), 1.0 / (Sq - 1), jnp.float32)])
    pool_mat = jnp.tile(pool_row[None, :], (Sq, 1))                  # (S, S)

    # combined [identity | classifier] weight -> one lane-dense output slab
    wcomb = jnp.zeros((H, OUT_W), jnp.float32)
    wcomb = wcomb.at[:, :H].set(jnp.eye(H, dtype=jnp.float32))
    wcomb = wcomb.at[:, LANE:LANE + NUM_LABELS].set(params["wc"])
    bcomb = jnp.zeros((1, OUT_W), jnp.float32)
    bcomb = bcomb.at[0, LANE:LANE + NUM_LABELS].set(params["bc"])

    other_inputs = (mask_full, pool_mat, params["word_emb"], pos_type,
                    params["emb_ln_g"], params["emb_ln_b"],
                    params["wqkv"], params["bqkv"], params["wo"], params["bo"],
                    params["ln1_g"], params["ln1_b"],
                    params["w1"], params["b1"], params["w2"], params["b2"],
                    params["ln2_g"], params["ln2_b"],
                    wcomb, bcomb)

    def full_spec(shape):
        nd = len(shape)
        return pl.BlockSpec(shape, lambda b, ids_r, _nd=nd: (0,) * _nd)

    in_specs = [pl.BlockSpec((NHS, NHS), lambda b, ids_r: (b, 0))]    # per-batch mask
    in_specs += [full_spec(a.shape) for a in other_inputs[1:]]        # resident weights

    out_flat = pl.pallas_call(
        _bert_fused_kernel,
        out_shape=jax.ShapeDtypeStruct((Bsz * Sq, OUT_W), jnp.float32),
        grid_spec=pltpu.PrefetchScalarGridSpec(
            num_scalar_prefetch=1,
            grid=(Bsz,),
            in_specs=in_specs,
            out_specs=pl.BlockSpec((Sq, OUT_W), lambda b, ids_r: (b, 0)),
        ),
        compiler_params=pltpu.CompilerParams(
            dimension_semantics=("parallel",)),                      # megacore on v7x
    )(ids, *other_inputs)

    out3 = out_flat.reshape(Bsz, Sq, OUT_W)
    cls_emb = out3[:, 0, :H]
    logits = out3[:, 0, LANE:LANE + NUM_LABELS]
    return cls_emb, logits


# ---------------------------------- main -------------------------------------
if __name__ == "__main__":
    key = jax.random.PRNGKey(0)
    pkey, dkey = jax.random.split(key)
    params = init_params(pkey)

    input_ids = jax.random.randint(dkey, (B, S), 0, VOCAB, dtype=jnp.int32)
    attention_mask = jnp.ones((B, S), dtype=jnp.int32)

    fwd = jax.jit(bert_for_model_forward)
    cls_embedding, logits = fwd(params, input_ids, attention_mask)
    jax.block_until_ready((cls_embedding, logits))

    assert cls_embedding.shape == (B, H)
    assert logits.shape == (B, NUM_LABELS)
    assert bool(jnp.all(jnp.isfinite(cls_embedding)))
    assert bool(jnp.all(jnp.isfinite(logits)))
    print("KERNEL_OK")
</pallas_src>

<mosaic_0001>
module attributes {stable_mosaic.version = 11 : i64} {
  func.func @_bert_fused_kernel(%arg0: i32, %arg1: memref<2x8xi32, #tpu.memory_space<smem>>, %arg2: memref<16x16xf32, #tpu.memory_space<vmem>>, %arg3: memref<8x8xf32, #tpu.memory_space<vmem>>, %arg4: memref<64x32xf32, #tpu.memory_space<vmem>>, %arg5: memref<8x32xf32, #tpu.memory_space<vmem>>, %arg6: memref<1x32xf32, #tpu.memory_space<vmem>>, %arg7: memref<1x32xf32, #tpu.memory_space<vmem>>, %arg8: memref<2x32x96xf32, #tpu.memory_space<vmem>>, %arg9: memref<2x1x96xf32, #tpu.memory_space<vmem>>, %arg10: memref<2x32x32xf32, #tpu.memory_space<vmem>>, %arg11: memref<2x1x32xf32, #tpu.memory_space<vmem>>, %arg12: memref<2x1x32xf32, #tpu.memory_space<vmem>>, %arg13: memref<2x1x32xf32, #tpu.memory_space<vmem>>, %arg14: memref<2x32x64xf32, #tpu.memory_space<vmem>>, %arg15: memref<2x1x64xf32, #tpu.memory_space<vmem>>, %arg16: memref<2x64x32xf32, #tpu.memory_space<vmem>>, %arg17: memref<2x1x32xf32, #tpu.memory_space<vmem>>, %arg18: memref<2x1x32xf32, #tpu.memory_space<vmem>>, %arg19: memref<2x1x32xf32, #tpu.memory_space<vmem>>, %arg20: memref<32x256xf32, #tpu.memory_space<vmem>>, %arg21: memref<1x256xf32, #tpu.memory_space<vmem>>, %arg22: memref<8x256xf32, #tpu.memory_space<vmem>>) attributes {dimension_semantics = [#tpu.dimension_semantics<parallel>], iteration_bounds = array<i64: 2>, scalar_prefetch = 1 : i64, scratch_operands = 0 : i64, tpu.core_type = #tpu.core_type<tc>, window_params = [{transform_indices = @transform_0, window_bounds = array<i64: 16, 16>}, {pipeline_mode = #tpu.pipeline_mode<synchronous>, transform_indices = @transform_1, window_bounds = array<i64: 8, 8>}, {pipeline_mode = #tpu.pipeline_mode<synchronous>, transform_indices = @transform_2, window_bounds = array<i64: 64, 32>}, {pipeline_mode = #tpu.pipeline_mode<synchronous>, transform_indices = @transform_3, window_bounds = array<i64: 8, 32>}, {pipeline_mode = #tpu.pipeline_mode<synchronous>, transform_indices = @transform_4, window_bounds = array<i64: 1, 32>}, {pipeline_mode = #tpu.pipeline_mode<synchronous>, transform_indices = @transform_5, window_bounds = array<i64: 1, 32>}, {pipeline_mode = #tpu.pipeline_mode<synchronous>, transform_indices = @transform_6, window_bounds = array<i64: 2, 32, 96>}, {pipeline_mode = #tpu.pipeline_mode<synchronous>, transform_indices = @transform_7, window_bounds = array<i64: 2, 1, 96>}, {pipeline_mode = #tpu.pipeline_mode<synchronous>, transform_indices = @transform_8, window_bounds = array<i64: 2, 32, 32>}, {pipeline_mode = #tpu.pipeline_mode<synchronous>, transform_indices = @transform_9, window_bounds = array<i64: 2, 1, 32>}, {pipeline_mode = #tpu.pipeline_mode<synchronous>, transform_indices = @transform_10, window_bounds = array<i64: 2, 1, 32>}, {pipeline_mode = #tpu.pipeline_mode<synchronous>, transform_indices = @transform_11, window_bounds = array<i64: 2, 1, 32>}, {pipeline_mode = #tpu.pipeline_mode<synchronous>, transform_indices = @transform_12, window_bounds = array<i64: 2, 32, 64>}, {pipeline_mode = #tpu.pipeline_mode<synchronous>, transform_indices = @transform_13, window_bounds = array<i64: 2, 1, 64>}, {pipeline_mode = #tpu.pipeline_mode<synchronous>, transform_indices = @transform_14, window_bounds = array<i64: 2, 64, 32>}, {pipeline_mode = #tpu.pipeline_mode<synchronous>, transform_indices = @transform_15, window_bounds = array<i64: 2, 1, 32>}, {pipeline_mode = #tpu.pipeline_mode<synchronous>, transform_indices = @transform_16, window_bounds = array<i64: 2, 1, 32>}, {pipeline_mode = #tpu.pipeline_mode<synchronous>, transform_indices = @transform_17, window_bounds = array<i64: 2, 1, 32>}, {pipeline_mode = #tpu.pipeline_mode<synchronous>, transform_indices = @transform_18, window_bounds = array<i64: 32, 256>}, {pipeline_mode = #tpu.pipeline_mode<synchronous>, transform_indices = @transform_19, window_bounds = array<i64: 1, 256>}, {transform_indices = @transform_20, window_bounds = array<i64: 8, 256>}]} {
    %0 = tpu.iota {dimensions = array<i32: 1>} : vector<8x64xi32>
    %1 = tpu.iota {dimensions = array<i32: 0>} : vector<8x64xi32>
    %c0_i32 = arith.constant 0 : i32
    %2 = vector.broadcast %c0_i32 : i32 to vector<8x64xi32>
    %c0_i32_0 = arith.constant 0 : i32
    %3 = vector.broadcast %c0_i32_0 : i32 to vector<8x64xi32>
    %4 = arith.cmpi eq, %1, %3 : vector<8x64xi32>
    %5 = arith.index_cast %arg0 : i32 to index
    %c0 = arith.constant 0 : index
    %6 = memref.load %arg1[%5, %c0] : memref<2x8xi32, #tpu.memory_space<smem>>
    %7 = vector.broadcast %6 : i32 to vector<8x64xi32>
    %8 = arith.select %4, %7, %2 : vector<8x64xi1>, vector<8x64xi32>
    %c1_i32 = arith.constant 1 : i32
    %9 = vector.broadcast %c1_i32 : i32 to vector<8x64xi32>
    %10 = arith.cmpi eq, %1, %9 : vector<8x64xi32>
    %11 = arith.index_cast %arg0 : i32 to index
    %c1 = arith.constant 1 : index
    %12 = memref.load %arg1[%11, %c1] : memref<2x8xi32, #tpu.memory_space<smem>>
    %13 = vector.broadcast %12 : i32 to vector<8x64xi32>
    %14 = arith.select %10, %13, %8 : vector<8x64xi1>, vector<8x64xi32>
    %c2_i32 = arith.constant 2 : i32
    %15 = vector.broadcast %c2_i32 : i32 to vector<8x64xi32>
    %16 = arith.cmpi eq, %1, %15 : vector<8x64xi32>
    %17 = arith.index_cast %arg0 : i32 to index
    %c2 = arith.constant 2 : index
    %18 = memref.load %arg1[%17, %c2] : memref<2x8xi32, #tpu.memory_space<smem>>
    %19 = vector.broadcast %18 : i32 to vector<8x64xi32>
    %20 = arith.select %16, %19, %14 : vector<8x64xi1>, vector<8x64xi32>
    %c3_i32 = arith.constant 3 : i32
    %21 = vector.broadcast %c3_i32 : i32 to vector<8x64xi32>
    %22 = arith.cmpi eq, %1, %21 : vector<8x64xi32>
    %23 = arith.index_cast %arg0 : i32 to index
    %c3 = arith.constant 3 : index
    %24 = memref.load %arg1[%23, %c3] : memref<2x8xi32, #tpu.memory_space<smem>>
    %25 = vector.broadcast %24 : i32 to vector<8x64xi32>
    %26 = arith.select %22, %25, %20 : vector<8x64xi1>, vector<8x64xi32>
    %c4_i32 = arith.constant 4 : i32
    %27 = vector.broadcast %c4_i32 : i32 to vector<8x64xi32>
    %28 = arith.cmpi eq, %1, %27 : vector<8x64xi32>
    %29 = arith.index_cast %arg0 : i32 to index
    %c4 = arith.constant 4 : index
    %30 = memref.load %arg1[%29, %c4] : memref<2x8xi32, #tpu.memory_space<smem>>
    %31 = vector.broadcast %30 : i32 to vector<8x64xi32>
    %32 = arith.select %28, %31, %26 : vector<8x64xi1>, vector<8x64xi32>
    %c5_i32 = arith.constant 5 : i32
    %33 = vector.broadcast %c5_i32 : i32 to vector<8x64xi32>
    %34 = arith.cmpi eq, %1, %33 : vector<8x64xi32>
    %35 = arith.index_cast %arg0 : i32 to index
    %c5 = arith.constant 5 : index
    %36 = memref.load %arg1[%35, %c5] : memref<2x8xi32, #tpu.memory_space<smem>>
    %37 = vector.broadcast %36 : i32 to vector<8x64xi32>
    %38 = arith.select %34, %37, %32 : vector<8x64xi1>, vector<8x64xi32>
    %c6_i32 = arith.constant 6 : i32
    %39 = vector.broadcast %c6_i32 : i32 to vector<8x64xi32>
    %40 = arith.cmpi eq, %1, %39 : vector<8x64xi32>
    %41 = arith.index_cast %arg0 : i32 to index
    %c6 = arith.constant 6 : index
    %42 = memref.load %arg1[%41, %c6] : memref<2x8xi32, #tpu.memory_space<smem>>
    %43 = vector.broadcast %42 : i32 to vector<8x64xi32>
    %44 = arith.select %40, %43, %38 : vector<8x64xi1>, vector<8x64xi32>
    %c7_i32 = arith.constant 7 : i32
    %45 = vector.broadcast %c7_i32 : i32 to vector<8x64xi32>
    %46 = arith.cmpi eq, %1, %45 : vector<8x64xi32>
    %47 = arith.index_cast %arg0 : i32 to index
    %c7 = arith.constant 7 : index
    %48 = memref.load %arg1[%47, %c7] : memref<2x8xi32, #tpu.memory_space<smem>>
    %49 = vector.broadcast %48 : i32 to vector<8x64xi32>
    %50 = arith.select %46, %49, %44 : vector<8x64xi1>, vector<8x64xi32>
    %51 = arith.cmpi eq, %0, %50 : vector<8x64xi32>
    %52 = arith.extui %51 : vector<8x64xi1> to vector<8x64xi32>
    %53 = arith.sitofp %52 : vector<8x64xi32> to vector<8x64xf32>
    %c0_1 = arith.constant 0 : index
    %c0_2 = arith.constant 0 : index
    %54 = vector.load %arg4[%c0_1, %c0_2] : memref<64x32xf32, #tpu.memory_space<vmem>>, vector<64x32xf32>
    %cst = arith.constant dense<0.000000e+00> : vector<8x32xf32>
    %55 = tpu.matmul %53, %54, %cst {dimension_numbers = #tpu.dot_dimension_numbers<[1], [0], [0], [1], [0, 0, 1, 1], [], []>} : vector<8x64xf32>, vector<64x32xf32>, vector<8x32xf32> -> vector<8x32xf32>
    %c0_3 = arith.constant 0 : index
    %c0_4 = arith.constant 0 : index
    %56 = vector.load %arg5[%c0_3, %c0_4] : memref<8x32xf32, #tpu.memory_space<vmem>>, vector<8x32xf32>
    %57 = arith.addf %55, %56 : vector<8x32xf32>
    %c0_5 = arith.constant 0 : index
    %c0_6 = arith.constant 0 : index
    %58 = vector.load %arg6[%c0_5, %c0_6] : memref<1x32xf32, #tpu.memory_space<vmem>>, vector<1x32xf32>
    %c0_7 = arith.constant 0 : index
    %c0_8 = arith.constant 0 : index
    %59 = vector.load %arg7[%c0_7, %c0_8] : memref<1x32xf32, #tpu.memory_space<vmem>>, vector<1x32xf32>
    %cst_9 = arith.constant dense<0.000000e+00> : vector<8xf32>
    %60 = vector.multi_reduction <add>, %57, %cst_9 [1] : vector<8x32xf32> to vector<8xf32>
    %61 = vector.shape_cast %60 : vector<8xf32> to vector<8x1xf32>
    %cst_10 = arith.constant 3.200000e+01 : f32
    %62 = vector.broadcast %cst_10 : f32 to vector<8x1xf32>
    %63 = arith.divf %61, %62 : vector<8x1xf32>
    %64 = vector.broadcast %63 : vector<8x1xf32> to vector<8x32xf32>
    %65 = arith.subf %57, %64 : vector<8x32xf32>
    %66 = arith.mulf %65, %65 : vector<8x32xf32>
    %cst_11 = arith.constant dense<0.000000e+00> : vector<8xf32>
    %67 = vector.multi_reduction <add>, %66, %cst_11 [1] : vector<8x32xf32> to vector<8xf32>
    %68 = vector.shape_cast %67 : vector<8xf32> to vector<8x1xf32>
    %cst_12 = arith.constant 3.200000e+01 : f32
    %69 = vector.broadcast %cst_12 : f32 to vector<8x1xf32>
    %70 = arith.divf %68, %69 : vector<8x1xf32>
    %71 = vector.broadcast %63 : vector<8x1xf32> to vector<8x32xf32>
    %72 = arith.subf %57, %71 : vector<8x32xf32>
    %cst_13 = arith.constant 9.99999996E-13 : f32
    %73 = vector.broadcast %cst_13 : f32 to vector<8x1xf32>
    %74 = arith.addf %70, %73 : vector<8x1xf32>
    %75 = math.rsqrt %74 : vector<8x1xf32>
    %76 = vector.broadcast %75 : vector<8x1xf32> to vector<8x32xf32>
    %77 = arith.mulf %72, %76 : vector<8x32xf32>
    %78 = vector.broadcast %58 : vector<1x32xf32> to vector<8x32xf32>
    %79 = arith.mulf %77, %78 : vector<8x32xf32>
    %80 = vector.broadcast %59 : vector<1x32xf32> to vector<8x32xf32>
    %81 = arith.addf %79, %80 : vector<8x32xf32>
    %c0_14 = arith.constant 0 : index
    %c0_15 = arith.constant 0 : index
    %82 = vector.load %arg2[%c0_14, %c0_15] : memref<16x16xf32, #tpu.memory_space<vmem>>, vector<16x16xf32>
    %c0_16 = arith.constant 0 : index
    %c0_17 = arith.constant 0 : index
    %c0_18 = arith.constant 0 : index
    %83 = vector.load %arg8[%c0_16, %c0_17, %c0_18] : memref<2x32x96xf32, #tpu.memory_space<vmem>>, vector<1x32x96xf32>
    %84 = vector.shape_cast %83 : vector<1x32x96xf32> to vector<32x96xf32>
    %cst_19 = arith.constant dense<0.000000e+00> : vector<8x96xf32>
    %85 = tpu.matmul %81, %84, %cst_19 {dimension_numbers = #tpu.dot_dimension_numbers<[1], [0], [0], [1], [0, 0, 1, 1], [], []>} : vector<8x32xf32>, vector<32x96xf32>, vector<8x96xf32> -> vector<8x96xf32>
    %c0_20 = arith.constant 0 : index
    %c0_21 = arith.constant 0 : index
    %c0_22 = arith.constant 0 : index
    %86 = vector.load %arg9[%c0_20, %c0_21, %c0_22] : memref<2x1x96xf32, #tpu.memory_space<vmem>>, vector<1x1x96xf32>
    %87 = vector.shape_cast %86 : vector<1x1x96xf32> to vector<1x96xf32>
    %88 = vector.broadcast %87 : vector<1x96xf32> to vector<8x96xf32>
    %89 = arith.addf %85, %88 : vector<8x96xf32>
    %90 = vector.extract_strided_slice %89 {offsets = [0, 0], sizes = [8, 32], strides = [1, 1]} : vector<8x96xf32> to vector<8x32xf32>
    %91 = vector.extract_strided_slice %89 {offsets = [0, 32], sizes = [8, 32], strides = [1, 1]} : vector<8x96xf32> to vector<8x32xf32>
    %92 = vector.extract_strided_slice %89 {offsets = [0, 64], sizes = [8, 32], strides = [1, 1]} : vector<8x96xf32> to vector<8x32xf32>
    %93 = vector.extract_strided_slice %90 {offsets = [0, 0], sizes = [8, 16], strides = [1, 1]} : vector<8x32xf32> to vector<8x16xf32>
    %94 = vector.extract_strided_slice %90 {offsets = [0, 16], sizes = [8, 16], strides = [1, 1]} : vector<8x32xf32> to vector<8x16xf32>
    %95 = tpu.concatenate %93, %94 in 0 : vector<8x16xf32>, vector<8x16xf32> -> vector<16x16xf32>
    %96 = vector.extract_strided_slice %91 {offsets = [0, 0], sizes = [8, 16], strides = [1, 1]} : vector<8x32xf32> to vector<8x16xf32>
    %97 = vector.extract_strided_slice %91 {offsets = [0, 16], sizes = [8, 16], strides = [1, 1]} : vector<8x32xf32> to vector<8x16xf32>
    %98 = tpu.concatenate %96, %97 in 0 : vector<8x16xf32>, vector<8x16xf32> -> vector<16x16xf32>
    %99 = vector.extract_strided_slice %92 {offsets = [0, 0], sizes = [8, 16], strides = [1, 1]} : vector<8x32xf32> to vector<8x16xf32>
    %100 = vector.extract_strided_slice %92 {offsets = [0, 16], sizes = [8, 16], strides = [1, 1]} : vector<8x32xf32> to vector<8x16xf32>
    %101 = tpu.concatenate %99, %100 in 0 : vector<8x16xf32>, vector<8x16xf32> -> vector<16x16xf32>
    %cst_23 = arith.constant dense<0.000000e+00> : vector<16x16xf32>
    %102 = tpu.matmul %95, %98, %cst_23 {dimension_numbers = #tpu.dot_dimension_numbers<[1], [1], [0], [0], [0, 0, 1, 0], [], []>} : vector<16x16xf32>, vector<16x16xf32>, vector<16x16xf32> -> vector<16x16xf32>
    %cst_24 = arith.constant 2.500000e-01 : f32
    %103 = vector.broadcast %cst_24 : f32 to vector<16x16xf32>
    %104 = arith.mulf %102, %103 : vector<16x16xf32>
    %105 = arith.addf %104, %82 : vector<16x16xf32>
    %cst_25 = arith.constant dense<0xFF800000> : vector<16xf32>
    %106 = vector.multi_reduction <maximumf>, %105, %cst_25 [1] : vector<16x16xf32> to vector<16xf32>
    %107 = vector.shape_cast %106 : vector<16xf32> to vector<16x1xf32>
    %108 = vector.broadcast %107 : vector<16x1xf32> to vector<16x16xf32>
    %109 = arith.subf %105, %108 : vector<16x16xf32>
    %110 = math.exp %109 : vector<16x16xf32>
    %cst_26 = arith.constant dense<0.000000e+00> : vector<16xf32>
    %111 = vector.multi_reduction <add>, %110, %cst_26 [1] : vector<16x16xf32> to vector<16xf32>
    %112 = vector.shape_cast %111 : vector<16xf32> to vector<16x1xf32>
    %113 = tpu.reciprocal %112 {approx = true} : vector<16x1xf32> -> vector<16x1xf32>
    %114 = vector.broadcast %113 : vector<16x1xf32> to vector<16x16xf32>
    %115 = arith.mulf %110, %114 : vector<16x16xf32>
    %cst_27 = arith.constant dense<0.000000e+00> : vector<16x16xf32>
    %116 = tpu.matmul %115, %101, %cst_27 {dimension_numbers = #tpu.dot_dimension_numbers<[1], [0], [0], [1], [0, 0, 1, 1], [], []>} : vector<16x16xf32>, vector<16x16xf32>, vector<16x16xf32> -> vector<16x16xf32>
    %117 = vector.extract_strided_slice %116 {offsets = [0, 0], sizes = [8, 16], strides = [1, 1]} : vector<16x16xf32> to vector<8x16xf32>
    %118 = vector.extract_strided_slice %116 {offsets = [8, 0], sizes = [8, 16], strides = [1, 1]} : vector<16x16xf32> to vector<8x16xf32>
    %119 = tpu.concatenate %117, %118 in 1 : vector<8x16xf32>, vector<8x16xf32> -> vector<8x32xf32>
    %c0_28 = arith.constant 0 : index
    %c0_29 = arith.constant 0 : index
    %c0_30 = arith.constant 0 : index
    %120 = vector.load %arg10[%c0_28, %c0_29, %c0_30] : memref<2x32x32xf32, #tpu.memory_space<vmem>>, vector<1x32x32xf32>
    %121 = vector.shape_cast %120 : vector<1x32x32xf32> to vector<32x32xf32>
    %cst_31 = arith.constant dense<0.000000e+00> : vector<8x32xf32>
    %122 = tpu.matmul %119, %121, %cst_31 {dimension_numbers = #tpu.dot_dimension_numbers<[1], [0], [0], [1], [0, 0, 1, 1], [], []>} : vector<8x32xf32>, vector<32x32xf32>, vector<8x32xf32> -> vector<8x32xf32>
    %c0_32 = arith.constant 0 : index
    %c0_33 = arith.constant 0 : index
    %c0_34 = arith.constant 0 : index
    %123 = vector.load %arg11[%c0_32, %c0_33, %c0_34] : memref<2x1x32xf32, #tpu.memory_space<vmem>>, vector<1x1x32xf32>
    %124 = vector.shape_cast %123 : vector<1x1x32xf32> to vector<1x32xf32>
    %125 = vector.broadcast %124 : vector<1x32xf32> to vector<8x32xf32>
    %126 = arith.addf %122, %125 : vector<8x32xf32>
    %127 = arith.addf %81, %126 : vector<8x32xf32>
    %c0_35 = arith.constant 0 : index
    %c0_36 = arith.constant 0 : index
    %c0_37 = arith.constant 0 : index
    %128 = vector.load %arg12[%c0_35, %c0_36, %c0_37] : memref<2x1x32xf32, #tpu.memory_space<vmem>>, vector<1x1x32xf32>
    %129 = vector.shape_cast %128 : vector<1x1x32xf32> to vector<1x32xf32>
    %c0_38 = arith.constant 0 : index
    %c0_39 = arith.constant 0 : index
    %c0_40 = arith.constant 0 : index
    %130 = vector.load %arg13[%c0_38, %c0_39, %c0_40] : memref<2x1x32xf32, #tpu.memory_space<vmem>>, vector<1x1x32xf32>
    %131 = vector.shape_cast %130 : vector<1x1x32xf32> to vector<1x32xf32>
    %cst_41 = arith.constant dense<0.000000e+00> : vector<8xf32>
    %132 = vector.multi_reduction <add>, %127, %cst_41 [1] : vector<8x32xf32> to vector<8xf32>
    %133 = vector.shape_cast %132 : vector<8xf32> to vector<8x1xf32>
    %cst_42 = arith.constant 3.200000e+01 : f32
    %134 = vector.broadcast %cst_42 : f32 to vector<8x1xf32>
    %135 = arith.divf %133, %134 : vector<8x1xf32>
    %136 = vector.broadcast %135 : vector<8x1xf32> to vector<8x32xf32>
    %137 = arith.subf %127, %136 : vector<8x32xf32>
    %138 = arith.mulf %137, %137 : vector<8x32xf32>
    %cst_43 = arith.constant dense<0.000000e+00> : vector<8xf32>
    %139 = vector.multi_reduction <add>, %138, %cst_43 [1] : vector<8x32xf32> to vector<8xf32>
    %140 = vector.shape_cast %139 : vector<8xf32> to vector<8x1xf32>
    %cst_44 = arith.constant 3.200000e+01 : f32
    %141 = vector.broadcast %cst_44 : f32 to vector<8x1xf32>
    %142 = arith.divf %140, %141 : vector<8x1xf32>
    %143 = vector.broadcast %135 : vector<8x1xf32> to vector<8x32xf32>
    %144 = arith.subf %127, %143 : vector<8x32xf32>
    %cst_45 = arith.constant 9.99999996E-13 : f32
    %145 = vector.broadcast %cst_45 : f32 to vector<8x1xf32>
    %146 = arith.addf %142, %145 : vector<8x1xf32>
    %147 = math.rsqrt %146 : vector<8x1xf32>
    %148 = vector.broadcast %147 : vector<8x1xf32> to vector<8x32xf32>
    %149 = arith.mulf %144, %148 : vector<8x32xf32>
    %150 = vector.broadcast %129 : vector<1x32xf32> to vector<8x32xf32>
    %151 = arith.mulf %149, %150 : vector<8x32xf32>
    %152 = vector.broadcast %131 : vector<1x32xf32> to vector<8x32xf32>
    %153 = arith.addf %151, %152 : vector<8x32xf32>
    %c0_46 = arith.constant 0 : index
    %c0_47 = arith.constant 0 : index
    %c0_48 = arith.constant 0 : index
    %154 = vector.load %arg14[%c0_46, %c0_47, %c0_48] : memref<2x32x64xf32, #tpu.memory_space<vmem>>, vector<1x32x64xf32>
    %155 = vector.shape_cast %154 : vector<1x32x64xf32> to vector<32x64xf32>
    %cst_49 = arith.constant dense<0.000000e+00> : vector<8x64xf32>
    %156 = tpu.matmul %153, %155, %cst_49 {dimension_numbers = #tpu.dot_dimension_numbers<[1], [0], [0], [1], [0, 0, 1, 1], [], []>} : vector<8x32xf32>, vector<32x64xf32>, vector<8x64xf32> -> vector<8x64xf32>
    %c0_50 = arith.constant 0 : index
    %c0_51 = arith.constant 0 : index
    %c0_52 = arith.constant 0 : index
    %157 = vector.load %arg15[%c0_50, %c0_51, %c0_52] : memref<2x1x64xf32, #tpu.memory_space<vmem>>, vector<1x1x64xf32>
    %158 = vector.shape_cast %157 : vector<1x1x64xf32> to vector<1x64xf32>
    %159 = vector.broadcast %158 : vector<1x64xf32> to vector<8x64xf32>
    %160 = arith.addf %156, %159 : vector<8x64xf32>
    %cst_53 = arith.constant 5.000000e-01 : f32
    %161 = vector.broadcast %cst_53 : f32 to vector<8x64xf32>
    %162 = arith.mulf %161, %160 : vector<8x64xf32>
    %cst_54 = arith.constant 0.707106769 : f32
    %163 = vector.broadcast %cst_54 : f32 to vector<8x64xf32>
    %164 = arith.mulf %160, %163 : vector<8x64xf32>
    %cst_55 = arith.constant 0.000000e+00 : f32
    %165 = vector.broadcast %cst_55 : f32 to vector<8x64xf32>
    %166 = arith.cmpf oge, %164, %165 : vector<8x64xf32>
    %cst_56 = arith.constant 1.000000e+00 : f32
    %cst_57 = arith.constant -1.000000e+00 : f32
    %167 = vector.broadcast %cst_56 : f32 to vector<8x64xf32>
    %168 = vector.broadcast %cst_57 : f32 to vector<8x64xf32>
    %169 = arith.select %166, %167, %168 : vector<8x64xi1>, vector<8x64xf32>
    %170 = math.absf %164 : vector<8x64xf32>
    %cst_58 = arith.constant 0.327591091 : f32
    %171 = vector.broadcast %cst_58 : f32 to vector<8x64xf32>
    %172 = arith.mulf %171, %170 : vector<8x64xf32>
    %cst_59 = arith.constant 1.000000e+00 : f32
    %173 = vector.broadcast %cst_59 : f32 to vector<8x64xf32>
    %174 = arith.addf %173, %172 : vector<8x64xf32>
    %cst_60 = arith.constant 1.000000e+00 : f32
    %175 = vector.broadcast %cst_60 : f32 to vector<8x64xf32>
    %176 = arith.divf %175, %174 : vector<8x64xf32>
    %cst_61 = arith.constant 1.06140542 : f32
    %177 = vector.broadcast %cst_61 : f32 to vector<8x64xf32>
    %178 = arith.mulf %177, %176 : vector<8x64xf32>
    %cst_62 = arith.constant -1.45315206 : f32
    %179 = vector.broadcast %cst_62 : f32 to vector<8x64xf32>
    %180 = arith.addf %178, %179 : vector<8x64xf32>
    %181 = arith.mulf %180, %176 : vector<8x64xf32>
    %cst_63 = arith.constant 1.42141378 : f32
    %182 = vector.broadcast %cst_63 : f32 to vector<8x64xf32>
    %183 = arith.addf %181, %182 : vector<8x64xf32>
    %184 = arith.mulf %183, %176 : vector<8x64xf32>
    %cst_64 = arith.constant -0.284496725 : f32
    %185 = vector.broadcast %cst_64 : f32 to vector<8x64xf32>
    %186 = arith.addf %184, %185 : vector<8x64xf32>
    %187 = arith.mulf %186, %176 : vector<8x64xf32>
    %cst_65 = arith.constant 0.254829586 : f32
    %188 = vector.broadcast %cst_65 : f32 to vector<8x64xf32>
    %189 = arith.addf %187, %188 : vector<8x64xf32>
    %190 = arith.mulf %189, %176 : vector<8x64xf32>
    %cst_66 = arith.constant 0.000000e+00 : f32
    %191 = vector.broadcast %cst_66 : f32 to vector<8x64xf32>
    %192 = arith.subf %191, %170 : vector<8x64xf32>
    %193 = arith.mulf %192, %170 : vector<8x64xf32>
    %194 = math.exp %193 : vector<8x64xf32>
    %195 = arith.mulf %190, %194 : vector<8x64xf32>
    %cst_67 = arith.constant 1.000000e+00 : f32
    %196 = vector.broadcast %cst_67 : f32 to vector<8x64xf32>
    %197 = arith.subf %196, %195 : vector<8x64xf32>
    %198 = arith.mulf %169, %197 : vector<8x64xf32>
    %cst_68 = arith.constant 1.000000e+00 : f32
    %199 = vector.broadcast %cst_68 : f32 to vector<8x64xf32>
    %200 = arith.addf %199, %198 : vector<8x64xf32>
    %201 = arith.mulf %162, %200 : vector<8x64xf32>
    %c0_69 = arith.constant 0 : index
    %c0_70 = arith.constant 0 : index
    %c0_71 = arith.constant 0 : index
    %202 = vector.load %arg16[%c0_69, %c0_70, %c0_71] : memref<2x64x32xf32, #tpu.memory_space<vmem>>, vector<1x64x32xf32>
    %203 = vector.shape_cast %202 : vector<1x64x32xf32> to vector<64x32xf32>
    %cst_72 = arith.constant dense<0.000000e+00> : vector<8x32xf32>
    %204 = tpu.matmul %201, %203, %cst_72 {dimension_numbers = #tpu.dot_dimension_numbers<[1], [0], [0], [1], [0, 0, 1, 1], [], []>} : vector<8x64xf32>, vector<64x32xf32>, vector<8x32xf32> -> vector<8x32xf32>
    %c0_73 = arith.constant 0 : index
    %c0_74 = arith.constant 0 : index
    %c0_75 = arith.constant 0 : index
    %205 = vector.load %arg17[%c0_73, %c0_74, %c0_75] : memref<2x1x32xf32, #tpu.memory_space<vmem>>, vector<1x1x32xf32>
    %206 = vector.shape_cast %205 : vector<1x1x32xf32> to vector<1x32xf32>
    %207 = vector.broadcast %206 : vector<1x32xf32> to vector<8x32xf32>
    %208 = arith.addf %204, %207 : vector<8x32xf32>
    %209 = arith.addf %153, %208 : vector<8x32xf32>
    %c0_76 = arith.constant 0 : index
    %c0_77 = arith.constant 0 : index
    %c0_78 = arith.constant 0 : index
    %210 = vector.load %arg18[%c0_76, %c0_77, %c0_78] : memref<2x1x32xf32, #tpu.memory_space<vmem>>, vector<1x1x32xf32>
    %211 = vector.shape_cast %210 : vector<1x1x32xf32> to vector<1x32xf32>
    %c0_79 = arith.constant 0 : index
    %c0_80 = arith.constant 0 : index
    %c0_81 = arith.constant 0 : index
    %212 = vector.load %arg19[%c0_79, %c0_80, %c0_81] : memref<2x1x32xf32, #tpu.memory_space<vmem>>, vector<1x1x32xf32>
    %213 = vector.shape_cast %212 : vector<1x1x32xf32> to vector<1x32xf32>
    %cst_82 = arith.constant dense<0.000000e+00> : vector<8xf32>
    %214 = vector.multi_reduction <add>, %209, %cst_82 [1] : vector<8x32xf32> to vector<8xf32>
    %215 = vector.shape_cast %214 : vector<8xf32> to vector<8x1xf32>
    %cst_83 = arith.constant 3.200000e+01 : f32
    %216 = vector.broadcast %cst_83 : f32 to vector<8x1xf32>
    %217 = arith.divf %215, %216 : vector<8x1xf32>
    %218 = vector.broadcast %217 : vector<8x1xf32> to vector<8x32xf32>
    %219 = arith.subf %209, %218 : vector<8x32xf32>
    %220 = arith.mulf %219, %219 : vector<8x32xf32>
    %cst_84 = arith.constant dense<0.000000e+00> : vector<8xf32>
    %221 = vector.multi_reduction <add>, %220, %cst_84 [1] : vector<8x32xf32> to vector<8xf32>
    %222 = vector.shape_cast %221 : vector<8xf32> to vector<8x1xf32>
    %cst_85 = arith.constant 3.200000e+01 : f32
    %223 = vector.broadcast %cst_85 : f32 to vector<8x1xf32>
    %224 = arith.divf %222, %223 : vector<8x1xf32>
    %225 = vector.broadcast %217 : vector<8x1xf32> to vector<8x32xf32>
    %226 = arith.subf %209, %225 : vector<8x32xf32>
    %cst_86 = arith.constant 9.99999996E-13 : f32
    %227 = vector.broadcast %cst_86 : f32 to vector<8x1xf32>
    %228 = arith.addf %224, %227 : vector<8x1xf32>
    %229 = math.rsqrt %228 : vector<8x1xf32>
    %230 = vector.broadcast %229 : vector<8x1xf32> to vector<8x32xf32>
    %231 = arith.mulf %226, %230 : vector<8x32xf32>
    %232 = vector.broadcast %211 : vector<1x32xf32> to vector<8x32xf32>
    %233 = arith.mulf %231, %232 : vector<8x32xf32>
    %234 = vector.broadcast %213 : vector<1x32xf32> to vector<8x32xf32>
    %235 = arith.addf %233, %234 : vector<8x32xf32>
    %c1_87 = arith.constant 1 : index
    %c0_88 = arith.constant 0 : index
    %c0_89 = arith.constant 0 : index
    %236 = vector.load %arg8[%c1_87, %c0_88, %c0_89] : memref<2x32x96xf32, #tpu.memory_space<vmem>>, vector<1x32x96xf32>
    %237 = vector.shape_cast %236 : vector<1x32x96xf32> to vector<32x96xf32>
    %cst_90 = arith.constant dense<0.000000e+00> : vector<8x96xf32>
    %238 = tpu.matmul %235, %237, %cst_90 {dimension_numbers = #tpu.dot_dimension_numbers<[1], [0], [0], [1], [0, 0, 1, 1], [], []>} : vector<8x32xf32>, vector<32x96xf32>, vector<8x96xf32> -> vector<8x96xf32>
    %c1_91 = arith.constant 1 : index
    %c0_92 = arith.constant 0 : index
    %c0_93 = arith.constant 0 : index
    %239 = vector.load %arg9[%c1_91, %c0_92, %c0_93] : memref<2x1x96xf32, #tpu.memory_space<vmem>>, vector<1x1x96xf32>
    %240 = vector.shape_cast %239 : vector<1x1x96xf32> to vector<1x96xf32>
    %241 = vector.broadcast %240 : vector<1x96xf32> to vector<8x96xf32>
    %242 = arith.addf %238, %241 : vector<8x96xf32>
    %243 = vector.extract_strided_slice %242 {offsets = [0, 0], sizes = [8, 32], strides = [1, 1]} : vector<8x96xf32> to vector<8x32xf32>
    %244 = vector.extract_strided_slice %242 {offsets = [0, 32], sizes = [8, 32], strides = [1, 1]} : vector<8x96xf32> to vector<8x32xf32>
    %245 = vector.extract_strided_slice %242 {offsets = [0, 64], sizes = [8, 32], strides = [1, 1]} : vector<8x96xf32> to vector<8x32xf32>
    %246 = vector.extract_strided_slice %243 {offsets = [0, 0], sizes = [8, 16], strides = [1, 1]} : vector<8x32xf32> to vector<8x16xf32>
    %247 = vector.extract_strided_slice %243 {offsets = [0, 16], sizes = [8, 16], strides = [1, 1]} : vector<8x32xf32> to vector<8x16xf32>
    %248 = tpu.concatenate %246, %247 in 0 : vector<8x16xf32>, vector<8x16xf32> -> vector<16x16xf32>
    %249 = vector.extract_strided_slice %244 {offsets = [0, 0], sizes = [8, 16], strides = [1, 1]} : vector<8x32xf32> to vector<8x16xf32>
    %250 = vector.extract_strided_slice %244 {offsets = [0, 16], sizes = [8, 16], strides = [1, 1]} : vector<8x32xf32> to vector<8x16xf32>
    %251 = tpu.concatenate %249, %250 in 0 : vector<8x16xf32>, vector<8x16xf32> -> vector<16x16xf32>
    %252 = vector.extract_strided_slice %245 {offsets = [0, 0], sizes = [8, 16], strides = [1, 1]} : vector<8x32xf32> to vector<8x16xf32>
    %253 = vector.extract_strided_slice %245 {offsets = [0, 16], sizes = [8, 16], strides = [1, 1]} : vector<8x32xf32> to vector<8x16xf32>
    %254 = tpu.concatenate %252, %253 in 0 : vector<8x16xf32>, vector<8x16xf32> -> vector<16x16xf32>
    %cst_94 = arith.constant dense<0.000000e+00> : vector<16x16xf32>
    %255 = tpu.matmul %248, %251, %cst_94 {dimension_numbers = #tpu.dot_dimension_numbers<[1], [1], [0], [0], [0, 0, 1, 0], [], []>} : vector<16x16xf32>, vector<16x16xf32>, vector<16x16xf32> -> vector<16x16xf32>
    %cst_95 = arith.constant 2.500000e-01 : f32
    %256 = vector.broadcast %cst_95 : f32 to vector<16x16xf32>
    %257 = arith.mulf %255, %256 : vector<16x16xf32>
    %258 = arith.addf %257, %82 : vector<16x16xf32>
    %cst_96 = arith.constant dense<0xFF800000> : vector<16xf32>
    %259 = vector.multi_reduction <maximumf>, %258, %cst_96 [1] : vector<16x16xf32> to vector<16xf32>
    %260 = vector.shape_cast %259 : vector<16xf32> to vector<16x1xf32>
    %261 = vector.broadcast %260 : vector<16x1xf32> to vector<16x16xf32>
    %262 = arith.subf %258, %261 : vector<16x16xf32>
    %263 = math.exp %262 : vector<16x16xf32>
    %cst_97 = arith.constant dense<0.000000e+00> : vector<16xf32>
    %264 = vector.multi_reduction <add>, %263, %cst_97 [1] : vector<16x16xf32> to vector<16xf32>
    %265 = vector.shape_cast %264 : vector<16xf32> to vector<16x1xf32>
    %266 = tpu.reciprocal %265 {approx = true} : vector<16x1xf32> -> vector<16x1xf32>
    %267 = vector.broadcast %266 : vector<16x1xf32> to vector<16x16xf32>
    %268 = arith.mulf %263, %267 : vector<16x16xf32>
    %cst_98 = arith.constant dense<0.000000e+00> : vector<16x16xf32>
    %269 = tpu.matmul %268, %254, %cst_98 {dimension_numbers = #tpu.dot_dimension_numbers<[1], [0], [0], [1], [0, 0, 1, 1], [], []>} : vector<16x16xf32>, vector<16x16xf32>, vector<16x16xf32> -> vector<16x16xf32>
    %270 = vector.extract_strided_slice %269 {offsets = [0, 0], sizes = [8, 16], strides = [1, 1]} : vector<16x16xf32> to vector<8x16xf32>
    %271 = vector.extract_strided_slice %269 {offsets = [8, 0], sizes = [8, 16], strides = [1, 1]} : vector<16x16xf32> to vector<8x16xf32>
    %272 = tpu.concatenate %270, %271 in 1 : vector<8x16xf32>, vector<8x16xf32> -> vector<8x32xf32>
    %c1_99 = arith.constant 1 : index
    %c0_100 = arith.constant 0 : index
    %c0_101 = arith.constant 0 : index
    %273 = vector.load %arg10[%c1_99, %c0_100, %c0_101] : memref<2x32x32xf32, #tpu.memory_space<vmem>>, vector<1x32x32xf32>
    %274 = vector.shape_cast %273 : vector<1x32x32xf32> to vector<32x32xf32>
    %cst_102 = arith.constant dense<0.000000e+00> : vector<8x32xf32>
    %275 = tpu.matmul %272, %274, %cst_102 {dimension_numbers = #tpu.dot_dimension_numbers<[1], [0], [0], [1], [0, 0, 1, 1], [], []>} : vector<8x32xf32>, vector<32x32xf32>, vector<8x32xf32> -> vector<8x32xf32>
    %c1_103 = arith.constant 1 : index
    %c0_104 = arith.constant 0 : index
    %c0_105 = arith.constant 0 : index
    %276 = vector.load %arg11[%c1_103, %c0_104, %c0_105] : memref<2x1x32xf32, #tpu.memory_space<vmem>>, vector<1x1x32xf32>
    %277 = vector.shape_cast %276 : vector<1x1x32xf32> to vector<1x32xf32>
    %278 = vector.broadcast %277 : vector<1x32xf32> to vector<8x32xf32>
    %279 = arith.addf %275, %278 : vector<8x32xf32>
    %280 = arith.addf %235, %279 : vector<8x32xf32>
    %c1_106 = arith.constant 1 : index
    %c0_107 = arith.constant 0 : index
    %c0_108 = arith.constant 0 : index
    %281 = vector.load %arg12[%c1_106, %c0_107, %c0_108] : memref<2x1x32xf32, #tpu.memory_space<vmem>>, vector<1x1x32xf32>
    %282 = vector.shape_cast %281 : vector<1x1x32xf32> to vector<1x32xf32>
    %c1_109 = arith.constant 1 : index
    %c0_110 = arith.constant 0 : index
    %c0_111 = arith.constant 0 : index
    %283 = vector.load %arg13[%c1_109, %c0_110, %c0_111] : memref<2x1x32xf32, #tpu.memory_space<vmem>>, vector<1x1x32xf32>
    %284 = vector.shape_cast %283 : vector<1x1x32xf32> to vector<1x32xf32>
    %cst_112 = arith.constant dense<0.000000e+00> : vector<8xf32>
    %285 = vector.multi_reduction <add>, %280, %cst_112 [1] : vector<8x32xf32> to vector<8xf32>
    %286 = vector.shape_cast %285 : vector<8xf32> to vector<8x1xf32>
    %cst_113 = arith.constant 3.200000e+01 : f32
    %287 = vector.broadcast %cst_113 : f32 to vector<8x1xf32>
    %288 = arith.divf %286, %287 : vector<8x1xf32>
    %289 = vector.broadcast %288 : vector<8x1xf32> to vector<8x32xf32>
    %290 = arith.subf %280, %289 : vector<8x32xf32>
    %291 = arith.mulf %290, %290 : vector<8x32xf32>
    %cst_114 = arith.constant dense<0.000000e+00> : vector<8xf32>
    %292 = vector.multi_reduction <add>, %291, %cst_114 [1] : vector<8x32xf32> to vector<8xf32>
    %293 = vector.shape_cast %292 : vector<8xf32> to vector<8x1xf32>
    %cst_115 = arith.constant 3.200000e+01 : f32
    %294 = vector.broadcast %cst_115 : f32 to vector<8x1xf32>
    %295 = arith.divf %293, %294 : vector<8x1xf32>
    %296 = vector.broadcast %288 : vector<8x1xf32> to vector<8x32xf32>
    %297 = arith.subf %280, %296 : vector<8x32xf32>
    %cst_116 = arith.constant 9.99999996E-13 : f32
    %298 = vector.broadcast %cst_116 : f32 to vector<8x1xf32>
    %299 = arith.addf %295, %298 : vector<8x1xf32>
    %300 = math.rsqrt %299 : vector<8x1xf32>
    %301 = vector.broadcast %300 : vector<8x1xf32> to vector<8x32xf32>
    %302 = arith.mulf %297, %301 : vector<8x32xf32>
    %303 = vector.broadcast %282 : vector<1x32xf32> to vector<8x32xf32>
    %304 = arith.mulf %302, %303 : vector<8x32xf32>
    %305 = vector.broadcast %284 : vector<1x32xf32> to vector<8x32xf32>
    %306 = arith.addf %304, %305 : vector<8x32xf32>
    %c1_117 = arith.constant 1 : index
    %c0_118 = arith.constant 0 : index
    %c0_119 = arith.constant 0 : index
    %307 = vector.load %arg14[%c1_117, %c0_118, %c0_119] : memref<2x32x64xf32, #tpu.memory_space<vmem>>, vector<1x32x64xf32>
    %308 = vector.shape_cast %307 : vector<1x32x64xf32> to vector<32x64xf32>
    %cst_120 = arith.constant dense<0.000000e+00> : vector<8x64xf32>
    %309 = tpu.matmul %306, %308, %cst_120 {dimension_numbers = #tpu.dot_dimension_numbers<[1], [0], [0], [1], [0, 0, 1, 1], [], []>} : vector<8x32xf32>, vector<32x64xf32>, vector<8x64xf32> -> vector<8x64xf32>
    %c1_121 = arith.constant 1 : index
    %c0_122 = arith.constant 0 : index
    %c0_123 = arith.constant 0 : index
    %310 = vector.load %arg15[%c1_121, %c0_122, %c0_123] : memref<2x1x64xf32, #tpu.memory_space<vmem>>, vector<1x1x64xf32>
    %311 = vector.shape_cast %310 : vector<1x1x64xf32> to vector<1x64xf32>
    %312 = vector.broadcast %311 : vector<1x64xf32> to vector<8x64xf32>
    %313 = arith.addf %309, %312 : vector<8x64xf32>
    %cst_124 = arith.constant 5.000000e-01 : f32
    %314 = vector.broadcast %cst_124 : f32 to vector<8x64xf32>
    %315 = arith.mulf %314, %313 : vector<8x64xf32>
    %cst_125 = arith.constant 0.707106769 : f32
    %316 = vector.broadcast %cst_125 : f32 to vector<8x64xf32>
    %317 = arith.mulf %313, %316 : vector<8x64xf32>
    %cst_126 = arith.constant 0.000000e+00 : f32
    %318 = vector.broadcast %cst_126 : f32 to vector<8x64xf32>
    %319 = arith.cmpf oge, %317, %318 : vector<8x64xf32>
    %cst_127 = arith.constant 1.000000e+00 : f32
    %cst_128 = arith.constant -1.000000e+00 : f32
    %320 = vector.broadcast %cst_127 : f32 to vector<8x64xf32>
    %321 = vector.broadcast %cst_128 : f32 to vector<8x64xf32>
    %322 = arith.select %319, %320, %321 : vector<8x64xi1>, vector<8x64xf32>
    %323 = math.absf %317 : vector<8x64xf32>
    %cst_129 = arith.constant 0.327591091 : f32
    %324 = vector.broadcast %cst_129 : f32 to vector<8x64xf32>
    %325 = arith.mulf %324, %323 : vector<8x64xf32>
    %cst_130 = arith.constant 1.000000e+00 : f32
    %326 = vector.broadcast %cst_130 : f32 to vector<8x64xf32>
    %327 = arith.addf %326, %325 : vector<8x64xf32>
    %cst_131 = arith.constant 1.000000e+00 : f32
    %328 = vector.broadcast %cst_131 : f32 to vector<8x64xf32>
    %329 = arith.divf %328, %327 : vector<8x64xf32>
    %cst_132 = arith.constant 1.06140542 : f32
    %330 = vector.broadcast %cst_132 : f32 to vector<8x64xf32>
    %331 = arith.mulf %330, %329 : vector<8x64xf32>
    %cst_133 = arith.constant -1.45315206 : f32
    %332 = vector.broadcast %cst_133 : f32 to vector<8x64xf32>
    %333 = arith.addf %331, %332 : vector<8x64xf32>
    %334 = arith.mulf %333, %329 : vector<8x64xf32>
    %cst_134 = arith.constant 1.42141378 : f32
    %335 = vector.broadcast %cst_134 : f32 to vector<8x64xf32>
    %336 = arith.addf %334, %335 : vector<8x64xf32>
    %337 = arith.mulf %336, %329 : vector<8x64xf32>
    %cst_135 = arith.constant -0.284496725 : f32
    %338 = vector.broadcast %cst_135 : f32 to vector<8x64xf32>
    %339 = arith.addf %337, %338 : vector<8x64xf32>
    %340 = arith.mulf %339, %329 : vector<8x64xf32>
    %cst_136 = arith.constant 0.254829586 : f32
    %341 = vector.broadcast %cst_136 : f32 to vector<8x64xf32>
    %342 = arith.addf %340, %341 : vector<8x64xf32>
    %343 = arith.mulf %342, %329 : vector<8x64xf32>
    %cst_137 = arith.constant 0.000000e+00 : f32
    %344 = vector.broadcast %cst_137 : f32 to vector<8x64xf32>
    %345 = arith.subf %344, %323 : vector<8x64xf32>
    %346 = arith.mulf %345, %323 : vector<8x64xf32>
    %347 = math.exp %346 : vector<8x64xf32>
    %348 = arith.mulf %343, %347 : vector<8x64xf32>
    %cst_138 = arith.constant 1.000000e+00 : f32
    %349 = vector.broadcast %cst_138 : f32 to vector<8x64xf32>
    %350 = arith.subf %349, %348 : vector<8x64xf32>
    %351 = arith.mulf %322, %350 : vector<8x64xf32>
    %cst_139 = arith.constant 1.000000e+00 : f32
    %352 = vector.broadcast %cst_139 : f32 to vector<8x64xf32>
    %353 = arith.addf %352, %351 : vector<8x64xf32>
    %354 = arith.mulf %315, %353 : vector<8x64xf32>
    %c1_140 = arith.constant 1 : index
    %c0_141 = arith.constant 0 : index
    %c0_142 = arith.constant 0 : index
    %355 = vector.load %arg16[%c1_140, %c0_141, %c0_142] : memref<2x64x32xf32, #tpu.memory_space<vmem>>, vector<1x64x32xf32>
    %356 = vector.shape_cast %355 : vector<1x64x32xf32> to vector<64x32xf32>
    %cst_143 = arith.constant dense<0.000000e+00> : vector<8x32xf32>
    %357 = tpu.matmul %354, %356, %cst_143 {dimension_numbers = #tpu.dot_dimension_numbers<[1], [0], [0], [1], [0, 0, 1, 1], [], []>} : vector<8x64xf32>, vector<64x32xf32>, vector<8x32xf32> -> vector<8x32xf32>
    %c1_144 = arith.constant 1 : index
    %c0_145 = arith.constant 0 : index
    %c0_146 = arith.constant 0 : index
    %358 = vector.load %arg17[%c1_144, %c0_145, %c0_146] : memref<2x1x32xf32, #tpu.memory_space<vmem>>, vector<1x1x32xf32>
    %359 = vector.shape_cast %358 : vector<1x1x32xf32> to vector<1x32xf32>
    %360 = vector.broadcast %359 : vector<1x32xf32> to vector<8x32xf32>
    %361 = arith.addf %357, %360 : vector<8x32xf32>
    %362 = arith.addf %306, %361 : vector<8x32xf32>
    %c1_147 = arith.constant 1 : index
    %c0_148 = arith.constant 0 : index
    %c0_149 = arith.constant 0 : index
    %363 = vector.load %arg18[%c1_147, %c0_148, %c0_149] : memref<2x1x32xf32, #tpu.memory_space<vmem>>, vector<1x1x32xf32>
    %364 = vector.shape_cast %363 : vector<1x1x32xf32> to vector<1x32xf32>
    %c1_150 = arith.constant 1 : index
    %c0_151 = arith.constant 0 : index
    %c0_152 = arith.constant 0 : index
    %365 = vector.load %arg19[%c1_150, %c0_151, %c0_152] : memref<2x1x32xf32, #tpu.memory_space<vmem>>, vector<1x1x32xf32>
    %366 = vector.shape_cast %365 : vector<1x1x32xf32> to vector<1x32xf32>
    %cst_153 = arith.constant dense<0.000000e+00> : vector<8xf32>
    %367 = vector.multi_reduction <add>, %362, %cst_153 [1] : vector<8x32xf32> to vector<8xf32>
    %368 = vector.shape_cast %367 : vector<8xf32> to vector<8x1xf32>
    %cst_154 = arith.constant 3.200000e+01 : f32
    %369 = vector.broadcast %cst_154 : f32 to vector<8x1xf32>
    %370 = arith.divf %368, %369 : vector<8x1xf32>
    %371 = vector.broadcast %370 : vector<8x1xf32> to vector<8x32xf32>
    %372 = arith.subf %362, %371 : vector<8x32xf32>
    %373 = arith.mulf %372, %372 : vector<8x32xf32>
    %cst_155 = arith.constant dense<0.000000e+00> : vector<8xf32>
    %374 = vector.multi_reduction <add>, %373, %cst_155 [1] : vector<8x32xf32> to vector<8xf32>
    %375 = vector.shape_cast %374 : vector<8xf32> to vector<8x1xf32>
    %cst_156 = arith.constant 3.200000e+01 : f32
    %376 = vector.broadcast %cst_156 : f32 to vector<8x1xf32>
    %377 = arith.divf %375, %376 : vector<8x1xf32>
    %378 = vector.broadcast %370 : vector<8x1xf32> to vector<8x32xf32>
    %379 = arith.subf %362, %378 : vector<8x32xf32>
    %cst_157 = arith.constant 9.99999996E-13 : f32
    %380 = vector.broadcast %cst_157 : f32 to vector<8x1xf32>
    %381 = arith.addf %377, %380 : vector<8x1xf32>
    %382 = math.rsqrt %381 : vector<8x1xf32>
    %383 = vector.broadcast %382 : vector<8x1xf32> to vector<8x32xf32>
    %384 = arith.mulf %379, %383 : vector<8x32xf32>
    %385 = vector.broadcast %364 : vector<1x32xf32> to vector<8x32xf32>
    %386 = arith.mulf %384, %385 : vector<8x32xf32>
    %387 = vector.broadcast %366 : vector<1x32xf32> to vector<8x32xf32>
    %388 = arith.addf %386, %387 : vector<8x32xf32>
    %c0_158 = arith.constant 0 : index
    %c0_159 = arith.constant 0 : index
    %389 = vector.load %arg3[%c0_158, %c0_159] : memref<8x8xf32, #tpu.memory_space<vmem>>, vector<8x8xf32>
    %cst_160 = arith.constant dense<0.000000e+00> : vector<8x32xf32>
    %390 = tpu.matmul %389, %388, %cst_160 {dimension_numbers = #tpu.dot_dimension_numbers<[1], [0], [0], [1], [0, 0, 1, 1], [], []>} : vector<8x8xf32>, vector<8x32xf32>, vector<8x32xf32> -> vector<8x32xf32>
    %c0_161 = arith.constant 0 : index
    %c0_162 = arith.constant 0 : index
    %391 = vector.load %arg20[%c0_161, %c0_162] : memref<32x256xf32, #tpu.memory_space<vmem>>, vector<32x256xf32>
    %cst_163 = arith.constant dense<0.000000e+00> : vector<8x256xf32>
    %392 = tpu.matmul %390, %391, %cst_163 {dimension_numbers = #tpu.dot_dimension_numbers<[1], [0], [0], [1], [0, 0, 1, 1], [], []>} : vector<8x32xf32>, vector<32x256xf32>, vector<8x256xf32> -> vector<8x256xf32>
    %c0_164 = arith.constant 0 : index
    %c0_165 = arith.constant 0 : index
    %393 = vector.load %arg21[%c0_164, %c0_165] : memref<1x256xf32, #tpu.memory_space<vmem>>, vector<1x256xf32>
    %394 = vector.broadcast %393 : vector<1x256xf32> to vector<8x256xf32>
    %395 = arith.addf %392, %394 : vector<8x256xf32>
    %c0_166 = arith.constant 0 : index
    %c0_167 = arith.constant 0 : index
    %396 = vector.load %arg22[%c0_166, %c0_167] : memref<8x256xf32, #tpu.memory_space<vmem>>, vector<8x256xf32>
    tpu.vector_store %arg22[%c0_166, %c0_167], %395 {strides = array<i32>} : memref<8x256xf32, #tpu.memory_space<vmem>>, vector<8x256xf32>,
    return
  }
  func.func @transform_0(%arg0: i32, %arg1: memref<2x8xi32, #tpu.memory_space<smem>>) -> (i32, i32) {
    %c0_i32 = arith.constant 0 : i32
    %c0_i32_0 = arith.constant 0 : i32
    return %arg0, %c0_i32 : i32, i32
  }
  func.func @transform_1(%arg0: i32, %arg1: memref<2x8xi32, #tpu.memory_space<smem>>) -> (i32, i32) {
    %c0_i32 = arith.constant 0 : i32
    %c0_i32_0 = arith.constant 0 : i32
    %c0_i32_1 = arith.constant 0 : i32
    return %c0_i32, %c0_i32_0 : i32, i32
  }
  func.func @transform_2(%arg0: i32, %arg1: memref<2x8xi32, #tpu.memory_space<smem>>) -> (i32, i32) {
    %c0_i32 = arith.constant 0 : i32
    %c0_i32_0 = arith.constant 0 : i32
    %c0_i32_1 = arith.constant 0 : i32
    return %c0_i32, %c0_i32_0 : i32, i32
  }
  func.func @transform_3(%arg0: i32, %arg1: memref<2x8xi32, #tpu.memory_space<smem>>) -> (i32, i32) {
    %c0_i32 = arith.constant 0 : i32
    %c0_i32_0 = arith.constant 0 : i32
    %c0_i32_1 = arith.constant 0 : i32
    return %c0_i32, %c0_i32_0 : i32, i32
  }
  func.func @transform_4(%arg0: i32, %arg1: memref<2x8xi32, #tpu.memory_space<smem>>) -> (i32, i32) {
    %c0_i32 = arith.constant 0 : i32
    %c0_i32_0 = arith.constant 0 : i32
    %c0_i32_1 = arith.constant 0 : i32
    return %c0_i32, %c0_i32_0 : i32, i32
  }
  func.func @transform_5(%arg0: i32, %arg1: memref<2x8xi32, #tpu.memory_space<smem>>) -> (i32, i32) {
    %c0_i32 = arith.constant 0 : i32
    %c0_i32_0 = arith.constant 0 : i32
    %c0_i32_1 = arith.constant 0 : i32
    return %c0_i32, %c0_i32_0 : i32, i32
  }
  func.func @transform_6(%arg0: i32, %arg1: memref<2x8xi32, #tpu.memory_space<smem>>) -> (i32, i32, i32) {
    %c0_i32 = arith.constant 0 : i32
    %c0_i32_0 = arith.constant 0 : i32
    %c0_i32_1 = arith.constant 0 : i32
    %c0_i32_2 = arith.constant 0 : i32
    return %c0_i32, %c0_i32_0, %c0_i32_1 : i32, i32, i32
  }
  func.func @transform_7(%arg0: i32, %arg1: memref<2x8xi32, #tpu.memory_space<smem>>) -> (i32, i32, i32) {
    %c0_i32 = arith.constant 0 : i32
    %c0_i32_0 = arith.constant 0 : i32
    %c0_i32_1 = arith.constant 0 : i32
    %c0_i32_2 = arith.constant 0 : i32
    return %c0_i32, %c0_i32_0, %c0_i32_1 : i32, i32, i32
  }
  func.func @transform_8(%arg0: i32, %arg1: memref<2x8xi32, #tpu.memory_space<smem>>) -> (i32, i32, i32) {
    %c0_i32 = arith.constant 0 : i32
    %c0_i32_0 = arith.constant 0 : i32
    %c0_i32_1 = arith.constant 0 : i32
    %c0_i32_2 = arith.constant 0 : i32
    return %c0_i32, %c0_i32_0, %c0_i32_1 : i32, i32, i32
  }
  func.func @transform_9(%arg0: i32, %arg1: memref<2x8xi32, #tpu.memory_space<smem>>) -> (i32, i32, i32) {
    %c0_i32 = arith.constant 0 : i32
    %c0_i32_0 = arith.constant 0 : i32
    %c0_i32_1 = arith.constant 0 : i32
    %c0_i32_2 = arith.constant 0 : i32
    return %c0_i32, %c0_i32_0, %c0_i32_1 : i32, i32, i32
  }
  func.func @transform_10(%arg0: i32, %arg1: memref<2x8xi32, #tpu.memory_space<smem>>) -> (i32, i32, i32) {
    %c0_i32 = arith.constant 0 : i32
    %c0_i32_0 = arith.constant 0 : i32
    %c0_i32_1 = arith.constant 0 : i32
    %c0_i32_2 = arith.constant 0 : i32
    return %c0_i32, %c0_i32_0, %c0_i32_1 : i32, i32, i32
  }
  func.func @transform_11(%arg0: i32, %arg1: memref<2x8xi32, #tpu.memory_space<smem>>) -> (i32, i32, i32) {
    %c0_i32 = arith.constant 0 : i32
    %c0_i32_0 = arith.constant 0 : i32
    %c0_i32_1 = arith.constant 0 : i32
    %c0_i32_2 = arith.constant 0 : i32
    return %c0_i32, %c0_i32_0, %c0_i32_1 : i32, i32, i32
  }
  func.func @transform_12(%arg0: i32, %arg1: memref<2x8xi32, #tpu.memory_space<smem>>) -> (i32, i32, i32) {
    %c0_i32 = arith.constant 0 : i32
    %c0_i32_0 = arith.constant 0 : i32
    %c0_i32_1 = arith.constant 0 : i32
    %c0_i32_2 = arith.constant 0 : i32
    return %c0_i32, %c0_i32_0, %c0_i32_1 : i32, i32, i32
  }
  func.func @transform_13(%arg0: i32, %arg1: memref<2x8xi32, #tpu.memory_space<smem>>) -> (i32, i32, i32) {
    %c0_i32 = arith.constant 0 : i32
    %c0_i32_0 = arith.constant 0 : i32
    %c0_i32_1 = arith.constant 0 : i32
    %c0_i32_2 = arith.constant 0 : i32
    return %c0_i32, %c0_i32_0, %c0_i32_1 : i32, i32, i32
  }
  func.func @transform_14(%arg0: i32, %arg1: memref<2x8xi32, #tpu.memory_space<smem>>) -> (i32, i32, i32) {
    %c0_i32 = arith.constant 0 : i32
    %c0_i32_0 = arith.constant 0 : i32
    %c0_i32_1 = arith.constant 0 : i32
    %c0_i32_2 = arith.constant 0 : i32
    return %c0_i32, %c0_i32_0, %c0_i32_1 : i32, i32, i32
  }
  func.func @transform_15(%arg0: i32, %arg1: memref<2x8xi32, #tpu.memory_space<smem>>) -> (i32, i32, i32) {
    %c0_i32 = arith.constant 0 : i32
    %c0_i32_0 = arith.constant 0 : i32
    %c0_i32_1 = arith.constant 0 : i32
    %c0_i32_2 = arith.constant 0 : i32
    return %c0_i32, %c0_i32_0, %c0_i32_1 : i32, i32, i32
  }
  func.func @transform_16(%arg0: i32, %arg1: memref<2x8xi32, #tpu.memory_space<smem>>) -> (i32, i32, i32) {
    %c0_i32 = arith.constant 0 : i32
    %c0_i32_0 = arith.constant 0 : i32
    %c0_i32_1 = arith.constant 0 : i32
    %c0_i32_2 = arith.constant 0 : i32
    return %c0_i32, %c0_i32_0, %c0_i32_1 : i32, i32, i32
  }
  func.func @transform_17(%arg0: i32, %arg1: memref<2x8xi32, #tpu.memory_space<smem>>) -> (i32, i32, i32) {
    %c0_i32 = arith.constant 0 : i32
    %c0_i32_0 = arith.constant 0 : i32
    %c0_i32_1 = arith.constant 0 : i32
    %c0_i32_2 = arith.constant 0 : i32
    return %c0_i32, %c0_i32_0, %c0_i32_1 : i32, i32, i32
  }
  func.func @transform_18(%arg0: i32, %arg1: memref<2x8xi32, #tpu.memory_space<smem>>) -> (i32, i32) {
    %c0_i32 = arith.constant 0 : i32
    %c0_i32_0 = arith.constant 0 : i32
    %c0_i32_1 = arith.constant 0 : i32
    return %c0_i32, %c0_i32_0 : i32, i32
  }
  func.func @transform_19(%arg0: i32, %arg1: memref<2x8xi32, #tpu.memory_space<smem>>) -> (i32, i32) {
    %c0_i32 = arith.constant 0 : i32
    %c0_i32_0 = arith.constant 0 : i32
    %c0_i32_1 = arith.constant 0 : i32
    return %c0_i32, %c0_i32_0 : i32, i32
  }
  func.func @transform_20(%arg0: i32, %arg1: memref<2x8xi32, #tpu.memory_space<smem>>) -> (i32, i32) {
    %c0_i32 = arith.constant 0 : i32
    %c0_i32_0 = arith.constant 0 : i32
    return %arg0, %c0_i32 : i32, i32
  }
}

</mosaic_0001>

<llo_original>
// kernel: bert_for_model_forward.1
$region0: #{bert_for_model_forward.1}
  #allocation0 [shape = 'u32[]', space=smem, size = 0x4, offset = 0x4, fixed_abs, tag = 'smem constant byte address 0x4 - core index']
  #allocation1 [shape = 'u32[144,128]{1,0:T(1,128)}', space=vmem, size = 0x12000, scoped, tag = 'internal scratch']
  #allocation2 [shape = 's32[1]{0}', space=sflag, size = 0x4, scoped, tag = 'scoped memory for bert_for_model_forward.1']
  #allocation3 [shape = 'u8[1024]{0}', space=smem, size = 0x400, scoped, tag = 'prefetched SMEM operand 0']
  %s0 = inlined_call_operand.vmem [shape: s32[2,8], index: 0, kind: input, shape index: {}]
  %s1 = inlined_call_operand.vmem [shape: f32[32,16], index: 1, kind: input, shape index: {}]
  %s2 = inlined_call_operand.vmem [shape: f32[8,8], index: 2, kind: input, shape index: {}]
  %s3 = inlined_call_operand.vmem [shape: f32[64,32], index: 3, kind: input, shape index: {}]
  %s4 = inlined_call_operand.vmem [shape: f32[8,32], index: 4, kind: input, shape index: {}]
  %s5 = inlined_call_operand.vmem [shape: f32[1,32], index: 5, kind: input, shape index: {}]
  %s6 = inlined_call_operand.vmem [shape: f32[1,32], index: 6, kind: input, shape index: {}]
  %s7 = inlined_call_operand.vmem [shape: f32[2,32,96], index: 7, kind: input, shape index: {}]
  %s8 = inlined_call_operand.vmem [shape: f32[2,1,96], index: 8, kind: input, shape index: {}]
  %s9 = inlined_call_operand.vmem [shape: f32[2,32,32], index: 9, kind: input, shape index: {}]
  %s10 = inlined_call_operand.vmem [shape: f32[2,1,32], index: 10, kind: input, shape index: {}]
  %s11 = inlined_call_operand.vmem [shape: f32[2,1,32], index: 11, kind: input, shape index: {}]
  %s12 = inlined_call_operand.vmem [shape: f32[2,1,32], index: 12, kind: input, shape index: {}]
  %s13 = inlined_call_operand.vmem [shape: f32[2,32,64], index: 13, kind: input, shape index: {}]
  %s14 = inlined_call_operand.vmem [shape: f32[2,1,64], index: 14, kind: input, shape index: {}]
  %s15 = inlined_call_operand.vmem [shape: f32[2,64,32], index: 15, kind: input, shape index: {}]
  %s16 = inlined_call_operand.vmem [shape: f32[2,1,32], index: 16, kind: input, shape index: {}]
  %s17 = inlined_call_operand.vmem [shape: f32[2,1,32], index: 17, kind: input, shape index: {}]
  %s18 = inlined_call_operand.vmem [shape: f32[2,1,32], index: 18, kind: input, shape index: {}]
  %s19 = inlined_call_operand.vmem [shape: f32[32,256], index: 19, kind: input, shape index: {}]
  %s20 = inlined_call_operand.vmem [shape: f32[1,256], index: 20, kind: input, shape index: {}]
  %s21 = inlined_call_operand.vmem [shape: f32[16,256], index: 21, kind: output, shape index: {}]
  %s22 = sld [smem:[#allocation0]]
  $region113: #{bert_for_model_forward.1} parent=0
    _
  %s24 = ssub.s32 1, %s22
  %s25 = scalar_select 0, %s24, %s22
  %s26 = sshll.u32 %s0, 4
  %s27 = int_to_ptr.vmem [resolvable:$true] %s26
  %29 = dma.vmem_to_smem %s27, 32, [#allocation3], [#allocation2]
  %30 = dma.done [#allocation2], 32
  %31 = sfence
  loop: start=0, step=1, limit=4
  $region2: #{bert_for_model_forward.1} parent=0 // loop_pre_header
    _
  $region3: #{bert_for_model_forward.1} parent=0 // loop_header
    %s33 = sphi 0, %s37
    %p34 = scmp.ge.s32.totalorder %s33, 4
    %s43 = sphi 0, %s45
    %s46 = sphi 0, %s43
    %s47 = sphi 0, %s46
    %s63 = sphi 0, %s47
    %s67 = sphi 0, %s67
    %s69 = sphi 0, %s67
    %s70 = sphi 0, %s69
    %s84 = sphi 0, %s70
    %s88 = sphi 0, %s88
    %s90 = sphi 0, %s88
    %s91 = sphi 0, %s90
    %s105 = sphi 0, %s91
    %s109 = sphi 0, %s109
    %s111 = sphi 0, %s109
    %s112 = sphi 0, %s111
    %s126 = sphi 0, %s112
    %s130 = sphi 0, %s130
    %s132 = sphi 0, %s130
    %s133 = sphi 0, %s132
    %s147 = sphi 0, %s133
    %s151 = sphi 0, %s151
    %s153 = sphi 0, %s151
    %s154 = sphi 0, %s153
    %s168 = sphi 0, %s154
    %s172 = sphi 0, %s172
    %s174 = sphi 0, %s172
    %s175 = sphi 0, %s174
    %s189 = sphi 0, %s175
    %s193 = sphi 0, %s193
    %s195 = sphi 0, %s193
    %s196 = sphi 0, %s195
    %s210 = sphi 0, %s196
    %s214 = sphi 0, %s214
    %s216 = sphi 0, %s214
    %s217 = sphi 0, %s216
    %s231 = sphi 0, %s217
    %s235 = sphi 0, %s235
    %s237 = sphi 0, %s235
    %s238 = sphi 0, %s237
    %s252 = sphi 0, %s238
    %s256 = sphi 0, %s256
    %s258 = sphi 0, %s256
    %s259 = sphi 0, %s258
    %s273 = sphi 0, %s259
    %s277 = sphi 0, %s277
    %s279 = sphi 0, %s277
    %s280 = sphi 0, %s279
    %s294 = sphi 0, %s280
    %s298 = sphi 0, %s298
    %s300 = sphi 0, %s298
    %s301 = sphi 0, %s300
    %s315 = sphi 0, %s301
    %s319 = sphi 0, %s319
    %s321 = sphi 0, %s319
    %s322 = sphi 0, %s321
    %s336 = sphi 0, %s322
    %s340 = sphi 0, %s340
    %s342 = sphi 0, %s340
    %s343 = sphi 0, %s342
    %s357 = sphi 0, %s343
    %s361 = sphi 0, %s361
    %s363 = sphi 0, %s361
    %s364 = sphi 0, %s363
    %s378 = sphi 0, %s364
    %s382 = sphi 0, %s382
    %s384 = sphi 0, %s382
    %s385 = sphi 0, %s384
    %s399 = sphi 0, %s385
    %s403 = sphi 0, %s403
    %s405 = sphi 0, %s403
    %s406 = sphi 0, %s405
    %s420 = sphi 0, %s406
    %s424 = sphi 0, %s424
    %s426 = sphi 0, %s424
    %s427 = sphi 0, %s426
    %s441 = sphi 0, %s427
    %s445 = sphi 0, %s445
    %s447 = sphi 0, %s445
    %s448 = sphi 0, %s447
    %s462 = sphi 0, %s448
    %s468 = sphi 0, %s470
    %s471 = sphi 0, %s468
    %s472 = sphi 0, %s471
    %s488 = sphi 0, %s472
  $region4: #{bert_for_model_forward.1} parent=0 // loop_header_branch
    %36 = sbr.rel (%p34) target = $region8
  $region5: #{bert_for_model_forward.1} parent=0 // loop_body
    %s38 = ssub.s32 %s33, 1
    %s39 = ssub.s32 %s33, 2
    %s40 = sadd.s32 %s33, 1
    %s41 = ssub.s32 %s33, %s40
    %p42 = scmp.eq.s32.totalorder %s41, 0
    %s44 = sadd.s32 %s43, 1
    %s45 = scalar_select %p42, %s43, %s44
    %p48 = pneg %p42
    %p49 = scmp.eq.s32.totalorder %s33, 1
    %p50 = por %p48, %p49
    %p51 = scmp.ne.s32.totalorder %s43, %s46
    %p52 = scmp.eq.s32.totalorder %s33, 0
    %p53 = por %p51, %p52
    %p54 = scmp.ne.s32.totalorder %s43, %s46
    %p55 = scmp.eq.s32.totalorder %s38, 1
    %p56 = por %p54, %p55
    %p57 = scmp.ne.s32.totalorder %s46, %s47
    %p58 = scmp.eq.s32.totalorder %s38, 0
    %p59 = por %p57, %p58
    %p60 = scmp.ne.s32.totalorder %s46, %s47
    %p61 = scmp.eq.s32.totalorder %s39, 1
    %p62 = por %p60, %p61
    %p64 = scmp.ne.s32.totalorder %s47, %s63
    %p65 = scmp.eq.s32.totalorder %s39, 0
    %p66 = por %p64, %p65
    %s68 = sadd.s32 %s67, 1
    %p71 = scmp.eq.s32.totalorder %s33, 1
    %p72 = scmp.ne.s32.totalorder %s67, %s69
    %p73 = scmp.eq.s32.totalorder %s33, 0
    %p74 = por %p72, %p73
    %p75 = scmp.ne.s32.totalorder %s67, %s69
    %p76 = scmp.eq.s32.totalorder %s38, 1
    %p77 = por %p75, %p76
    %p78 = scmp.ne.s32.totalorder %s69, %s70
    %p79 = scmp.eq.s32.totalorder %s38, 0
    %p80 = por %p78, %p79
    %p81 = scmp.ne.s32.totalorder %s69, %s70
    %p82 = scmp.eq.s32.totalorder %s39, 1
    %p83 = por %p81, %p82
    %p85 = scmp.ne.s32.totalorder %s70, %s84
    %p86 = scmp.eq.s32.totalorder %s39, 0
    %p87 = por %p85, %p86
    %s89 = sadd.s32 %s88, 1
    %p92 = scmp.eq.s32.totalorder %s33, 1
    %p93 = scmp.ne.s32.totalorder %s88, %s90
    %p94 = scmp.eq.s32.totalorder %s33, 0
    %p95 = por %p93, %p94
    %p96 = scmp.ne.s32.totalorder %s88, %s90
    %p97 = scmp.eq.s32.totalorder %s38, 1
    %p98 = por %p96, %p97
    %p99 = scmp.ne.s32.totalorder %s90, %s91
    %p100 = scmp.eq.s32.totalorder %s38, 0
    %p101 = por %p99, %p100
    %p102 = scmp.ne.s32.totalorder %s90, %s91
    %p103 = scmp.eq.s32.totalorder %s39, 1
    %p104 = por %p102, %p103
    %p106 = scmp.ne.s32.totalorder %s91, %s105
    %p107 = scmp.eq.s32.totalorder %s39, 0
    %p108 = por %p106, %p107
    %s110 = sadd.s32 %s109, 1
    %p113 = scmp.eq.s32.totalorder %s33, 1
    %p114 = scmp.ne.s32.totalorder %s109, %s111
    %p115 = scmp.eq.s32.totalorder %s33, 0
    %p116 = por %p114, %p115
    %p117 = scmp.ne.s32.totalorder %s109, %s111
    %p118 = scmp.eq.s32.totalorder %s38, 1
    %p119 = por %p117, %p118
    %p120 = scmp.ne.s32.totalorder %s111, %s112
    %p121 = scmp.eq.s32.totalorder %s38, 0
    %p122 = por %p120, %p121
    %p123 = scmp.ne.s32.totalorder %s111, %s112
    %p124 = scmp.eq.s32.totalorder %s39, 1
    %p125 = por %p123, %p124
    %p127 = scmp.ne.s32.totalorder %s112, %s126
    %p128 = scmp.eq.s32.totalorder %s39, 0
    %p129 = por %p127, %p128
    %s131 = sadd.s32 %s130, 1
    %p134 = scmp.eq.s32.totalorder %s33, 1
    %p135 = scmp.ne.s32.totalorder %s130, %s132
    %p136 = scmp.eq.s32.totalorder %s33, 0
    %p137 = por %p135, %p136
    %p138 = scmp.ne.s32.totalorder %s130, %s132
    %p139 = scmp.eq.s32.totalorder %s38, 1
    %p140 = por %p138, %p139
    %p141 = scmp.ne.s32.totalorder %s132, %s133
    %p142 = scmp.eq.s32.totalorder %s38, 0
    %p143 = por %p141, %p142
    %p144 = scmp.ne.s32.totalorder %s132, %s133
    %p145 = scmp.eq.s32.totalorder %s39, 1
    %p146 = por %p144, %p145
    %p148 = scmp.ne.s32.totalorder %s133, %s147
    %p149 = scmp.eq.s32.totalorder %s39, 0
    %p150 = por %p148, %p149
    %s152 = sadd.s32 %s151, 1
    %p155 = scmp.eq.s32.totalorder %s33, 1
    %p156 = scmp.ne.s32.totalorder %s151, %s153
    %p157 = scmp.eq.s32.totalorder %s33, 0
    %p158 = por %p156, %p157
    %p159 = scmp.ne.s32.totalorder %s151, %s153
    %p160 = scmp.eq.s32.totalorder %s38, 1
    %p161 = por %p159, %p160
    %p162 = scmp.ne.s32.totalorder %s153, %s154
    %p163 = scmp.eq.s32.totalorder %s38, 0
    %p164 = por %p162, %p163
    %p165 = scmp.ne.s32.totalorder %s153, %s154
    %p166 = scmp.eq.s32.totalorder %s39, 1
    %p167 = por %p165, %p166
    %p169 = scmp.ne.s32.totalorder %s154, %s168
    %p170 = scmp.eq.s32.totalorder %s39, 0
    %p171 = por %p169, %p170
    %s173 = sadd.s32 %s172, 1
    %p176 = scmp.eq.s32.totalorder %s33, 1
    %p177 = scmp.ne.s32.totalorder %s172, %s174
    %p178 = scmp.eq.s32.totalorder %s33, 0
    %p179 = por %p177, %p178
    %p180 = scmp.ne.s32.totalorder %s172, %s174
    %p181 = scmp.eq.s32.totalorder %s38, 1
    %p182 = por %p180, %p181
    %p183 = scmp.ne.s32.totalorder %s174, %s175
    %p184 = scmp.eq.s32.totalorder %s38, 0
    %p185 = por %p183, %p184
    %p186 = scmp.ne.s32.totalorder %s174, %s175
    %p187 = scmp.eq.s32.totalorder %s39, 1
    %p188 = por %p186, %p187
    %p190 = scmp.ne.s32.totalorder %s175, %s189
    %p191 = scmp.eq.s32.totalorder %s39, 0
    %p192 = por %p190, %p191
    %s194 = sadd.s32 %s193, 1
    %p197 = scmp.eq.s32.totalorder %s33, 1
    %p198 = scmp.ne.s32.totalorder %s193, %s195
    %p199 = scmp.eq.s32.totalorder %s33, 0
    %p200 = por %p198, %p199
    %p201 = scmp.ne.s32.totalorder %s193, %s195
    %p202 = scmp.eq.s32.totalorder %s38, 1
    %p203 = por %p201, %p202
    %p204 = scmp.ne.s32.totalorder %s195, %s196
    %p205 = scmp.eq.s32.totalorder %s38, 0
    %p206 = por %p204, %p205
    %p207 = scmp.ne.s32.totalorder %s195, %s196
    %p208 = scmp.eq.s32.totalorder %s39, 1
    %p209 = por %p207, %p208
    %p211 = scmp.ne.s32.totalorder %s196, %s210
    %p212 = scmp.eq.s32.totalorder %s39, 0
    %p213 = por %p211, %p212
    %s215 = sadd.s32 %s214, 1
    %p218 = scmp.eq.s32.totalorder %s33, 1
    %p219 = scmp.ne.s32.totalorder %s214, %s216
    %p220 = scmp.eq.s32.totalorder %s33, 0
    %p221 = por %p219, %p220
    %p222 = scmp.ne.s32.totalorder %s214, %s216
    %p223 = scmp.eq.s32.totalorder %s38, 1
    %p224 = por %p222, %p223
    %p225 = scmp.ne.s32.totalorder %s216, %s217
    %p226 = scmp.eq.s32.totalorder %s38, 0
    %p227 = por %p225, %p226
    %p228 = scmp.ne.s32.totalorder %s216, %s217
    %p229 = scmp.eq.s32.totalorder %s39, 1
    %p230 = por %p228, %p229
    %p232 = scmp.ne.s32.totalorder %s217, %s231
    %p233 = scmp.eq.s32.totalorder %s39, 0
    %p234 = por %p232, %p233
    %s236 = sadd.s32 %s235, 1
    %p239 = scmp.eq.s32.totalorder %s33, 1
    %p240 = scmp.ne.s32.totalorder %s235, %s237
    %p241 = scmp.eq.s32.totalorder %s33, 0
    %p242 = por %p240, %p241
    %p243 = scmp.ne.s32.totalorder %s235, %s237
    %p244 = scmp.eq.s32.totalorder %s38, 1
    %p245 = por %p243, %p244
    %p246 = scmp.ne.s32.totalorder %s237, %s238
    %p247 = scmp.eq.s32.totalorder %s38, 0
    %p248 = por %p246, %p247
    %p249 = scmp.ne.s32.totalorder %s237, %s238
    %p250 = scmp.eq.s32.totalorder %s39, 1
    %p251 = por %p249, %p250
    %p253 = scmp.ne.s32.totalorder %s238, %s252
    %p254 = scmp.eq.s32.totalorder %s39, 0
    %p255 = por %p253, %p254
    %s257 = sadd.s32 %s256, 1
    %p260 = scmp.eq.s32.totalorder %s33, 1
    %p261 = scmp.ne.s32.totalorder %s256, %s258
    %p262 = scmp.eq.s32.totalorder %s33, 0
    %p263 = por %p261, %p262
    %p264 = scmp.ne.s32.totalorder %s256, %s258
    %p265 = scmp.eq.s32.totalorder %s38, 1
    %p266 = por %p264, %p265
    %p267 = scmp.ne.s32.totalorder %s258, %s259
    %p268 = scmp.eq.s32.totalorder %s38, 0
    %p269 = por %p267, %p268
    %p270 = scmp.ne.s32.totalorder %s258, %s259
    %p271 = scmp.eq.s32.totalorder %s39, 1
    %p272 = por %p270, %p271
    %p274 = scmp.ne.s32.totalorder %s259, %s273
    %p275 = scmp.eq.s32.totalorder %s39, 0
    %p276 = por %p274, %p275
    %s278 = sadd.s32 %s277, 1
    %p281 = scmp.eq.s32.totalorder %s33, 1
    %p282 = scmp.ne.s32.totalorder %s277, %s279
    %p283 = scmp.eq.s32.totalorder %s33, 0
    %p284 = por %p282, %p283
    %p285 = scmp.ne.s32.totalorder %s277, %s279
    %p286 = scmp.eq.s32.totalorder %s38, 1
    %p287 = por %p285, %p286
    %p288 = scmp.ne.s32.totalorder %s279, %s280
    %p289 = scmp.eq.s32.totalorder %s38, 0
    %p290 = por %p288, %p289
    %p291 = scmp.ne.s32.totalorder %s279, %s280
    %p292 = scmp.eq.s32.totalorder %s39, 1
    %p293 = por %p291, %p292
    %p295 = scmp.ne.s32.totalorder %s280, %s294
    %p296 = scmp.eq.s32.totalorder %s39, 0
    %p297 = por %p295, %p296
    %s299 = sadd.s32 %s298, 1
    %p302 = scmp.eq.s32.totalorder %s33, 1
    %p303 = scmp.ne.s32.totalorder %s298, %s300
    %p304 = scmp.eq.s32.totalorder %s33, 0
    %p305 = por %p303, %p304
    %p306 = scmp.ne.s32.totalorder %s298, %s300
    %p307 = scmp.eq.s32.totalorder %s38, 1
    %p308 = por %p306, %p307
    %p309 = scmp.ne.s32.totalorder %s300, %s301
    %p310 = scmp.eq.s32.totalorder %s38, 0
    %p311 = por %p309, %p310
    %p312 = scmp.ne.s32.totalorder %s300, %s301
    %p313 = scmp.eq.s32.totalorder %s39, 1
    %p314 = por %p312, %p313
    %p316 = scmp.ne.s32.totalorder %s301, %s315
    %p317 = scmp.eq.s32.totalorder %s39, 0
    %p318 = por %p316, %p317
    %s320 = sadd.s32 %s319, 1
    %p323 = scmp.eq.s32.totalorder %s33, 1
    %p324 = scmp.ne.s32.totalorder %s319, %s321
    %p325 = scmp.eq.s32.totalorder %s33, 0
    %p326 = por %p324, %p325
    %p327 = scmp.ne.s32.totalorder %s319, %s321
    %p328 = scmp.eq.s32.totalorder %s38, 1
    %p329 = por %p327, %p328
    %p330 = scmp.ne.s32.totalorder %s321, %s322
    %p331 = scmp.eq.s32.totalorder %s38, 0
    %p332 = por %p330, %p331
    %p333 = scmp.ne.s32.totalorder %s321, %s322
    %p334 = scmp.eq.s32.totalorder %s39, 1
    %p335 = por %p333, %p334
    %p337 = scmp.ne.s32.totalorder %s322, %s336
    %p338 = scmp.eq.s32.totalorder %s39, 0
    %p339 = por %p337, %p338
    %s341 = sadd.s32 %s340, 1
    %p344 = scmp.eq.s32.totalorder %s33, 1
    %p345 = scmp.ne.s32.totalorder %s340, %s342
    %p346 = scmp.eq.s32.totalorder %s33, 0
    %p347 = por %p345, %p346
    %p348 = scmp.ne.s32.totalorder %s340, %s342
    %p349 = scmp.eq.s32.totalorder %s38, 1
    %p350 = por %p348, %p349
    %p351 = scmp.ne.s32.totalorder %s342, %s343
    %p352 = scmp.eq.s32.totalorder %s38, 0
    %p353 = por %p351, %p352
    %p354 = scmp.ne.s32.totalorder %s342, %s343
    %p355 = scmp.eq.s32.totalorder %s39, 1
    %p356 = por %p354, %p355
    %p358 = scmp.ne.s32.totalorder %s343, %s357
    %p359 = scmp.eq.s32.totalorder %s39, 0
    %p360 = por %p358, %p359
    %s362 = sadd.s32 %s361, 1
    %p365 = scmp.eq.s32.totalorder %s33, 1
    %p366 = scmp.ne.s32.totalorder %s361, %s363
    %p367 = scmp.eq.s32.totalorder %s33, 0
    %p368 = por %p366, %p367
    %p369 = scmp.ne.s32.totalorder %s361, %s363
    %p370 = scmp.eq.s32.totalorder %s38, 1
    %p371 = por %p369, %p370
    %p372 = scmp.ne.s32.totalorder %s363, %s364
    %p373 = scmp.eq.s32.totalorder %s38, 0
    %p374 = por %p372, %p373
    %p375 = scmp.ne.s32.totalorder %s363, %s364
    %p376 = scmp.eq.s32.totalorder %s39, 1
    %p377 = por %p375, %p376
    %p379 = scmp.ne.s32.totalorder %s364, %s378
    %p380 = scmp.eq.s32.totalorder %s39, 0
    %p381 = por %p379, %p380
    %s383 = sadd.s32 %s382, 1
    %p386 = scmp.eq.s32.totalorder %s33, 1
    %p387 = scmp.ne.s32.totalorder %s382, %s384
    %p388 = scmp.eq.s32.totalorder %s33, 0
    %p389 = por %p387, %p388
    %p390 = scmp.ne.s32.totalorder %s382, %s384
    %p391 = scmp.eq.s32.totalorder %s38, 1
    %p392 = por %p390, %p391
    %p393 = scmp.ne.s32.totalorder %s384, %s385
    %p394 = scmp.eq.s32.totalorder %s38, 0
    %p395 = por %p393, %p394
    %p396 = scmp.ne.s32.totalorder %s384, %s385
    %p397 = scmp.eq.s32.totalorder %s39, 1
    %p398 = por %p396, %p397
    %p400 = scmp.ne.s32.totalorder %s385, %s399
    %p401 = scmp.eq.s32.totalorder %s39, 0
    %p402 = por %p400, %p401
    %s404 = sadd.s32 %s403, 1
    %p407 = scmp.eq.s32.totalorder %s33, 1
    %p408 = scmp.ne.s32.totalorder %s403, %s405
    %p409 = scmp.eq.s32.totalorder %s33, 0
    %p410 = por %p408, %p409
    %p411 = scmp.ne.s32.totalorder %s403, %s405
    %p412 = scmp.eq.s32.totalorder %s38, 1
    %p413 = por %p411, %p412
    %p414 = scmp.ne.s32.totalorder %s405, %s406
    %p415 = scmp.eq.s32.totalorder %s38, 0
    %p416 = por %p414, %p415
    %p417 = scmp.ne.s32.totalorder %s405, %s406
    %p418 = scmp.eq.s32.totalorder %s39, 1
    %p419 = por %p417, %p418
    %p421 = scmp.ne.s32.totalorder %s406, %s420
    %p422 = scmp.eq.s32.totalorder %s39, 0
    %p423 = por %p421, %p422
    %s425 = sadd.s32 %s424, 1
    %p428 = scmp.eq.s32.totalorder %s33, 1
    %p429 = scmp.ne.s32.totalorder %s424, %s426
    %p430 = scmp.eq.s32.totalorder %s33, 0
    %p431 = por %p429, %p430
    %p432 = scmp.ne.s32.totalorder %s424, %s426
    %p433 = scmp.eq.s32.totalorder %s38, 1
    %p434 = por %p432, %p433
    %p435 = scmp.ne.s32.totalorder %s426, %s427
    %p436 = scmp.eq.s32.totalorder %s38, 0
    %p437 = por %p435, %p436
    %p438 = scmp.ne.s32.totalorder %s426, %s427
    %p439 = scmp.eq.s32.totalorder %s39, 1
    %p440 = por %p438, %p439
    %p442 = scmp.ne.s32.totalorder %s427, %s441
    %p443 = scmp.eq.s32.totalorder %s39, 0
    %p444 = por %p442, %p443
    %s446 = sadd.s32 %s445, 1
    %p449 = scmp.eq.s32.totalorder %s33, 1
    %p450 = scmp.ne.s32.totalorder %s445, %s447
    %p451 = scmp.eq.s32.totalorder %s33, 0
    %p452 = por %p450, %p451
    %p453 = scmp.ne.s32.totalorder %s445, %s447
    %p454 = scmp.eq.s32.totalorder %s38, 1
    %p455 = por %p453, %p454
    %p456 = scmp.ne.s32.totalorder %s447, %s448
    %p457 = scmp.eq.s32.totalorder %s38, 0
    %p458 = por %p456, %p457
    %p459 = scmp.ne.s32.totalorder %s447, %s448
    %p460 = scmp.eq.s32.totalorder %s39, 1
    %p461 = por %p459, %p460
    %p463 = scmp.ne.s32.totalorder %s448, %s462
    %p464 = scmp.eq.s32.totalorder %s39, 0
    %p465 = por %p463, %p464
    %s466 = ssub.s32 %s33, %s40
    %p467 = scmp.eq.s32.totalorder %s466, 0
    %s469 = sadd.s32 %s468, 1
    %s470 = scalar_select %p467, %s468, %s469
    %p473 = pneg %p467
    %p474 = scmp.eq.s32.totalorder %s33, 1
    %p475 = por %p473, %p474
    %p476 = scmp.ne.s32.totalorder %s468, %s471
    %p477 = scmp.eq.s32.totalorder %s33, 0
    %p478 = por %p476, %p477
    %p479 = scmp.ne.s32.totalorder %s468, %s471
    %p480 = scmp.eq.s32.totalorder %s38, 1
    %p481 = por %p479, %p480
    %p482 = scmp.ne.s32.totalorder %s471, %s472
    %p483 = scmp.eq.s32.totalorder %s38, 0
    %p484 = por %p482, %p483
    %p485 = scmp.ne.s32.totalorder %s471, %s472
    %p486 = scmp.eq.s32.totalorder %s39, 1
    %p487 = por %p485, %p486
    %p489 = scmp.ne.s32.totalorder %s472, %s488
    %p490 = scmp.eq.s32.totalorder %s39, 0
    %p491 = por %p489, %p490
    %p492 = scmp.le.s32.totalorder 1, %s33
    %p493 = scmp.lt.s32.totalorder %s33, 3
    %p494 = pnand %p492, %p493
    %p495 = pneg %p494
    // Predicated region
    $region9: #{bert_for_model_forward.1} parent=5 // pred_check
      _
    $region10: #{bert_for_model_forward.1} parent=5 // pred_check_branch
      %497 = sbr.rel (%p494) target = $region12
    $region11: #{bert_for_model_forward.1} parent=5 // pred_region
      %s498 = ssub.s32 %s33, 1
      // Predicated region
      $region13: #{bert_for_model_forward.1} parent=11 // pred_check
        %p499 = pneg %p80
      $region14: #{bert_for_model_forward.1} parent=11 // pred_check_branch
        %501 = sbr.rel (%p499) target = $region16
      $region15: #{bert_for_model_forward.1} parent=11 // pred_region
        _
      $region16: #{bert_for_model_forward.1} parent=11 // pred_fallthru
        _
      // Predicated region
      $region17: #{bert_for_model_forward.1} parent=11 // pred_check
        %p502 = pneg %p101
      $region18: #{bert_for_model_forward.1} parent=11 // pred_check_branch
        %504 = sbr.rel (%p502) target = $region20
      $region19: #{bert_for_model_forward.1} parent=11 // pred_region
        _
      $region20: #{bert_for_model_forward.1} parent=11 // pred_fallthru
        _
      // Predicated region
      $region21: #{bert_for_model_forward.1} parent=11 // pred_check
        %p505 = pneg %p122
      $region22: #{bert_for_model_forward.1} parent=11 // pred_check_branch
        %507 = sbr.rel (%p505) target = $region24
      $region23: #{bert_for_model_forward.1} parent=11 // pred_region
        _
      $region24: #{bert_for_model_forward.1} parent=11 // pred_fallthru
        _
      // Predicated region
      $region25: #{bert_for_model_forward.1} parent=11 // pred_check
        %p508 = pneg %p143
      $region26: #{bert_for_model_forward.1} parent=11 // pred_check_branch
        %510 = sbr.rel (%p508) target = $region28
      $region27: #{bert_for_model_forward.1} parent=11 // pred_region
        _
      $region28: #{bert_for_model_forward.1} parent=11 // pred_fallthru
        _
      // Predicated region
      $region29: #{bert_for_model_forward.1} parent=11 // pred_check
        %p511 = pneg %p164
      $region30: #{bert_for_model_forward.1} parent=11 // pred_check_branch
        %513 = sbr.rel (%p511) target = $region32
      $region31: #{bert_for_model_forward.1} parent=11 // pred_region
        _
      $region32: #{bert_for_model_forward.1} parent=11 // pred_fallthru
        _
      // Predicated region
      $region33: #{bert_for_model_forward.1} parent=11 // pred_check
        %p514 = pneg %p185
      $region34: #{bert_for_model_forward.1} parent=11 // pred_check_branch
        %516 = sbr.rel (%p514) target = $region36
      $region35: #{bert_for_model_forward.1} parent=11 // pred_region
        _
      $region36: #{bert_for_model_forward.1} parent=11 // pred_fallthru
        _
      // Predicated region
      $region37: #{bert_for_model_forward.1} parent=11 // pred_check
        %p517 = pneg %p206
      $region38: #{bert_for_model_forward.1} parent=11 // pred_check_branch
        %519 = sbr.rel (%p517) target = $region40
      $region39: #{bert_for_model_forward.1} parent=11 // pred_region
        _
      $region40: #{bert_for_model_forward.1} parent=11 // pred_fallthru
        _
      // Predicated region
      $region41: #{bert_for_model_forward.1} parent=11 // pred_check
        %p520 = pneg %p227
      $region42: #{bert_for_model_forward.1} parent=11 // pred_check_branch
        %522 = sbr.rel (%p520) target = $region44
      $region43: #{bert_for_model_forward.1} parent=11 // pred_region
        _
      $region44: #{bert_for_model_forward.1} parent=11 // pred_fallthru
        _
      // Predicated region
      $region45: #{bert_for_model_forward.1} parent=11 // pred_check
        %p523 = pneg %p248
      $region46: #{bert_for_model_forward.1} parent=11 // pred_check_branch
        %525 = sbr.rel (%p523) target = $region48
      $region47: #{bert_for_model_forward.1} parent=11 // pred_region
        _
      $region48: #{bert_for_model_forward.1} parent=11 // pred_fallthru
        _
      // Predicated region
      $region49: #{bert_for_model_forward.1} parent=11 // pred_check
        %p526 = pneg %p269
      $region50: #{bert_for_model_forward.1} parent=11 // pred_check_branch
        %528 = sbr.rel (%p526) target = $region52
      $region51: #{bert_for_model_forward.1} parent=11 // pred_region
        _
      $region52: #{bert_for_model_forward.1} parent=11 // pred_fallthru
        _
      // Predicated region
      $region53: #{bert_for_model_forward.1} parent=11 // pred_check
        %p529 = pneg %p290
      $region54: #{bert_for_model_forward.1} parent=11 // pred_check_branch
        %531 = sbr.rel (%p529) target = $region56
      $region55: #{bert_for_model_forward.1} parent=11 // pred_region
        _
      $region56: #{bert_for_model_forward.1} parent=11 // pred_fallthru
        _
      // Predicated region
      $region57: #{bert_for_model_forward.1} parent=11 // pred_check
        %p532 = pneg %p311
      $region58: #{bert_for_model_forward.1} parent=11 // pred_check_branch
        %534 = sbr.rel (%p532) target = $region60
      $region59: #{bert_for_model_forward.1} parent=11 // pred_region
        _
      $region60: #{bert_for_model_forward.1} parent=11 // pred_fallthru
        _
      // Predicated region
      $region61: #{bert_for_model_forward.1} parent=11 // pred_check
        %p535 = pneg %p332
      $region62: #{bert_for_model_forward.1} parent=11 // pred_check_branch
        %537 = sbr.rel (%p535) target = $region64
      $region63: #{bert_for_model_forward.1} parent=11 // pred_region
        _
      $region64: #{bert_for_model_forward.1} parent=11 // pred_fallthru
        _
      // Predicated region
      $region65: #{bert_for_model_forward.1} parent=11 // pred_check
        %p538 = pneg %p353
      $region66: #{bert_for_model_forward.1} parent=11 // pred_check_branch
        %540 = sbr.rel (%p538) target = $region68
      $region67: #{bert_for_model_forward.1} parent=11 // pred_region
        _
      $region68: #{bert_for_model_forward.1} parent=11 // pred_fallthru
        _
      // Predicated region
      $region69: #{bert_for_model_forward.1} parent=11 // pred_check
        %p541 = pneg %p374
      $region70: #{bert_for_model_forward.1} parent=11 // pred_check_branch
        %543 = sbr.rel (%p541) target = $region72
      $region71: #{bert_for_model_forward.1} parent=11 // pred_region
        _
      $region72: #{bert_for_model_forward.1} parent=11 // pred_fallthru
        _
      // Predicated region
      $region73: #{bert_for_model_forward.1} parent=11 // pred_check
        %p544 = pneg %p395
      $region74: #{bert_for_model_forward.1} parent=11 // pred_check_branch
        %546 = sbr.rel (%p544) target = $region76
      $region75: #{bert_for_model_forward.1} parent=11 // pred_region
        _
      $region76: #{bert_for_model_forward.1} parent=11 // pred_fallthru
        _
      // Predicated region
      $region77: #{bert_for_model_forward.1} parent=11 // pred_check
        %p547 = pneg %p416
      $region78: #{bert_for_model_forward.1} parent=11 // pred_check_branch
        %549 = sbr.rel (%p547) target = $region80
      $region79: #{bert_for_model_forward.1} parent=11 // pred_region
        _
      $region80: #{bert_for_model_forward.1} parent=11 // pred_fallthru
        _
      // Predicated region
      $region81: #{bert_for_model_forward.1} parent=11 // pred_check
        %p550 = pneg %p437
      $region82: #{bert_for_model_forward.1} parent=11 // pred_check_branch
        %552 = sbr.rel (%p550) target = $region84
      $region83: #{bert_for_model_forward.1} parent=11 // pred_region
        _
      $region84: #{bert_for_model_forward.1} parent=11 // pred_fallthru
        _
      // Predicated region
      $region85: #{bert_for_model_forward.1} parent=11 // pred_check
        %p553 = pneg %p458
      $region86: #{bert_for_model_forward.1} parent=11 // pred_check_branch
        %555 = sbr.rel (%p553) target = $region88
      $region87: #{bert_for_model_forward.1} parent=11 // pred_region
        _
      $region88: #{bert_for_model_forward.1} parent=11 // pred_fallthru
        _
    $region12: #{bert_for_model_forward.1} parent=5 // pred_fallthru
      _
    %p556 = scmp.lt.s32.totalorder %s33, 2
    // Predicated region
    $region89: #{bert_for_model_forward.1} parent=5 // pred_check
      %p557 = pneg %p556
    $region90: #{bert_for_model_forward.1} parent=5 // pred_check_branch
      %559 = sbr.rel (%p557) target = $region92
    $region91: #{bert_for_model_forward.1} parent=5 // pred_region
      // Predicated region
      $region93: #{bert_for_model_forward.1} parent=91 // pred_check
        %p560 = pneg %p53
      $region94: #{bert_for_model_forward.1} parent=91 // pred_check_branch
        %562 = sbr.rel (%p560) target = $region96
      $region95: #{bert_for_model_forward.1} parent=91 // pred_region
        %s563 = smul.u32 2, %s33
        %p564 = scmp.lt.s32.totalorder %s563, 3
        %s565 = scalar_select %p564, %s563, 3
        %s566 = smul.addr %s565, 8
        %s567 = scalar_lea.vmem %s1, %s566
        %s568 = smul.u32 2, %s33
      $region96: #{bert_for_model_forward.1} parent=91 // pred_fallthru
        _
    $region92: #{bert_for_model_forward.1} parent=5 // pred_fallthru
      _
    %p569 = scmp.le.s32.totalorder 1, %s33
    %p570 = scmp.lt.s32.totalorder %s33, 3
    %p571 = pnand %p569, %p570
    %p572 = pneg %p571
    // Predicated region
    $region97: #{bert_for_model_forward.1} parent=5 // pred_check
      _
    $region98: #{bert_for_model_forward.1} parent=5 // pred_check_branch
      %574 = sbr.rel (%p571) target = $region100
    $region99: #{bert_for_model_forward.1} parent=5 // pred_region
      %s575 = ssub.s32 %s33, 1
      %s576 = smul.u32 2, %s38
      %p577 = scmp.lt.s32.totalorder %s576, 3
      %s578 = scalar_select %p577, %s576, 3
      %s579 = smul.addr %s578, 8
      %s580 = scalar_lea.vmem %s1, %s579
      %p581 = pneg %p59
      %p582 = pneg %p56
      %p583 = pneg %p80
      %p584 = pneg %p77
      %p585 = pneg %p101
      %p586 = pneg %p98
      %p587 = pneg %p122
      %p588 = pneg %p119
      %p589 = pneg %p143
      %p590 = pneg %p140
      %p591 = pneg %p164
      %p592 = pneg %p161
      %p593 = pneg %p185
      %p594 = pneg %p182
      %p595 = pneg %p206
      %p596 = pneg %p203
      %p597 = pneg %p227
      %p598 = pneg %p224
      %p599 = pneg %p248
      %p600 = pneg %p245
      %p601 = pneg %p269
      %p602 = pneg %p266
      %p603 = pneg %p290
      %p604 = pneg %p287
      %p605 = pneg %p311
      %p606 = pneg %p308
      %p607 = pneg %p332
      %p608 = pneg %p329
      %p609 = pneg %p353
      %p610 = pneg %p350
      %p611 = pneg %p374
      %p612 = pneg %p371
      %p613 = pneg %p395
      %p614 = pneg %p392
      %p615 = pneg %p416
      %p616 = pneg %p413
      %p617 = pneg %p437
      %p618 = pneg %p434
      %p619 = pneg %p458
      %p620 = pneg %p455
      %p621 = pneg %p484
      %p622 = pneg %p481
      %p623 = scmp.lt.s32.totalorder %s38, 1
      %s624 = scalar_select %p623, %s38, 1
      %s625 = smul.addr %s624, 2
      %s626 = smul.addr %s625, 8
      %s627 = scalar_lea.vmem %s21, %s626
      %s628 = smul.u32 2, %s38
      %p629 = scmp.lt.s32.totalorder %s628, 3
      %s630 = scalar_select %p629, %s628, 3
      %s631 = smul.addr %s630, 8
      %s632 = scalar_lea.vmem %s1, %s631
      %s633 = smul.u32 2, %s38
      %p634 = scmp.lt.s32.totalorder %s38, 1
      %s635 = scalar_select %p634, %s38, 1
      %s636 = smul.addr %s635, 2
      %s637 = smul.addr %s636, 8
      %s638 = scalar_lea.vmem %s21, %s637
      %v639 = vlaneseq
      %v640 = vand.u32 %v639, 127
      %v641 = vlaneseq
      %v642 = vshrl.u32 %v641, 7
      %vm643 = vcmp.eq.s32.totalorder %v642, 0
      %s644 = smul.u32 %s38, 128
      %s645 = sld [smem:[#allocation3 + %s644]]
      %v646 = vstv %s645
      %v647 = vsel %vm643, %v646, 0
      %vm648 = vcmp.eq.s32.totalorder %v642, 1
      %s649 = sadd.s32 %s644, 1
      %s650 = sld [smem:[#allocation3 + %s649]]
      %v651 = vstv %s650
      %v652 = vsel %vm648, %v651, %v647
      %vm653 = vcmp.eq.s32.totalorder %v642, 2
      %s654 = sadd.s32 %s644, 2
      %s655 = sld [smem:[#allocation3 + %s654]]
      %v656 = vstv %s655
      %v657 = vsel %vm653, %v656, %v652
      %vm658 = vcmp.eq.s32.totalorder %v642, 3
      %s659 = sadd.s32 %s644, 3
      %s660 = sld [smem:[#allocation3 + %s659]]
      %v661 = vstv %s660
      %v662 = vsel %vm658, %v661, %v657
      %vm663 = vcmp.eq.s32.totalorder %v642, 4
      %s664 = sadd.s32 %s644, 4
      %s665 = sld [smem:[#allocation3 + %s664]]
      %v666 = vstv %s665
      %v667 = vsel %vm663, %v666, %v662
      %vm668 = vcmp.eq.s32.totalorder %v642, 5
      %s669 = sadd.s32 %s644, 5
      %s670 = sld [smem:[#allocation3 + %s669]]
      %v671 = vstv %s670
      %v672 = vsel %vm668, %v671, %v667
      %vm673 = vcmp.eq.s32.totalorder %v642, 6
      %s674 = sadd.s32 %s644, 6
      %s675 = sld [smem:[#allocation3 + %s674]]
      %v676 = vstv %s675
      %v677 = vsel %vm673, %v676, %v672
      %vm678 = vcmp.eq.s32.totalorder %v642, 7
      %s679 = sadd.s32 %s644, 7
      %s680 = sld [smem:[#allocation3 + %s679]]
      %v681 = vstv %s680
      %v682 = vsel %vm678, %v681, %v677
      %vm683 = vcmp.eq.s32.totalorder %v640, %v682
      %v684 = vsel %vm683, 1, 0
      %v685 = vcvt.s32.f32 %v684
      %v686 = vld [vmem:[%s3] sm:$0xff]
      %v687 = vld [vmem:[%s3 + $0x8] sm:$0xff]
      %v688 = vld [vmem:[%s3 + $0x10] sm:$0xff]
      %v689 = vld [vmem:[%s3 + $0x18] sm:$0xff]
      %v690 = vld [vmem:[%s3 + $0x20] sm:$0xff]
      %v691 = vld [vmem:[%s3 + $0x28] sm:$0xff]
      %v692 = vld [vmem:[%s3 + $0x30] sm:$0xff]
      %v693 = vld [vmem:[%s3 + $0x38] sm:$0xff]
      %v694 = vld [vmem:[%s4] sm:$0xff]
      %vm695 = vcmask 523264
      %v697 = vsel %vm695, %v685, 0
      %699 = vmatprep.subr.mxu0 0.0
      %700 = vmatpush1.msra.mxu0 0.0
      %701 = vmatprep.subr.mxu0 0.0
      %702 = vmatpush1.msra.mxu0 0.0
      %703 = vmatprep.subr.mxu0 0.0
      %704 = vmatpush1.msra.mxu0 0.0
      %705 = vmatprep.subr.mxu0 0.0
      %706 = vmatpush1.msra.mxu0 0.0
      %707 = vmatprep.subr.mxu0 0.0
      %708 = vmatpush1.msra.mxu0 0.0
      %709 = vmatprep.subr.mxu0 0.0
      %710 = vmatpush1.msra.mxu0 0.0
      %711 = vmatprep.subr.mxu0 0.0
      %712 = vmatpush1.msra.mxu0 0.0
      %713 = vmatprep.subr.mxu0 0.0
      %714 = vmatpush1.msra.mxu0 0.0
      %715 = vmatprep.subr.mxu0 0.0
      %716 = vmatpush1.msra.mxu0 %v693
      %717 = vmatprep.subr.mxu0 0.0
      %718 = vmatpush1.msra.mxu0 %v692
      %719 = vmatprep.subr.mxu0 0.0
      %720 = vmatpush1.msra.mxu0 %v691
      %721 = vmatprep.subr.mxu0 0.0
      %722 = vmatpush1.msra.mxu0 %v690
      %723 = vmatprep.subr.mxu0 0.0
      %724 = vmatpush1.msra.mxu0 %v689
      %725 = vmatprep.subr.mxu0 0.0
      %726 = vmatpush1.msra.mxu0 %v688
      %727 = vmatprep.subr.mxu0 0.0
      %728 = vmatpush1.msra.mxu0 %v687
      %729 = vmatprep.subr.mxu0 0.0
      %730 = vmatpush1.msra.mxu0 %v686
      %731 = vmatprep.subr.mxu0 0.0
      %732 = vmatpush2.msra.mxu0 0.0
      %733 = vmatprep.subr.mxu0 0.0
      %734 = vmatpush2.msra.mxu0 0.0
      %735 = vmatprep.subr.mxu0 0.0
      %736 = vmatpush2.msra.mxu0 0.0
      %737 = vmatprep.subr.mxu0 0.0
      %738 = vmatpush2.msra.mxu0 0.0
      %739 = vmatprep.subr.mxu0 0.0
      %740 = vmatpush2.msra.mxu0 0.0
      %741 = vmatprep.subr.mxu0 0.0
      %742 = vmatpush2.msra.mxu0 0.0
      %743 = vmatprep.subr.mxu0 0.0
      %744 = vmatpush2.msra.mxu0 0.0
      %745 = vmatprep.subr.mxu0 0.0
      %746 = vmatpush2.msra.mxu0 0.0
      %747 = vmatprep.subr.mxu0 0.0
      %748 = vmatpush2.msra.mxu0 0.0
      %749 = vmatprep.subr.mxu0 0.0
      %750 = vmatpush2.msra.mxu0 0.0
      %751 = vmatprep.subr.mxu0 0.0
      %752 = vmatpush2.msra.mxu0 0.0
      %753 = vmatprep.subr.mxu0 0.0
      %754 = vmatpush2.msra.mxu0 0.0
      %755 = vmatprep.subr.mxu0 0.0
      %756 = vmatpush2.msra.mxu0 0.0
      %757 = vmatprep.subr.mxu0 0.0
      %758 = vmatpush2.msra.mxu0 0.0
      %759 = vmatprep.subr.mxu0 0.0
      %760 = vmatpush2.msra.mxu0 0.0
      %761 = vmatprep.subr.mxu0 0.0
      %762 = vmatpush2.msra.mxu0 0.0
      %763 = vmatprep.mubr.f32.mxu0 0.0
      %764 = vmatmul.mubr.f32.gmra.mxu0 %v697
      %v765 = vpop.f32.mrf.mxu0
      %v766 = vadd.f32 %v694, %v765
      %v767 = vpop.f32.mrf.mxu0
      %768 = vdwg.mxu0
      %v769 = vld [vmem:[%s5] sm:$0x1]
      %v770 = vld [vmem:[%s6] sm:$0x1]
      %vm771 = vcmask 261120
      %v772 = vsel %vm771, %v766, 0.0
      %773 = vadd.xlane.f32.xlu0 %v772
      %v774 = vpop.xlane.xlu0 %773
      %v775 = vrcp.pop 32.0
      %v776 = vmul.f32 %v774, %v775
      %v777 = vsub.f32 %v766, %v776
      %v778 = vmul.f32 %v777, %v777
      %v779 = vsel %vm771, %v778, 0.0
      %780 = vadd.xlane.f32.xlu0 %v779
      %v781 = vpop.xlane.xlu0 %780
      %v782 = vmul.f32 %v781, %v775
      %v783 = vadd.f32 %v782, 1e-12
      %v784 = vrsqrt.pop %v783
      %v785 = vmul.f32 %v777, %v784
      %v787 = vlaneseq
      %v788 = vshrl.u32 %v787, 7
      %v789 = vsub.s32 0, %v788
      %v790 = vrot.slane %v769, %v789
      %v792 = vmul.f32 %v785, %v790
      %v794 = vlaneseq
      %v795 = vshrl.u32 %v794, 7
      %v796 = vsub.s32 0, %v795
      %v797 = vrot.slane %v770, %v796
      %v799 = vadd.f32 %v792, %v797
      %v800 = vld [vmem:[%s632] sm:$0xff]
      %v801 = vld [vmem:[%s632 + $0x8] sm:$0xff]
      %v802 = vld [vmem:[%s7] sm:$0xff]
      %v803 = vld [vmem:[%s7 + $0x8] sm:$0xff]
      %v804 = vld [vmem:[%s7 + $0x10] sm:$0xff]
      %v805 = vld [vmem:[%s7 + $0x18] sm:$0xff]
      %v806 = vld [vmem:[%s8] sm:$0x1]
      %v808 = vlaneseq
      %v809 = vshrl.u32 %v808, 7
      %v810 = vsub.s32 0, %v809
      %v811 = vrot.slane %v806, %v810
      %v814 = vsel %vm771, %v799, 0
      %816 = vmatprep.subr.mxu0 0.0
      %817 = vmatpush1.msra.mxu0 0.0
      %818 = vmatprep.subr.mxu0 0.0
      %819 = vmatpush1.msra.mxu0 0.0
      %820 = vmatprep.subr.mxu0 0.0
      %821 = vmatpush1.msra.mxu0 0.0
      %822 = vmatprep.subr.mxu0 0.0
      %823 = vmatpush1.msra.mxu0 0.0
      %824 = vmatprep.subr.mxu0 0.0
      %825 = vmatpush1.msra.mxu0 0.0
      %826 = vmatprep.subr.mxu0 0.0
      %827 = vmatpush1.msra.mxu0 0.0
      %828 = vmatprep.subr.mxu0 0.0
      %829 = vmatpush1.msra.mxu0 0.0
      %830 = vmatprep.subr.mxu0 0.0
      %831 = vmatpush1.msra.mxu0 0.0
      %832 = vmatprep.subr.mxu0 0.0
      %833 = vmatpush1.msra.mxu0 0.0
      %834 = vmatprep.subr.mxu0 0.0
      %835 = vmatpush1.msra.mxu0 0.0
      %836 = vmatprep.subr.mxu0 0.0
      %837 = vmatpush1.msra.mxu0 0.0
      %838 = vmatprep.subr.mxu0 0.0
      %839 = vmatpush1.msra.mxu0 0.0
      %840 = vmatprep.subr.mxu0 0.0
      %841 = vmatpush1.msra.mxu0 %v805
      %842 = vmatprep.subr.mxu0 0.0
      %843 = vmatpush1.msra.mxu0 %v804
      %844 = vmatprep.subr.mxu0 0.0
      %845 = vmatpush1.msra.mxu0 %v803
      %846 = vmatprep.subr.mxu0 0.0
      %847 = vmatpush1.msra.mxu0 %v802
      %848 = vmatprep.subr.mxu0 0.0
      %849 = vmatpush2.msra.mxu0 0.0
      %850 = vmatprep.subr.mxu0 0.0
      %851 = vmatpush2.msra.mxu0 0.0
      %852 = vmatprep.subr.mxu0 0.0
      %853 = vmatpush2.msra.mxu0 0.0
      %854 = vmatprep.subr.mxu0 0.0
      %855 = vmatpush2.msra.mxu0 0.0
      %856 = vmatprep.subr.mxu0 0.0
      %857 = vmatpush2.msra.mxu0 0.0
      %858 = vmatprep.subr.mxu0 0.0
      %859 = vmatpush2.msra.mxu0 0.0
      %860 = vmatprep.subr.mxu0 0.0
      %861 = vmatpush2.msra.mxu0 0.0
      %862 = vmatprep.subr.mxu0 0.0
      %863 = vmatpush2.msra.mxu0 0.0
      %864 = vmatprep.subr.mxu0 0.0
      %865 = vmatpush2.msra.mxu0 0.0
      %866 = vmatprep.subr.mxu0 0.0
      %867 = vmatpush2.msra.mxu0 0.0
      %868 = vmatprep.subr.mxu0 0.0
      %869 = vmatpush2.msra.mxu0 0.0
      %870 = vmatprep.subr.mxu0 0.0
      %871 = vmatpush2.msra.mxu0 0.0
      %872 = vmatprep.subr.mxu0 0.0
      %873 = vmatpush2.msra.mxu0 0.0
      %874 = vmatprep.subr.mxu0 0.0
      %875 = vmatpush2.msra.mxu0 0.0
      %876 = vmatprep.subr.mxu0 0.0
      %877 = vmatpush2.msra.mxu0 0.0
      %878 = vmatprep.subr.mxu0 0.0
      %879 = vmatpush2.msra.mxu0 0.0
      %880 = vmatprep.mubr.f32.mxu0 0.0
      %881 = vmatmul.mubr.f32.gmra.mxu0 %v814
      %v882 = vpop.f32.mrf.mxu0
      %v883 = vadd.f32 %v811, %v882
      %v884 = vpop.f32.mrf.mxu0
      %885 = vdwg.mxu0
      %887 = vrot.lane.b32.xlu0 %v883, 112
      %v888 = vpop.permute.xlu0 %887
      %889 = vrot.lane.b32.xlu0 %v883, 96
      %v890 = vpop.permute.xlu0 %889
      %891 = vrot.lane.b32.xlu0 %v888, 96
      %v892 = vpop.permute.xlu0 %891
      %vm893 = vcmask 130048
      %v894 = vsel %vm893, %v883, 0
      %v896 = vsel %vm893, %v888, 0
      %v898 = vsel %vm893, %v890, 0
      %v900 = vsel %vm893, %v892, 0
      %902 = vmatprep.subr.mxu0 0.0
      %903 = vmatpush1.xpose.msra.mxu0 0.0
      %904 = vmatprep.subr.mxu0 0.0
      %905 = vmatpush1.xpose.msra.mxu0 0.0
      %906 = vmatprep.subr.mxu0 0.0
      %907 = vmatpush1.xpose.msra.mxu0 0.0
      %908 = vmatprep.subr.mxu0 0.0
      %909 = vmatpush1.xpose.msra.mxu0 0.0
      %910 = vmatprep.subr.mxu0 0.0
      %911 = vmatpush1.xpose.msra.mxu0 0.0
      %912 = vmatprep.subr.mxu0 0.0
      %913 = vmatpush1.xpose.msra.mxu0 0.0
      %914 = vmatprep.subr.mxu0 0.0
      %915 = vmatpush1.xpose.msra.mxu0 0.0
      %916 = vmatprep.subr.mxu0 0.0
      %917 = vmatpush1.xpose.msra.mxu0 0.0
      %918 = vmatprep.subr.mxu0 0.0
      %919 = vmatpush1.xpose.msra.mxu0 0.0
      %920 = vmatprep.subr.mxu0 0.0
      %921 = vmatpush1.xpose.msra.mxu0 0.0
      %922 = vmatprep.subr.mxu0 0.0
      %923 = vmatpush1.xpose.msra.mxu0 0.0
      %924 = vmatprep.subr.mxu0 0.0
      %925 = vmatpush1.xpose.msra.mxu0 0.0
      %926 = vmatprep.subr.mxu0 0.0
      %927 = vmatpush1.xpose.msra.mxu0 0.0
      %928 = vmatprep.subr.mxu0 0.0
      %929 = vmatpush1.xpose.msra.mxu0 0.0
      %930 = vmatprep.subr.mxu0 0.0
      %931 = vmatpush1.xpose.msra.mxu0 %v900
      %932 = vmatprep.subr.mxu0 0.0
      %933 = vmatpush1.xpose.msra.mxu0 %v898
      %934 = vmatprep.subr.mxu0 0.0
      %935 = vmatpush2.xpose.msra.mxu0 0.0
      %936 = vmatprep.subr.mxu0 0.0
      %937 = vmatpush2.xpose.msra.mxu0 0.0
      %938 = vmatprep.subr.mxu0 0.0
      %939 = vmatpush2.xpose.msra.mxu0 0.0
      %940 = vmatprep.subr.mxu0 0.0
      %941 = vmatpush2.xpose.msra.mxu0 0.0
      %942 = vmatprep.subr.mxu0 0.0
      %943 = vmatpush2.xpose.msra.mxu0 0.0
      %944 = vmatprep.subr.mxu0 0.0
      %945 = vmatpush2.xpose.msra.mxu0 0.0
      %946 = vmatprep.subr.mxu0 0.0
      %947 = vmatpush2.xpose.msra.mxu0 0.0
      %948 = vmatprep.subr.mxu0 0.0
      %949 = vmatpush2.xpose.msra.mxu0 0.0
      %950 = vmatprep.subr.mxu0 0.0
      %951 = vmatpush2.xpose.msra.mxu0 0.0
      %952 = vmatprep.subr.mxu0 0.0
      %953 = vmatpush2.xpose.msra.mxu0 0.0
      %954 = vmatprep.subr.mxu0 0.0
      %955 = vmatpush2.xpose.msra.mxu0 0.0
      %956 = vmatprep.subr.mxu0 0.0
      %957 = vmatpush2.xpose.msra.mxu0 0.0
      %958 = vmatprep.subr.mxu0 0.0
      %959 = vmatpush2.xpose.msra.mxu0 0.0
      %960 = vmatprep.subr.mxu0 0.0
      %961 = vmatpush2.xpose.msra.mxu0 0.0
      %962 = vmatprep.subr.mxu0 0.0
      %963 = vmatpush2.xpose.msra.mxu0 0.0
      %964 = vmatprep.subr.mxu0 0.0
      %965 = vmatpush2.xpose.msra.mxu0 0.0
      %966 = vmatprep.mubr.f32.mxu0 0.0
      %967 = vmatmul.mubr.f32.gmra.mxu0 %v894
      %v968 = vpop.f32.mrf.mxu0
      %v969 = vadd.f32 0.0, %v968
      %v970 = vpop.f32.mrf.mxu0
      %971 = vmatprep.mubr.f32.mxu0 0.0
      %972 = vmatmul.mubr.f32.gmra.mxu0 %v896
      %v973 = vpop.f32.mrf.mxu0
      %v974 = vadd.f32 0.0, %v973
      %v975 = vpop.f32.mrf.mxu0
      %976 = vdwg.mxu0
      %v977 = vmul.f32 %v969, 0.25
      %v978 = vmul.f32 %v974, 0.25
      %v979 = vadd.f32 %v977, %v800
      %v980 = vadd.f32 %v978, %v801
      %v981 = vsel %vm893, %v979, -inf
      %982 = vmax.xlane.f32.xlu0 %v981
      %v983 = vpop.xlane.xlu0 %982
      %v984 = vsel %vm893, %v980, -inf
      %985 = vmax.xlane.f32.xlu0 %v984
      %v986 = vpop.xlane.xlu0 %985
      %v987 = vsub.f32 %v979, %v983
      %v988 = vsub.f32 %v980, %v986
      %v989 = vmul.f32 %v987, 1.442695
      %v990 = vpow.pop %v989
      %v991 = vmul.f32 %v988, 1.442695
      %v992 = vpow.pop %v991
      %v993 = vsel %vm893, %v990, 0.0
      %994 = vadd.xlane.f32.xlu0 %v993
      %v995 = vpop.xlane.xlu0 %994
      %v996 = vsel %vm893, %v992, 0.0
      %997 = vadd.xlane.f32.xlu0 %v996
      %v998 = vpop.xlane.xlu0 %997
      %v999 = vrcp.pop %v995
      %v1000 = vrcp.pop %v998
      %v1001 = vmul.f32 %v990, %v999
      %v1002 = vmul.f32 %v992, %v1000
      %1003 = vrot.lane.b32.xlu0 %v883, 64
      %v1004 = vpop.permute.xlu0 %1003
      %1005 = vrot.lane.b32.xlu0 %v888, 64
      %v1006 = vpop.permute.xlu0 %1005
      %v1010 = vsel %vm893, %v1001, 0
      %v1013 = vsel %vm893, %v1002, 0
      %1015 = vmatprep.subr.mxu0 0.0
      %1016 = vmatpush1.msra.mxu0 0.0
      %1017 = vmatprep.subr.mxu0 0.0
      %1018 = vmatpush1.msra.mxu0 0.0
      %1019 = vmatprep.subr.mxu0 0.0
      %1020 = vmatpush1.msra.mxu0 0.0
      %1021 = vmatprep.subr.mxu0 0.0
      %1022 = vmatpush1.msra.mxu0 0.0
      %1023 = vmatprep.subr.mxu0 0.0
      %1024 = vmatpush1.msra.mxu0 0.0
      %1025 = vmatprep.subr.mxu0 0.0
      %1026 = vmatpush1.msra.mxu0 0.0
      %1027 = vmatprep.subr.mxu0 0.0
      %1028 = vmatpush1.msra.mxu0 0.0
      %1029 = vmatprep.subr.mxu0 0.0
      %1030 = vmatpush1.msra.mxu0 0.0
      %1031 = vmatprep.subr.mxu0 0.0
      %1032 = vmatpush1.msra.mxu0 0.0
      %1033 = vmatprep.subr.mxu0 0.0
      %1034 = vmatpush1.msra.mxu0 0.0
      %1035 = vmatprep.subr.mxu0 0.0
      %1036 = vmatpush1.msra.mxu0 0.0
      %1037 = vmatprep.subr.mxu0 0.0
      %1038 = vmatpush1.msra.mxu0 0.0
      %1039 = vmatprep.subr.mxu0 0.0
      %1040 = vmatpush1.msra.mxu0 0.0
      %1041 = vmatprep.subr.mxu0 0.0
      %1042 = vmatpush1.msra.mxu0 0.0
      %1043 = vmatprep.subr.mxu0 0.0
      %1044 = vmatpush1.msra.mxu0 %v1006
      %1045 = vmatprep.subr.mxu0 0.0
      %1046 = vmatpush1.msra.mxu0 %v1004
      %1047 = vmatprep.subr.mxu0 0.0
      %1048 = vmatpush2.msra.mxu0 0.0
      %1049 = vmatprep.subr.mxu0 0.0
      %1050 = vmatpush2.msra.mxu0 0.0
      %1051 = vmatprep.subr.mxu0 0.0
      %1052 = vmatpush2.msra.mxu0 0.0
      %1053 = vmatprep.subr.mxu0 0.0
      %1054 = vmatpush2.msra.mxu0 0.0
      %1055 = vmatprep.subr.mxu0 0.0
      %1056 = vmatpush2.msra.mxu0 0.0
      %1057 = vmatprep.subr.mxu0 0.0
      %1058 = vmatpush2.msra.mxu0 0.0
      %1059 = vmatprep.subr.mxu0 0.0
      %1060 = vmatpush2.msra.mxu0 0.0
      %1061 = vmatprep.subr.mxu0 0.0
      %1062 = vmatpush2.msra.mxu0 0.0
      %1063 = vmatprep.subr.mxu0 0.0
      %1064 = vmatpush2.msra.mxu0 0.0
      %1065 = vmatprep.subr.mxu0 0.0
      %1066 = vmatpush2.msra.mxu0 0.0
      %1067 = vmatprep.subr.mxu0 0.0
      %1068 = vmatpush2.msra.mxu0 0.0
      %1069 = vmatprep.subr.mxu0 0.0
      %1070 = vmatpush2.msra.mxu0 0.0
      %1071 = vmatprep.subr.mxu0 0.0
      %1072 = vmatpush2.msra.mxu0 0.0
      %1073 = vmatprep.subr.mxu0 0.0
      %1074 = vmatpush2.msra.mxu0 0.0
      %1075 = vmatprep.subr.mxu0 0.0
      %1076 = vmatpush2.msra.mxu0 0.0
      %1077 = vmatprep.subr.mxu0 0.0
      %1078 = vmatpush2.msra.mxu0 0.0
      %1079 = vmatprep.mubr.f32.mxu0 0.0
      %1080 = vmatmul.mubr.f32.gmra.mxu0 %v1010
      %v1081 = vpop.f32.mrf.mxu0
      %v1082 = vadd.f32 0.0, %v1081
      %v1083 = vpop.f32.mrf.mxu0
      %1084 = vmatprep.mubr.f32.mxu0 0.0
      %1085 = vmatmul.mubr.f32.gmra.mxu0 %v1013
      %v1086 = vpop.f32.mrf.mxu0
      %v1087 = vadd.f32 0.0, %v1086
      %v1088 = vpop.f32.mrf.mxu0
      %1089 = vdwg.mxu0
      %1091 = vrot.lane.b32.xlu0 %v1087, 16
      %v1092 = vpop.permute.xlu0 %1091
      %v1094 = vsel %vm893, %v1082, %v1092
      %v1095 = vld [vmem:[%s9] sm:$0xff]
      %v1096 = vld [vmem:[%s9 + $0x8] sm:$0xff]
      %v1097 = vld [vmem:[%s9 + $0x10] sm:$0xff]
      %v1098 = vld [vmem:[%s9 + $0x18] sm:$0xff]
      %v1099 = vld [vmem:[%s10] sm:$0x1]
      %v1101 = vlaneseq
      %v1102 = vshrl.u32 %v1101, 7
      %v1103 = vsub.s32 0, %v1102
      %v1104 = vrot.slane %v1099, %v1103
      %v1107 = vsel %vm771, %v1094, 0
      %1109 = vmatprep.subr.mxu0 0.0
      %1110 = vmatpush1.msra.mxu0 0.0
      %1111 = vmatprep.subr.mxu0 0.0
      %1112 = vmatpush1.msra.mxu0 0.0
      %1113 = vmatprep.subr.mxu0 0.0
      %1114 = vmatpush1.msra.mxu0 0.0
      %1115 = vmatprep.subr.mxu0 0.0
      %1116 = vmatpush1.msra.mxu0 0.0
      %1117 = vmatprep.subr.mxu0 0.0
      %1118 = vmatpush1.msra.mxu0 0.0
      %1119 = vmatprep.subr.mxu0 0.0
      %1120 = vmatpush1.msra.mxu0 0.0
      %1121 = vmatprep.subr.mxu0 0.0
      %1122 = vmatpush1.msra.mxu0 0.0
      %1123 = vmatprep.subr.mxu0 0.0
      %1124 = vmatpush1.msra.mxu0 0.0
      %1125 = vmatprep.subr.mxu0 0.0
      %1126 = vmatpush1.msra.mxu0 0.0
      %1127 = vmatprep.subr.mxu0 0.0
      %1128 = vmatpush1.msra.mxu0 0.0
      %1129 = vmatprep.subr.mxu0 0.0
      %1130 = vmatpush1.msra.mxu0 0.0
      %1131 = vmatprep.subr.mxu0 0.0
      %1132 = vmatpush1.msra.mxu0 0.0
      %1133 = vmatprep.subr.mxu0 0.0
      %1134 = vmatpush1.msra.mxu0 %v1098
      %1135 = vmatprep.subr.mxu0 0.0
      %1136 = vmatpush1.msra.mxu0 %v1097
      %1137 = vmatprep.subr.mxu0 0.0
      %1138 = vmatpush1.msra.mxu0 %v1096
      %1139 = vmatprep.subr.mxu0 0.0
      %1140 = vmatpush1.msra.mxu0 %v1095
      %1141 = vmatprep.subr.mxu0 0.0
      %1142 = vmatpush2.msra.mxu0 0.0
      %1143 = vmatprep.subr.mxu0 0.0
      %1144 = vmatpush2.msra.mxu0 0.0
      %1145 = vmatprep.subr.mxu0 0.0
      %1146 = vmatpush2.msra.mxu0 0.0
      %1147 = vmatprep.subr.mxu0 0.0
      %1148 = vmatpush2.msra.mxu0 0.0
      %1149 = vmatprep.subr.mxu0 0.0
      %1150 = vmatpush2.msra.mxu0 0.0
      %1151 = vmatprep.subr.mxu0 0.0
      %1152 = vmatpush2.msra.mxu0 0.0
      %1153 = vmatprep.subr.mxu0 0.0
      %1154 = vmatpush2.msra.mxu0 0.0
      %1155 = vmatprep.subr.mxu0 0.0
      %1156 = vmatpush2.msra.mxu0 0.0
      %1157 = vmatprep.subr.mxu0 0.0
      %1158 = vmatpush2.msra.mxu0 0.0
      %1159 = vmatprep.subr.mxu0 0.0
      %1160 = vmatpush2.msra.mxu0 0.0
      %1161 = vmatprep.subr.mxu0 0.0
      %1162 = vmatpush2.msra.mxu0 0.0
      %1163 = vmatprep.subr.mxu0 0.0
      %1164 = vmatpush2.msra.mxu0 0.0
      %1165 = vmatprep.subr.mxu0 0.0
      %1166 = vmatpush2.msra.mxu0 0.0
      %1167 = vmatprep.subr.mxu0 0.0
      %1168 = vmatpush2.msra.mxu0 0.0
      %1169 = vmatprep.subr.mxu0 0.0
      %1170 = vmatpush2.msra.mxu0 0.0
      %1171 = vmatprep.subr.mxu0 0.0
      %1172 = vmatpush2.msra.mxu0 0.0
      %1173 = vmatprep.mubr.f32.mxu0 0.0
      %1174 = vmatmul.mubr.f32.gmra.mxu0 %v1107
      %v1175 = vpop.f32.mrf.mxu0
      %v1176 = vadd.f32 %v1104, %v1175
      %v1177 = vpop.f32.mrf.mxu0
      %1178 = vdwg.mxu0
      %v1179 = vadd.f32 %v799, %v1176
      %v1180 = vld [vmem:[%s11] sm:$0x1]
      %v1181 = vld [vmem:[%s12] sm:$0x1]
      %v1182 = vsel %vm771, %v1179, 0.0
      %1183 = vadd.xlane.f32.xlu0 %v1182
      %v1184 = vpop.xlane.xlu0 %1183
      %v1185 = vmul.f32 %v1184, %v775
      %v1186 = vsub.f32 %v1179, %v1185
      %v1187 = vmul.f32 %v1186, %v1186
      %v1188 = vsel %vm771, %v1187, 0.0
      %1189 = vadd.xlane.f32.xlu0 %v1188
      %v1190 = vpop.xlane.xlu0 %1189
      %v1191 = vmul.f32 %v1190, %v775
      %v1192 = vadd.f32 %v1191, 1e-12
      %v1193 = vrsqrt.pop %v1192
      %v1194 = vmul.f32 %v1186, %v1193
      %v1196 = vlaneseq
      %v1197 = vshrl.u32 %v1196, 7
      %v1198 = vsub.s32 0, %v1197
      %v1199 = vrot.slane %v1180, %v1198
      %v1201 = vmul.f32 %v1194, %v1199
      %v1203 = vlaneseq
      %v1204 = vshrl.u32 %v1203, 7
      %v1205 = vsub.s32 0, %v1204
      %v1206 = vrot.slane %v1181, %v1205
      %v1208 = vadd.f32 %v1201, %v1206
      %v1209 = vld [vmem:[%s13] sm:$0xff]
      %v1210 = vld [vmem:[%s13 + $0x8] sm:$0xff]
      %v1211 = vld [vmem:[%s13 + $0x10] sm:$0xff]
      %v1212 = vld [vmem:[%s13 + $0x18] sm:$0xff]
      %v1213 = vld [vmem:[%s14] sm:$0x1]
      %v1215 = vlaneseq
      %v1216 = vshrl.u32 %v1215, 7
      %v1217 = vsub.s32 0, %v1216
      %v1218 = vrot.slane %v1213, %v1217
      %v1221 = vsel %vm771, %v1208, 0
      %1223 = vmatprep.subr.mxu0 0.0
      %1224 = vmatpush1.msra.mxu0 0.0
      %1225 = vmatprep.subr.mxu0 0.0
      %1226 = vmatpush1.msra.mxu0 0.0
      %1227 = vmatprep.subr.mxu0 0.0
      %1228 = vmatpush1.msra.mxu0 0.0
      %1229 = vmatprep.subr.mxu0 0.0
      %1230 = vmatpush1.msra.mxu0 0.0
      %1231 = vmatprep.subr.mxu0 0.0
      %1232 = vmatpush1.msra.mxu0 0.0
      %1233 = vmatprep.subr.mxu0 0.0
      %1234 = vmatpush1.msra.mxu0 0.0
      %1235 = vmatprep.subr.mxu0 0.0
      %1236 = vmatpush1.msra.mxu0 0.0
      %1237 = vmatprep.subr.mxu0 0.0
      %1238 = vmatpush1.msra.mxu0 0.0
      %1239 = vmatprep.subr.mxu0 0.0
      %1240 = vmatpush1.msra.mxu0 0.0
      %1241 = vmatprep.subr.mxu0 0.0
      %1242 = vmatpush1.msra.mxu0 0.0
      %1243 = vmatprep.subr.mxu0 0.0
      %1244 = vmatpush1.msra.mxu0 0.0
      %1245 = vmatprep.subr.mxu0 0.0
      %1246 = vmatpush1.msra.mxu0 0.0
      %1247 = vmatprep.subr.mxu0 0.0
      %1248 = vmatpush1.msra.mxu0 %v1212
      %1249 = vmatprep.subr.mxu0 0.0
      %1250 = vmatpush1.msra.mxu0 %v1211
      %1251 = vmatprep.subr.mxu0 0.0
      %1252 = vmatpush1.msra.mxu0 %v1210
      %1253 = vmatprep.subr.mxu0 0.0
      %1254 = vmatpush1.msra.mxu0 %v1209
      %1255 = vmatprep.subr.mxu0 0.0
      %1256 = vmatpush2.msra.mxu0 0.0
      %1257 = vmatprep.subr.mxu0 0.0
      %1258 = vmatpush2.msra.mxu0 0.0
      %1259 = vmatprep.subr.mxu0 0.0
      %1260 = vmatpush2.msra.mxu0 0.0
      %1261 = vmatprep.subr.mxu0 0.0
      %1262 = vmatpush2.msra.mxu0 0.0
      %1263 = vmatprep.subr.mxu0 0.0
      %1264 = vmatpush2.msra.mxu0 0.0
      %1265 = vmatprep.subr.mxu0 0.0
      %1266 = vmatpush2.msra.mxu0 0.0
      %1267 = vmatprep.subr.mxu0 0.0
      %1268 = vmatpush2.msra.mxu0 0.0
      %1269 = vmatprep.subr.mxu0 0.0
      %1270 = vmatpush2.msra.mxu0 0.0
      %1271 = vmatprep.subr.mxu0 0.0
      %1272 = vmatpush2.msra.mxu0 0.0
      %1273 = vmatprep.subr.mxu0 0.0
      %1274 = vmatpush2.msra.mxu0 0.0
      %1275 = vmatprep.subr.mxu0 0.0
      %1276 = vmatpush2.msra.mxu0 0.0
      %1277 = vmatprep.subr.mxu0 0.0
      %1278 = vmatpush2.msra.mxu0 0.0
      %1279 = vmatprep.subr.mxu0 0.0
      %1280 = vmatpush2.msra.mxu0 0.0
      %1281 = vmatprep.subr.mxu0 0.0
      %1282 = vmatpush2.msra.mxu0 0.0
      %1283 = vmatprep.subr.mxu0 0.0
      %1284 = vmatpush2.msra.mxu0 0.0
      %1285 = vmatprep.subr.mxu0 0.0
      %1286 = vmatpush2.msra.mxu0 0.0
      %1287 = vmatprep.mubr.f32.mxu0 0.0
      %1288 = vmatmul.mubr.f32.gmra.mxu0 %v1221
      %v1289 = vpop.f32.mrf.mxu0
      %v1290 = vadd.f32 %v1218, %v1289
      %v1291 = vpop.f32.mrf.mxu0
      %1292 = vdwg.mxu0
      %v1293 = vmul.f32 %v1290, 0.5
      %v1294 = vmul.f32 %v1290, 0.70710677
      %vm1295 = vcmp.ge.f32.partialorder %v1294, 0.0
      %v1296 = vsel %vm1295, 1.0, -1.0
      %v1297 = vand.u32 2147483647, %v1294
      %v1298 = vmul.f32 %v1297, 0.3275911
      %v1299 = vadd.f32 %v1298, 1.0
      %v1300 = vrcp.pop %v1299
      %v1301 = vmul.f32 1.0, %v1300
      %v1302 = vmul.f32 %v1301, 1.0614054
      %v1303 = vadd.f32 %v1302, -1.4531521
      %v1304 = vmul.f32 %v1303, %v1301
      %v1305 = vadd.f32 %v1304, 1.4214138
      %v1306 = vmul.f32 %v1305, %v1301
      %v1307 = vadd.f32 %v1306, -0.28449672
      %v1308 = vmul.f32 %v1307, %v1301
      %v1309 = vadd.f32 %v1308, 0.2548296
      %v1310 = vmul.f32 %v1309, %v1301
      %v1311 = vsub.f32 0.0, %v1297
      %v1312 = vmul.f32 %v1311, %v1297
      %v1313 = vmul.f32 %v1312, 1.442695
      %v1314 = vpow.pop %v1313
      %v1315 = vmul.f32 %v1310, %v1314
      %v1316 = vsub.f32 1.0, %v1315
      %v1317 = vmul.f32 %v1296, %v1316
      %v1318 = vadd.f32 %v1317, 1.0
      %v1319 = vmul.f32 %v1293, %v1318
      %v1320 = vld [vmem:[%s15] sm:$0xff]
      %v1321 = vld [vmem:[%s15 + $0x8] sm:$0xff]
      %v1322 = vld [vmem:[%s15 + $0x10] sm:$0xff]
      %v1323 = vld [vmem:[%s15 + $0x18] sm:$0xff]
      %v1324 = vld [vmem:[%s15 + $0x20] sm:$0xff]
      %v1325 = vld [vmem:[%s15 + $0x28] sm:$0xff]
      %v1326 = vld [vmem:[%s15 + $0x30] sm:$0xff]
      %v1327 = vld [vmem:[%s15 + $0x38] sm:$0xff]
      %v1328 = vld [vmem:[%s16] sm:$0x1]
      %v1330 = vlaneseq
      %v1331 = vshrl.u32 %v1330, 7
      %v1332 = vsub.s32 0, %v1331
      %v1333 = vrot.slane %v1328, %v1332
      %v1336 = vsel %vm695, %v1319, 0
      %1338 = vmatprep.subr.mxu0 0.0
      %1339 = vmatpush1.msra.mxu0 0.0
      %1340 = vmatprep.subr.mxu0 0.0
      %1341 = vmatpush1.msra.mxu0 0.0
      %1342 = vmatprep.subr.mxu0 0.0
      %1343 = vmatpush1.msra.mxu0 0.0
      %1344 = vmatprep.subr.mxu0 0.0
      %1345 = vmatpush1.msra.mxu0 0.0
      %1346 = vmatprep.subr.mxu0 0.0
      %1347 = vmatpush1.msra.mxu0 0.0
      %1348 = vmatprep.subr.mxu0 0.0
      %1349 = vmatpush1.msra.mxu0 0.0
      %1350 = vmatprep.subr.mxu0 0.0
      %1351 = vmatpush1.msra.mxu0 0.0
      %1352 = vmatprep.subr.mxu0 0.0
      %1353 = vmatpush1.msra.mxu0 0.0
      %1354 = vmatprep.subr.mxu0 0.0
      %1355 = vmatpush1.msra.mxu0 %v1327
      %1356 = vmatprep.subr.mxu0 0.0
      %1357 = vmatpush1.msra.mxu0 %v1326
      %1358 = vmatprep.subr.mxu0 0.0
      %1359 = vmatpush1.msra.mxu0 %v1325
      %1360 = vmatprep.subr.mxu0 0.0
      %1361 = vmatpush1.msra.mxu0 %v1324
      %1362 = vmatprep.subr.mxu0 0.0
      %1363 = vmatpush1.msra.mxu0 %v1323
      %1364 = vmatprep.subr.mxu0 0.0
      %1365 = vmatpush1.msra.mxu0 %v1322
      %1366 = vmatprep.subr.mxu0 0.0
      %1367 = vmatpush1.msra.mxu0 %v1321
      %1368 = vmatprep.subr.mxu0 0.0
      %1369 = vmatpush1.msra.mxu0 %v1320
      %1370 = vmatprep.subr.mxu0 0.0
      %1371 = vmatpush2.msra.mxu0 0.0
      %1372 = vmatprep.subr.mxu0 0.0
      %1373 = vmatpush2.msra.mxu0 0.0
      %1374 = vmatprep.subr.mxu0 0.0
      %1375 = vmatpush2.msra.mxu0 0.0
      %1376 = vmatprep.subr.mxu0 0.0
      %1377 = vmatpush2.msra.mxu0 0.0
      %1378 = vmatprep.subr.mxu0 0.0
      %1379 = vmatpush2.msra.mxu0 0.0
      %1380 = vmatprep.subr.mxu0 0.0
      %1381 = vmatpush2.msra.mxu0 0.0
      %1382 = vmatprep.subr.mxu0 0.0
      %1383 = vmatpush2.msra.mxu0 0.0
      %1384 = vmatprep.subr.mxu0 0.0
      %1385 = vmatpush2.msra.mxu0 0.0
      %1386 = vmatprep.subr.mxu0 0.0
      %1387 = vmatpush2.msra.mxu0 0.0
      %1388 = vmatprep.subr.mxu0 0.0
      %1389 = vmatpush2.msra.mxu0 0.0
      %1390 = vmatprep.subr.mxu0 0.0
      %1391 = vmatpush2.msra.mxu0 0.0
      %1392 = vmatprep.subr.mxu0 0.0
      %1393 = vmatpush2.msra.mxu0 0.0
      %1394 = vmatprep.subr.mxu0 0.0
      %1395 = vmatpush2.msra.mxu0 0.0
      %1396 = vmatprep.subr.mxu0 0.0
      %1397 = vmatpush2.msra.mxu0 0.0
      %1398 = vmatprep.subr.mxu0 0.0
      %1399 = vmatpush2.msra.mxu0 0.0
      %1400 = vmatprep.subr.mxu0 0.0
      %1401 = vmatpush2.msra.mxu0 0.0
      %1402 = vmatprep.mubr.f32.mxu0 0.0
      %1403 = vmatmul.mubr.f32.gmra.mxu0 %v1336
      %v1404 = vpop.f32.mrf.mxu0
      %v1405 = vadd.f32 %v1333, %v1404
      %v1406 = vpop.f32.mrf.mxu0
      %1407 = vdwg.mxu0
      %v1408 = vadd.f32 %v1208, %v1405
      %v1409 = vld [vmem:[%s17] sm:$0x1]
      %v1410 = vld [vmem:[%s18] sm:$0x1]
      %v1411 = vsel %vm771, %v1408, 0.0
      %1412 = vadd.xlane.f32.xlu0 %v1411
      %v1413 = vpop.xlane.xlu0 %1412
      %v1414 = vmul.f32 %v1413, %v775
      %v1415 = vsub.f32 %v1408, %v1414
      %v1416 = vmul.f32 %v1415, %v1415
      %v1417 = vsel %vm771, %v1416, 0.0
      %1418 = vadd.xlane.f32.xlu0 %v1417
      %v1419 = vpop.xlane.xlu0 %1418
      %v1420 = vmul.f32 %v1419, %v775
      %v1421 = vadd.f32 %v1420, 1e-12
      %v1422 = vrsqrt.pop %v1421
      %v1423 = vmul.f32 %v1415, %v1422
      %v1425 = vlaneseq
      %v1426 = vshrl.u32 %v1425, 7
      %v1427 = vsub.s32 0, %v1426
      %v1428 = vrot.slane %v1409, %v1427
      %v1430 = vmul.f32 %v1423, %v1428
      %v1432 = vlaneseq
      %v1433 = vshrl.u32 %v1432, 7
      %v1434 = vsub.s32 0, %v1433
      %v1435 = vrot.slane %v1410, %v1434
      %v1437 = vadd.f32 %v1430, %v1435
      %s1438 = scalar_lea.vmem %s7, 32
      %v1439 = vld [vmem:[%s1438] sm:$0xff]
      %v1440 = vld [vmem:[%s1438 + $0x8] sm:$0xff]
      %v1441 = vld [vmem:[%s1438 + $0x10] sm:$0xff]
      %v1442 = vld [vmem:[%s1438 + $0x18] sm:$0xff]
      %s1443 = scalar_lea.vmem %s8, 1
      %v1444 = vld [vmem:[%s1443] sm:$0x1]
      %v1446 = vlaneseq
      %v1447 = vshrl.u32 %v1446, 7
      %v1448 = vsub.s32 0, %v1447
      %v1449 = vrot.slane %v1444, %v1448
      %v1452 = vsel %vm771, %v1437, 0
      %1454 = vmatprep.subr.mxu0 0.0
      %1455 = vmatpush1.msra.mxu0 0.0
      %1456 = vmatprep.subr.mxu0 0.0
      %1457 = vmatpush1.msra.mxu0 0.0
      %1458 = vmatprep.subr.mxu0 0.0
      %1459 = vmatpush1.msra.mxu0 0.0
      %1460 = vmatprep.subr.mxu0 0.0
      %1461 = vmatpush1.msra.mxu0 0.0
      %1462 = vmatprep.subr.mxu0 0.0
      %1463 = vmatpush1.msra.mxu0 0.0
      %1464 = vmatprep.subr.mxu0 0.0
      %1465 = vmatpush1.msra.mxu0 0.0
      %1466 = vmatprep.subr.mxu0 0.0
      %1467 = vmatpush1.msra.mxu0 0.0
      %1468 = vmatprep.subr.mxu0 0.0
      %1469 = vmatpush1.msra.mxu0 0.0
      %1470 = vmatprep.subr.mxu0 0.0
      %1471 = vmatpush1.msra.mxu0 0.0
      %1472 = vmatprep.subr.mxu0 0.0
      %1473 = vmatpush1.msra.mxu0 0.0
      %1474 = vmatprep.subr.mxu0 0.0
      %1475 = vmatpush1.msra.mxu0 0.0
      %1476 = vmatprep.subr.mxu0 0.0
      %1477 = vmatpush1.msra.mxu0 0.0
      %1478 = vmatprep.subr.mxu0 0.0
      %1479 = vmatpush1.msra.mxu0 %v1442
      %1480 = vmatprep.subr.mxu0 0.0
      %1481 = vmatpush1.msra.mxu0 %v1441
      %1482 = vmatprep.subr.mxu0 0.0
      %1483 = vmatpush1.msra.mxu0 %v1440
      %1484 = vmatprep.subr.mxu0 0.0
      %1485 = vmatpush1.msra.mxu0 %v1439
      %1486 = vmatprep.subr.mxu0 0.0
      %1487 = vmatpush2.msra.mxu0 0.0
      %1488 = vmatprep.subr.mxu0 0.0
      %1489 = vmatpush2.msra.mxu0 0.0
      %1490 = vmatprep.subr.mxu0 0.0
      %1491 = vmatpush2.msra.mxu0 0.0
      %1492 = vmatprep.subr.mxu0 0.0
      %1493 = vmatpush2.msra.mxu0 0.0
      %1494 = vmatprep.subr.mxu0 0.0
      %1495 = vmatpush2.msra.mxu0 0.0
      %1496 = vmatprep.subr.mxu0 0.0
      %1497 = vmatpush2.msra.mxu0 0.0
      %1498 = vmatprep.subr.mxu0 0.0
      %1499 = vmatpush2.msra.mxu0 0.0
      %1500 = vmatprep.subr.mxu0 0.0
      %1501 = vmatpush2.msra.mxu0 0.0
      %1502 = vmatprep.subr.mxu0 0.0
      %1503 = vmatpush2.msra.mxu0 0.0
      %1504 = vmatprep.subr.mxu0 0.0
      %1505 = vmatpush2.msra.mxu0 0.0
      %1506 = vmatprep.subr.mxu0 0.0
      %1507 = vmatpush2.msra.mxu0 0.0
      %1508 = vmatprep.subr.mxu0 0.0
      %1509 = vmatpush2.msra.mxu0 0.0
      %1510 = vmatprep.subr.mxu0 0.0
      %1511 = vmatpush2.msra.mxu0 0.0
      %1512 = vmatprep.subr.mxu0 0.0
      %1513 = vmatpush2.msra.mxu0 0.0
      %1514 = vmatprep.subr.mxu0 0.0
      %1515 = vmatpush2.msra.mxu0 0.0
      %1516 = vmatprep.subr.mxu0 0.0
      %1517 = vmatpush2.msra.mxu0 0.0
      %1518 = vmatprep.mubr.f32.mxu0 0.0
      %1519 = vmatmul.mubr.f32.gmra.mxu0 %v1452
      %v1520 = vpop.f32.mrf.mxu0
      %v1521 = vadd.f32 %v1449, %v1520
      %v1522 = vpop.f32.mrf.mxu0
      %1523 = vdwg.mxu0
      %1525 = vrot.lane.b32.xlu0 %v1521, 112
      %v1526 = vpop.permute.xlu0 %1525
      %1527 = vrot.lane.b32.xlu0 %v1521, 96
      %v1528 = vpop.permute.xlu0 %1527
      %1529 = vrot.lane.b32.xlu0 %v1526, 96
      %v1530 = vpop.permute.xlu0 %1529
      %v1531 = vsel %vm893, %v1521, 0
      %v1533 = vsel %vm893, %v1526, 0
      %v1535 = vsel %vm893, %v1528, 0
      %v1537 = vsel %vm893, %v1530, 0
      %1539 = vmatprep.subr.mxu0 0.0
      %1540 = vmatpush1.xpose.msra.mxu0 0.0
      %1541 = vmatprep.subr.mxu0 0.0
      %1542 = vmatpush1.xpose.msra.mxu0 0.0
      %1543 = vmatprep.subr.mxu0 0.0
      %1544 = vmatpush1.xpose.msra.mxu0 0.0
      %1545 = vmatprep.subr.mxu0 0.0
      %1546 = vmatpush1.xpose.msra.mxu0 0.0
      %1547 = vmatprep.subr.mxu0 0.0
      %1548 = vmatpush1.xpose.msra.mxu0 0.0
      %1549 = vmatprep.subr.mxu0 0.0
      %1550 = vmatpush1.xpose.msra.mxu0 0.0
      %1551 = vmatprep.subr.mxu0 0.0
      %1552 = vmatpush1.xpose.msra.mxu0 0.0
      %1553 = vmatprep.subr.mxu0 0.0
      %1554 = vmatpush1.xpose.msra.mxu0 0.0
      %1555 = vmatprep.subr.mxu0 0.0
      %1556 = vmatpush1.xpose.msra.mxu0 0.0
      %1557 = vmatprep.subr.mxu0 0.0
      %1558 = vmatpush1.xpose.msra.mxu0 0.0
      %1559 = vmatprep.subr.mxu0 0.0
      %1560 = vmatpush1.xpose.msra.mxu0 0.0
      %1561 = vmatprep.subr.mxu0 0.0
      %1562 = vmatpush1.xpose.msra.mxu0 0.0
      %1563 = vmatprep.subr.mxu0 0.0
      %1564 = vmatpush1.xpose.msra.mxu0 0.0
      %1565 = vmatprep.subr.mxu0 0.0
      %1566 = vmatpush1.xpose.msra.mxu0 0.0
      %1567 = vmatprep.subr.mxu0 0.0
      %1568 = vmatpush1.xpose.msra.mxu0 %v1537
      %1569 = vmatprep.subr.mxu0 0.0
      %1570 = vmatpush1.xpose.msra.mxu0 %v1535
      %1571 = vmatprep.subr.mxu0 0.0
      %1572 = vmatpush2.xpose.msra.mxu0 0.0
      %1573 = vmatprep.subr.mxu0 0.0
      %1574 = vmatpush2.xpose.msra.mxu0 0.0
      %1575 = vmatprep.subr.mxu0 0.0
      %1576 = vmatpush2.xpose.msra.mxu0 0.0
      %1577 = vmatprep.subr.mxu0 0.0
      %1578 = vmatpush2.xpose.msra.mxu0 0.0
      %1579 = vmatprep.subr.mxu0 0.0
      %1580 = vmatpush2.xpose.msra.mxu0 0.0
      %1581 = vmatprep.subr.mxu0 0.0
      %1582 = vmatpush2.xpose.msra.mxu0 0.0
      %1583 = vmatprep.subr.mxu0 0.0
      %1584 = vmatpush2.xpose.msra.mxu0 0.0
      %1585 = vmatprep.subr.mxu0 0.0
      %1586 = vmatpush2.xpose.msra.mxu0 0.0
      %1587 = vmatprep.subr.mxu0 0.0
      %1588 = vmatpush2.xpose.msra.mxu0 0.0
      %1589 = vmatprep.subr.mxu0 0.0
      %1590 = vmatpush2.xpose.msra.mxu0 0.0
      %1591 = vmatprep.subr.mxu0 0.0
      %1592 = vmatpush2.xpose.msra.mxu0 0.0
      %1593 = vmatprep.subr.mxu0 0.0
      %1594 = vmatpush2.xpose.msra.mxu0 0.0
      %1595 = vmatprep.subr.mxu0 0.0
      %1596 = vmatpush2.xpose.msra.mxu0 0.0
      %1597 = vmatprep.subr.mxu0 0.0
      %1598 = vmatpush2.xpose.msra.mxu0 0.0
      %1599 = vmatprep.subr.mxu0 0.0
      %1600 = vmatpush2.xpose.msra.mxu0 0.0
      %1601 = vmatprep.subr.mxu0 0.0
      %1602 = vmatpush2.xpose.msra.mxu0 0.0
      %1603 = vmatprep.mubr.f32.mxu0 0.0
      %1604 = vmatmul.mubr.f32.gmra.mxu0 %v1531
      %v1605 = vpop.f32.mrf.mxu0
      %v1606 = vadd.f32 0.0, %v1605
      %v1607 = vpop.f32.mrf.mxu0
      %1608 = vmatprep.mubr.f32.mxu0 0.0
      %1609 = vmatmul.mubr.f32.gmra.mxu0 %v1533
      %v1610 = vpop.f32.mrf.mxu0
      %v1611 = vadd.f32 0.0, %v1610
      %v1612 = vpop.f32.mrf.mxu0
      %1613 = vdwg.mxu0
      %v1614 = vmul.f32 %v1606, 0.25
      %v1615 = vmul.f32 %v1611, 0.25
      %v1616 = vadd.f32 %v1614, %v800
      %v1617 = vadd.f32 %v1615, %v801
      %v1618 = vsel %vm893, %v1616, -inf
      %1619 = vmax.xlane.f32.xlu0 %v1618
      %v1620 = vpop.xlane.xlu0 %1619
      %v1621 = vsel %vm893, %v1617, -inf
      %1622 = vmax.xlane.f32.xlu0 %v1621
      %v1623 = vpop.xlane.xlu0 %1622
      %v1624 = vsub.f32 %v1616, %v1620
      %v1625 = vsub.f32 %v1617, %v1623
      %v1626 = vmul.f32 %v1624, 1.442695
      %v1627 = vpow.pop %v1626
      %v1628 = vmul.f32 %v1625, 1.442695
      %v1629 = vpow.pop %v1628
      %v1630 = vsel %vm893, %v1627, 0.0
      %1631 = vadd.xlane.f32.xlu0 %v1630
      %v1632 = vpop.xlane.xlu0 %1631
      %v1633 = vsel %vm893, %v1629, 0.0
      %1634 = vadd.xlane.f32.xlu0 %v1633
      %v1635 = vpop.xlane.xlu0 %1634
      %v1636 = vrcp.pop %v1632
      %v1637 = vrcp.pop %v1635
      %v1638 = vmul.f32 %v1627, %v1636
      %v1639 = vmul.f32 %v1629, %v1637
      %1640 = vrot.lane.b32.xlu0 %v1521, 64
      %v1641 = vpop.permute.xlu0 %1640
      %1642 = vrot.lane.b32.xlu0 %v1526, 64
      %v1643 = vpop.permute.xlu0 %1642
      %v1647 = vsel %vm893, %v1638, 0
      %v1650 = vsel %vm893, %v1639, 0
      %1652 = vmatprep.subr.mxu0 0.0
      %1653 = vmatpush1.msra.mxu0 0.0
      %1654 = vmatprep.subr.mxu0 0.0
      %1655 = vmatpush1.msra.mxu0 0.0
      %1656 = vmatprep.subr.mxu0 0.0
      %1657 = vmatpush1.msra.mxu0 0.0
      %1658 = vmatprep.subr.mxu0 0.0
      %1659 = vmatpush1.msra.mxu0 0.0
      %1660 = vmatprep.subr.mxu0 0.0
      %1661 = vmatpush1.msra.mxu0 0.0
      %1662 = vmatprep.subr.mxu0 0.0
      %1663 = vmatpush1.msra.mxu0 0.0
      %1664 = vmatprep.subr.mxu0 0.0
      %1665 = vmatpush1.msra.mxu0 0.0
      %1666 = vmatprep.subr.mxu0 0.0
      %1667 = vmatpush1.msra.mxu0 0.0
      %1668 = vmatprep.subr.mxu0 0.0
      %1669 = vmatpush1.msra.mxu0 0.0
      %1670 = vmatprep.subr.mxu0 0.0
      %1671 = vmatpush1.msra.mxu0 0.0
      %1672 = vmatprep.subr.mxu0 0.0
      %1673 = vmatpush1.msra.mxu0 0.0
      %1674 = vmatprep.subr.mxu0 0.0
      %1675 = vmatpush1.msra.mxu0 0.0
      %1676 = vmatprep.subr.mxu0 0.0
      %1677 = vmatpush1.msra.mxu0 0.0
      %1678 = vmatprep.subr.mxu0 0.0
      %1679 = vmatpush1.msra.mxu0 0.0
      %1680 = vmatprep.subr.mxu0 0.0
      %1681 = vmatpush1.msra.mxu0 %v1643
      %1682 = vmatprep.subr.mxu0 0.0
      %1683 = vmatpush1.msra.mxu0 %v1641
      %1684 = vmatprep.subr.mxu0 0.0
      %1685 = vmatpush2.msra.mxu0 0.0
      %1686 = vmatprep.subr.mxu0 0.0
      %1687 = vmatpush2.msra.mxu0 0.0
      %1688 = vmatprep.subr.mxu0 0.0
      %1689 = vmatpush2.msra.mxu0 0.0
      %1690 = vmatprep.subr.mxu0 0.0
      %1691 = vmatpush2.msra.mxu0 0.0
      %1692 = vmatprep.subr.mxu0 0.0
      %1693 = vmatpush2.msra.mxu0 0.0
      %1694 = vmatprep.subr.mxu0 0.0
      %1695 = vmatpush2.msra.mxu0 0.0
      %1696 = vmatprep.subr.mxu0 0.0
      %1697 = vmatpush2.msra.mxu0 0.0
      %1698 = vmatprep.subr.mxu0 0.0
      %1699 = vmatpush2.msra.mxu0 0.0
      %1700 = vmatprep.subr.mxu0 0.0
      %1701 = vmatpush2.msra.mxu0 0.0
      %1702 = vmatprep.subr.mxu0 0.0
      %1703 = vmatpush2.msra.mxu0 0.0
      %1704 = vmatprep.subr.mxu0 0.0
      %1705 = vmatpush2.msra.mxu0 0.0
      %1706 = vmatprep.subr.mxu0 0.0
      %1707 = vmatpush2.msra.mxu0 0.0
      %1708 = vmatprep.subr.mxu0 0.0
      %1709 = vmatpush2.msra.mxu0 0.0
      %1710 = vmatprep.subr.mxu0 0.0
      %1711 = vmatpush2.msra.mxu0 0.0
      %1712 = vmatprep.subr.mxu0 0.0
      %1713 = vmatpush2.msra.mxu0 0.0
      %1714 = vmatprep.subr.mxu0 0.0
      %1715 = vmatpush2.msra.mxu0 0.0
      %1716 = vmatprep.mubr.f32.mxu0 0.0
      %1717 = vmatmul.mubr.f32.gmra.mxu0 %v1647
      %v1718 = vpop.f32.mrf.mxu0
      %v1719 = vadd.f32 0.0, %v1718
      %v1720 = vpop.f32.mrf.mxu0
      %1721 = vmatprep.mubr.f32.mxu0 0.0
      %1722 = vmatmul.mubr.f32.gmra.mxu0 %v1650
      %v1723 = vpop.f32.mrf.mxu0
      %v1724 = vadd.f32 0.0, %v1723
      %v1725 = vpop.f32.mrf.mxu0
      %1726 = vdwg.mxu0
      %1728 = vrot.lane.b32.xlu0 %v1724, 16
      %v1729 = vpop.permute.xlu0 %1728
      %v1731 = vsel %vm893, %v1719, %v1729
      %s1732 = scalar_lea.vmem %s9, 32
      %v1733 = vld [vmem:[%s1732] sm:$0xff]
      %v1734 = vld [vmem:[%s1732 + $0x8] sm:$0xff]
      %v1735 = vld [vmem:[%s1732 + $0x10] sm:$0xff]
      %v1736 = vld [vmem:[%s1732 + $0x18] sm:$0xff]
      %s1737 = scalar_lea.vmem %s10, 1
      %v1738 = vld [vmem:[%s1737] sm:$0x1]
      %v1740 = vlaneseq
      %v1741 = vshrl.u32 %v1740, 7
      %v1742 = vsub.s32 0, %v1741
      %v1743 = vrot.slane %v1738, %v1742
      %v1746 = vsel %vm771, %v1731, 0
      %1748 = vmatprep.subr.mxu0 0.0
      %1749 = vmatpush1.msra.mxu0 0.0
      %1750 = vmatprep.subr.mxu0 0.0
      %1751 = vmatpush1.msra.mxu0 0.0
      %1752 = vmatprep.subr.mxu0 0.0
      %1753 = vmatpush1.msra.mxu0 0.0
      %1754 = vmatprep.subr.mxu0 0.0
      %1755 = vmatpush1.msra.mxu0 0.0
      %1756 = vmatprep.subr.mxu0 0.0
      %1757 = vmatpush1.msra.mxu0 0.0
      %1758 = vmatprep.subr.mxu0 0.0
      %1759 = vmatpush1.msra.mxu0 0.0
      %1760 = vmatprep.subr.mxu0 0.0
      %1761 = vmatpush1.msra.mxu0 0.0
      %1762 = vmatprep.subr.mxu0 0.0
      %1763 = vmatpush1.msra.mxu0 0.0
      %1764 = vmatprep.subr.mxu0 0.0
      %1765 = vmatpush1.msra.mxu0 0.0
      %1766 = vmatprep.subr.mxu0 0.0
      %1767 = vmatpush1.msra.mxu0 0.0
      %1768 = vmatprep.subr.mxu0 0.0
      %1769 = vmatpush1.msra.mxu0 0.0
      %1770 = vmatprep.subr.mxu0 0.0
      %1771 = vmatpush1.msra.mxu0 0.0
      %1772 = vmatprep.subr.mxu0 0.0
      %1773 = vmatpush1.msra.mxu0 %v1736
      %1774 = vmatprep.subr.mxu0 0.0
      %1775 = vmatpush1.msra.mxu0 %v1735
      %1776 = vmatprep.subr.mxu0 0.0
      %1777 = vmatpush1.msra.mxu0 %v1734
      %1778 = vmatprep.subr.mxu0 0.0
      %1779 = vmatpush1.msra.mxu0 %v1733
      %1780 = vmatprep.subr.mxu0 0.0
      %1781 = vmatpush2.msra.mxu0 0.0
      %1782 = vmatprep.subr.mxu0 0.0
      %1783 = vmatpush2.msra.mxu0 0.0
      %1784 = vmatprep.subr.mxu0 0.0
      %1785 = vmatpush2.msra.mxu0 0.0
      %1786 = vmatprep.subr.mxu0 0.0
      %1787 = vmatpush2.msra.mxu0 0.0
      %1788 = vmatprep.subr.mxu0 0.0
      %1789 = vmatpush2.msra.mxu0 0.0
      %1790 = vmatprep.subr.mxu0 0.0
      %1791 = vmatpush2.msra.mxu0 0.0
      %1792 = vmatprep.subr.mxu0 0.0
      %1793 = vmatpush2.msra.mxu0 0.0
      %1794 = vmatprep.subr.mxu0 0.0
      %1795 = vmatpush2.msra.mxu0 0.0
      %1796 = vmatprep.subr.mxu0 0.0
      %1797 = vmatpush2.msra.mxu0 0.0
      %1798 = vmatprep.subr.mxu0 0.0
      %1799 = vmatpush2.msra.mxu0 0.0
      %1800 = vmatprep.subr.mxu0 0.0
      %1801 = vmatpush2.msra.mxu0 0.0
      %1802 = vmatprep.subr.mxu0 0.0
      %1803 = vmatpush2.msra.mxu0 0.0
      %1804 = vmatprep.subr.mxu0 0.0
      %1805 = vmatpush2.msra.mxu0 0.0
      %1806 = vmatprep.subr.mxu0 0.0
      %1807 = vmatpush2.msra.mxu0 0.0
      %1808 = vmatprep.subr.mxu0 0.0
      %1809 = vmatpush2.msra.mxu0 0.0
      %1810 = vmatprep.subr.mxu0 0.0
      %1811 = vmatpush2.msra.mxu0 0.0
      %1812 = vmatprep.mubr.f32.mxu0 0.0
      %1813 = vmatmul.mubr.f32.gmra.mxu0 %v1746
      %v1814 = vpop.f32.mrf.mxu0
      %v1815 = vadd.f32 %v1743, %v1814
      %v1816 = vpop.f32.mrf.mxu0
      %1817 = vdwg.mxu0
      %v1818 = vadd.f32 %v1437, %v1815
      %s1819 = scalar_lea.vmem %s11, 1
      %v1820 = vld [vmem:[%s1819] sm:$0x1]
      %s1821 = scalar_lea.vmem %s12, 1
      %v1822 = vld [vmem:[%s1821] sm:$0x1]
      %v1823 = vsel %vm771, %v1818, 0.0
      %1824 = vadd.xlane.f32.xlu0 %v1823
      %v1825 = vpop.xlane.xlu0 %1824
      %v1826 = vmul.f32 %v1825, %v775
      %v1827 = vsub.f32 %v1818, %v1826
      %v1828 = vmul.f32 %v1827, %v1827
      %v1829 = vsel %vm771, %v1828, 0.0
      %1830 = vadd.xlane.f32.xlu0 %v1829
      %v1831 = vpop.xlane.xlu0 %1830
      %v1832 = vmul.f32 %v1831, %v775
      %v1833 = vadd.f32 %v1832, 1e-12
      %v1834 = vrsqrt.pop %v1833
      %v1835 = vmul.f32 %v1827, %v1834
      %v1837 = vlaneseq
      %v1838 = vshrl.u32 %v1837, 7
      %v1839 = vsub.s32 0, %v1838
      %v1840 = vrot.slane %v1820, %v1839
      %v1842 = vmul.f32 %v1835, %v1840
      %v1844 = vlaneseq
      %v1845 = vshrl.u32 %v1844, 7
      %v1846 = vsub.s32 0, %v1845
      %v1847 = vrot.slane %v1822, %v1846
      %v1849 = vadd.f32 %v1842, %v1847
      %s1850 = scalar_lea.vmem %s13, 32
      %v1851 = vld [vmem:[%s1850] sm:$0xff]
      %v1852 = vld [vmem:[%s1850 + $0x8] sm:$0xff]
      %v1853 = vld [vmem:[%s1850 + $0x10] sm:$0xff]
      %v1854 = vld [vmem:[%s1850 + $0x18] sm:$0xff]
      %s1855 = scalar_lea.vmem %s14, 1
      %v1856 = vld [vmem:[%s1855] sm:$0x1]
      %v1858 = vlaneseq
      %v1859 = vshrl.u32 %v1858, 7
      %v1860 = vsub.s32 0, %v1859
      %v1861 = vrot.slane %v1856, %v1860
      %v1864 = vsel %vm771, %v1849, 0
      %1866 = vmatprep.subr.mxu0 0.0
      %1867 = vmatpush1.msra.mxu0 0.0
      %1868 = vmatprep.subr.mxu0 0.0
      %1869 = vmatpush1.msra.mxu0 0.0
      %1870 = vmatprep.subr.mxu0 0.0
      %1871 = vmatpush1.msra.mxu0 0.0
      %1872 = vmatprep.subr.mxu0 0.0
      %1873 = vmatpush1.msra.mxu0 0.0
      %1874 = vmatprep.subr.mxu0 0.0
      %1875 = vmatpush1.msra.mxu0 0.0
      %1876 = vmatprep.subr.mxu0 0.0
      %1877 = vmatpush1.msra.mxu0 0.0
      %1878 = vmatprep.subr.mxu0 0.0
      %1879 = vmatpush1.msra.mxu0 0.0
      %1880 = vmatprep.subr.mxu0 0.0
      %1881 = vmatpush1.msra.mxu0 0.0
      %1882 = vmatprep.subr.mxu0 0.0
      %1883 = vmatpush1.msra.mxu0 0.0
      %1884 = vmatprep.subr.mxu0 0.0
      %1885 = vmatpush1.msra.mxu0 0.0
      %1886 = vmatprep.subr.mxu0 0.0
      %1887 = vmatpush1.msra.mxu0 0.0
      %1888 = vmatprep.subr.mxu0 0.0
      %1889 = vmatpush1.msra.mxu0 0.0
      %1890 = vmatprep.subr.mxu0 0.0
      %1891 = vmatpush1.msra.mxu0 %v1854
      %1892 = vmatprep.subr.mxu0 0.0
      %1893 = vmatpush1.msra.mxu0 %v1853
      %1894 = vmatprep.subr.mxu0 0.0
      %1895 = vmatpush1.msra.mxu0 %v1852
      %1896 = vmatprep.subr.mxu0 0.0
      %1897 = vmatpush1.msra.mxu0 %v1851
      %1898 = vmatprep.subr.mxu0 0.0
      %1899 = vmatpush2.msra.mxu0 0.0
      %1900 = vmatprep.subr.mxu0 0.0
      %1901 = vmatpush2.msra.mxu0 0.0
      %1902 = vmatprep.subr.mxu0 0.0
      %1903 = vmatpush2.msra.mxu0 0.0
      %1904 = vmatprep.subr.mxu0 0.0
      %1905 = vmatpush2.msra.mxu0 0.0
      %1906 = vmatprep.subr.mxu0 0.0
      %1907 = vmatpush2.msra.mxu0 0.0
      %1908 = vmatprep.subr.mxu0 0.0
      %1909 = vmatpush2.msra.mxu0 0.0
      %1910 = vmatprep.subr.mxu0 0.0
      %1911 = vmatpush2.msra.mxu0 0.0
      %1912 = vmatprep.subr.mxu0 0.0
      %1913 = vmatpush2.msra.mxu0 0.0
      %1914 = vmatprep.subr.mxu0 0.0
      %1915 = vmatpush2.msra.mxu0 0.0
      %1916 = vmatprep.subr.mxu0 0.0
      %1917 = vmatpush2.msra.mxu0 0.0
      %1918 = vmatprep.subr.mxu0 0.0
      %1919 = vmatpush2.msra.mxu0 0.0
      %1920 = vmatprep.subr.mxu0 0.0
      %1921 = vmatpush2.msra.mxu0 0.0
      %1922 = vmatprep.subr.mxu0 0.0
      %1923 = vmatpush2.msra.mxu0 0.0
      %1924 = vmatprep.subr.mxu0 0.0
      %1925 = vmatpush2.msra.mxu0 0.0
      %1926 = vmatprep.subr.mxu0 0.0
      %1927 = vmatpush2.msra.mxu0 0.0
      %1928 = vmatprep.subr.mxu0 0.0
      %1929 = vmatpush2.msra.mxu0 0.0
      %1930 = vmatprep.mubr.f32.mxu0 0.0
      %1931 = vmatmul.mubr.f32.gmra.mxu0 %v1864
      %v1932 = vpop.f32.mrf.mxu0
      %v1933 = vadd.f32 %v1861, %v1932
      %v1934 = vpop.f32.mrf.mxu0
      %1935 = vdwg.mxu0
      %v1936 = vmul.f32 %v1933, 0.5
      %v1937 = vmul.f32 %v1933, 0.70710677
      %vm1938 = vcmp.ge.f32.partialorder %v1937, 0.0
      %v1939 = vsel %vm1938, 1.0, -1.0
      %v1940 = vand.u32 2147483647, %v1937
      %v1941 = vmul.f32 %v1940, 0.3275911
      %v1942 = vadd.f32 %v1941, 1.0
      %v1943 = vrcp.pop %v1942
      %v1944 = vmul.f32 1.0, %v1943
      %v1945 = vmul.f32 %v1944, 1.0614054
      %v1946 = vadd.f32 %v1945, -1.4531521
      %v1947 = vmul.f32 %v1946, %v1944
      %v1948 = vadd.f32 %v1947, 1.4214138
      %v1949 = vmul.f32 %v1948, %v1944
      %v1950 = vadd.f32 %v1949, -0.28449672
      %v1951 = vmul.f32 %v1950, %v1944
      %v1952 = vadd.f32 %v1951, 0.2548296
      %v1953 = vmul.f32 %v1952, %v1944
      %v1954 = vsub.f32 0.0, %v1940
      %v1955 = vmul.f32 %v1954, %v1940
      %v1956 = vmul.f32 %v1955, 1.442695
      %v1957 = vpow.pop %v1956
      %v1958 = vmul.f32 %v1953, %v1957
      %v1959 = vsub.f32 1.0, %v1958
      %v1960 = vmul.f32 %v1939, %v1959
      %v1961 = vadd.f32 %v1960, 1.0
      %v1962 = vmul.f32 %v1936, %v1961
      %s1963 = scalar_lea.vmem %s15, 64
      %v1964 = vld [vmem:[%s1963] sm:$0xff]
      %v1965 = vld [vmem:[%s1963 + $0x8] sm:$0xff]
      %v1966 = vld [vmem:[%s1963 + $0x10] sm:$0xff]
      %v1967 = vld [vmem:[%s1963 + $0x18] sm:$0xff]
      %v1968 = vld [vmem:[%s1963 + $0x20] sm:$0xff]
      %v1969 = vld [vmem:[%s1963 + $0x28] sm:$0xff]
      %v1970 = vld [vmem:[%s1963 + $0x30] sm:$0xff]
      %v1971 = vld [vmem:[%s1963 + $0x38] sm:$0xff]
      %s1972 = scalar_lea.vmem %s16, 1
      %v1973 = vld [vmem:[%s1972] sm:$0x1]
      %v1975 = vlaneseq
      %v1976 = vshrl.u32 %v1975, 7
      %v1977 = vsub.s32 0, %v1976
      %v1978 = vrot.slane %v1973, %v1977
      %v1981 = vsel %vm695, %v1962, 0
      %1983 = vmatprep.subr.mxu0 0.0
      %1984 = vmatpush1.msra.mxu0 0.0
      %1985 = vmatprep.subr.mxu0 0.0
      %1986 = vmatpush1.msra.mxu0 0.0
      %1987 = vmatprep.subr.mxu0 0.0
      %1988 = vmatpush1.msra.mxu0 0.0
      %1989 = vmatprep.subr.mxu0 0.0
      %1990 = vmatpush1.msra.mxu0 0.0
      %1991 = vmatprep.subr.mxu0 0.0
      %1992 = vmatpush1.msra.mxu0 0.0
      %1993 = vmatprep.subr.mxu0 0.0
      %1994 = vmatpush1.msra.mxu0 0.0
      %1995 = vmatprep.subr.mxu0 0.0
      %1996 = vmatpush1.msra.mxu0 0.0
      %1997 = vmatprep.subr.mxu0 0.0
      %1998 = vmatpush1.msra.mxu0 0.0
      %1999 = vmatprep.subr.mxu0 0.0
      %2000 = vmatpush1.msra.mxu0 %v1971
      %2001 = vmatprep.subr.mxu0 0.0
      %2002 = vmatpush1.msra.mxu0 %v1970
      %2003 = vmatprep.subr.mxu0 0.0
      %2004 = vmatpush1.msra.mxu0 %v1969
      %2005 = vmatprep.subr.mxu0 0.0
      %2006 = vmatpush1.msra.mxu0 %v1968
      %2007 = vmatprep.subr.mxu0 0.0
      %2008 = vmatpush1.msra.mxu0 %v1967
      %2009 = vmatprep.subr.mxu0 0.0
      %2010 = vmatpush1.msra.mxu0 %v1966
      %2011 = vmatprep.subr.mxu0 0.0
      %2012 = vmatpush1.msra.mxu0 %v1965
      %2013 = vmatprep.subr.mxu0 0.0
      %2014 = vmatpush1.msra.mxu0 %v1964
      %2015 = vmatprep.subr.mxu0 0.0
      %2016 = vmatpush2.msra.mxu0 0.0
      %2017 = vmatprep.subr.mxu0 0.0
      %2018 = vmatpush2.msra.mxu0 0.0
      %2019 = vmatprep.subr.mxu0 0.0
      %2020 = vmatpush2.msra.mxu0 0.0
      %2021 = vmatprep.subr.mxu0 0.0
      %2022 = vmatpush2.msra.mxu0 0.0
      %2023 = vmatprep.subr.mxu0 0.0
      %2024 = vmatpush2.msra.mxu0 0.0
      %2025 = vmatprep.subr.mxu0 0.0
      %2026 = vmatpush2.msra.mxu0 0.0
      %2027 = vmatprep.subr.mxu0 0.0
      %2028 = vmatpush2.msra.mxu0 0.0
      %2029 = vmatprep.subr.mxu0 0.0
      %2030 = vmatpush2.msra.mxu0 0.0
      %2031 = vmatprep.subr.mxu0 0.0
      %2032 = vmatpush2.msra.mxu0 0.0
      %2033 = vmatprep.subr.mxu0 0.0
      %2034 = vmatpush2.msra.mxu0 0.0
      %2035 = vmatprep.subr.mxu0 0.0
      %2036 = vmatpush2.msra.mxu0 0.0
      %2037 = vmatprep.subr.mxu0 0.0
      %2038 = vmatpush2.msra.mxu0 0.0
      %2039 = vmatprep.subr.mxu0 0.0
      %2040 = vmatpush2.msra.mxu0 0.0
      %2041 = vmatprep.subr.mxu0 0.0
      %2042 = vmatpush2.msra.mxu0 0.0
      %2043 = vmatprep.subr.mxu0 0.0
      %2044 = vmatpush2.msra.mxu0 0.0
      %2045 = vmatprep.subr.mxu0 0.0
      %2046 = vmatpush2.msra.mxu0 0.0
      %2047 = vmatprep.mubr.f32.mxu0 0.0
      %2048 = vmatmul.mubr.f32.gmra.mxu0 %v1981
      %v2049 = vpop.f32.mrf.mxu0
      %v2050 = vadd.f32 %v1978, %v2049
      %v2051 = vpop.f32.mrf.mxu0
      %2052 = vdwg.mxu0
      %v2053 = vadd.f32 %v1849, %v2050
      %s2054 = scalar_lea.vmem %s17, 1
      %v2055 = vld [vmem:[%s2054] sm:$0x1]
      %s2056 = scalar_lea.vmem %s18, 1
      %v2057 = vld [vmem:[%s2056] sm:$0x1]
      %v2058 = vsel %vm771, %v2053, 0.0
      %2059 = vadd.xlane.f32.xlu0 %v2058
      %v2060 = vpop.xlane.xlu0 %2059
      %v2061 = vmul.f32 %v2060, %v775
      %v2062 = vsub.f32 %v2053, %v2061
      %v2063 = vmul.f32 %v2062, %v2062
      %v2064 = vsel %vm771, %v2063, 0.0
      %2065 = vadd.xlane.f32.xlu0 %v2064
      %v2066 = vpop.xlane.xlu0 %2065
      %v2067 = vmul.f32 %v2066, %v775
      %v2068 = vadd.f32 %v2067, 1e-12
      %v2069 = vrsqrt.pop %v2068
      %v2070 = vmul.f32 %v2062, %v2069
      %v2072 = vlaneseq
      %v2073 = vshrl.u32 %v2072, 7
      %v2074 = vsub.s32 0, %v2073
      %v2075 = vrot.slane %v2055, %v2074
      %v2077 = vmul.f32 %v2070, %v2075
      %v2079 = vlaneseq
      %v2080 = vshrl.u32 %v2079, 7
      %v2081 = vsub.s32 0, %v2080
      %v2082 = vrot.slane %v2057, %v2081
      %v2084 = vadd.f32 %v2077, %v2082
      %v2085 = vld [vmem:[%s2] sm:$0xff]
      %vm2086 = vcmask 64512
      %v2088 = vsel %vm2086, %v2085, 0
      %2090 = vmatprep.subr.mxu0 0.0
      %2091 = vmatpush1.msra.mxu0 0.0
      %2092 = vmatprep.subr.mxu0 0.0
      %2093 = vmatpush1.msra.mxu0 0.0
      %2094 = vmatprep.subr.mxu0 0.0
      %2095 = vmatpush1.msra.mxu0 0.0
      %2096 = vmatprep.subr.mxu0 0.0
      %2097 = vmatpush1.msra.mxu0 0.0
      %2098 = vmatprep.subr.mxu0 0.0
      %2099 = vmatpush1.msra.mxu0 0.0
      %2100 = vmatprep.subr.mxu0 0.0
      %2101 = vmatpush1.msra.mxu0 0.0
      %2102 = vmatprep.subr.mxu0 0.0
      %2103 = vmatpush1.msra.mxu0 0.0
      %2104 = vmatprep.subr.mxu0 0.0
      %2105 = vmatpush1.msra.mxu0 0.0
      %2106 = vmatprep.subr.mxu0 0.0
      %2107 = vmatpush1.msra.mxu0 0.0
      %2108 = vmatprep.subr.mxu0 0.0
      %2109 = vmatpush1.msra.mxu0 0.0
      %2110 = vmatprep.subr.mxu0 0.0
      %2111 = vmatpush1.msra.mxu0 0.0
      %2112 = vmatprep.subr.mxu0 0.0
      %2113 = vmatpush1.msra.mxu0 0.0
      %2114 = vmatprep.subr.mxu0 0.0
      %2115 = vmatpush1.msra.mxu0 0.0
      %2116 = vmatprep.subr.mxu0 0.0
      %2117 = vmatpush1.msra.mxu0 0.0
      %2118 = vmatprep.subr.mxu0 0.0
      %2119 = vmatpush1.msra.mxu0 0.0
      %2120 = vmatprep.subr.mxu0 0.0
      %2121 = vmatpush1.msra.mxu0 %v2084
      %2122 = vmatprep.subr.mxu0 0.0
      %2123 = vmatpush2.msra.mxu0 0.0
      %2124 = vmatprep.subr.mxu0 0.0
      %2125 = vmatpush2.msra.mxu0 0.0
      %2126 = vmatprep.subr.mxu0 0.0
      %2127 = vmatpush2.msra.mxu0 0.0
      %2128 = vmatprep.subr.mxu0 0.0
      %2129 = vmatpush2.msra.mxu0 0.0
      %2130 = vmatprep.subr.mxu0 0.0
      %2131 = vmatpush2.msra.mxu0 0.0
      %2132 = vmatprep.subr.mxu0 0.0
      %2133 = vmatpush2.msra.mxu0 0.0
      %2134 = vmatprep.subr.mxu0 0.0
      %2135 = vmatpush2.msra.mxu0 0.0
      %2136 = vmatprep.subr.mxu0 0.0
      %2137 = vmatpush2.msra.mxu0 0.0
      %2138 = vmatprep.subr.mxu0 0.0
      %2139 = vmatpush2.msra.mxu0 0.0
      %2140 = vmatprep.subr.mxu0 0.0
      %2141 = vmatpush2.msra.mxu0 0.0
      %2142 = vmatprep.subr.mxu0 0.0
      %2143 = vmatpush2.msra.mxu0 0.0
      %2144 = vmatprep.subr.mxu0 0.0
      %2145 = vmatpush2.msra.mxu0 0.0
      %2146 = vmatprep.subr.mxu0 0.0
      %2147 = vmatpush2.msra.mxu0 0.0
      %2148 = vmatprep.subr.mxu0 0.0
      %2149 = vmatpush2.msra.mxu0 0.0
      %2150 = vmatprep.subr.mxu0 0.0
      %2151 = vmatpush2.msra.mxu0 0.0
      %2152 = vmatprep.subr.mxu0 0.0
      %2153 = vmatpush2.msra.mxu0 0.0
      %2154 = vmatprep.mubr.f32.mxu0 0.0
      %2155 = vmatmul.mubr.f32.gmra.mxu0 %v2088
      %v2156 = vpop.f32.mrf.mxu0
      %v2157 = vadd.f32 0.0, %v2156
      %v2158 = vpop.f32.mrf.mxu0
      %2159 = vdwg.mxu0
      %v2160 = vld [vmem:[%s19] sm:$0xff]
      %v2161 = vld [vmem:[%s19 + $0x8] sm:$0xff]
      %v2162 = vld [vmem:[%s19 + $0x10] sm:$0xff]
      %v2163 = vld [vmem:[%s19 + $0x18] sm:$0xff]
      %v2164 = vld [vmem:[%s19 + $0x20] sm:$0xff]
      %v2165 = vld [vmem:[%s19 + $0x28] sm:$0xff]
      %v2166 = vld [vmem:[%s19 + $0x30] sm:$0xff]
      %v2167 = vld [vmem:[%s19 + $0x38] sm:$0xff]
      %v2168 = vld [vmem:[%s20] sm:$0x3]
      %v2170 = vlaneseq
      %v2171 = vshrl.u32 %v2170, 7
      %v2172 = vsub.s32 0, %v2171
      %v2173 = vrot.slane %v2168, %v2172
      %v2174 = vlaneseq
      %v2175 = vshrl.u32 %v2174, 7
      %v2176 = vsub.s32 1, %v2175
      %v2177 = vrot.slane %v2168, %v2176
      %v2181 = vsel %vm771, %v2157, 0
      %2183 = vmatprep.subr.mxu0 0.0
      %2184 = vmatpush1.msra.mxu0 0.0
      %2185 = vmatprep.subr.mxu0 0.0
      %2186 = vmatpush1.msra.mxu0 0.0
      %2187 = vmatprep.subr.mxu0 0.0
      %2188 = vmatpush1.msra.mxu0 0.0
      %2189 = vmatprep.subr.mxu0 0.0
      %2190 = vmatpush1.msra.mxu0 0.0
      %2191 = vmatprep.subr.mxu0 0.0
      %2192 = vmatpush1.msra.mxu0 0.0
      %2193 = vmatprep.subr.mxu0 0.0
      %2194 = vmatpush1.msra.mxu0 0.0
      %2195 = vmatprep.subr.mxu0 0.0
      %2196 = vmatpush1.msra.mxu0 0.0
      %2197 = vmatprep.subr.mxu0 0.0
      %2198 = vmatpush1.msra.mxu0 0.0
      %2199 = vmatprep.subr.mxu0 0.0
      %2200 = vmatpush1.msra.mxu0 0.0
      %2201 = vmatprep.subr.mxu0 0.0
      %2202 = vmatpush1.msra.mxu0 0.0
      %2203 = vmatprep.subr.mxu0 0.0
      %2204 = vmatpush1.msra.mxu0 0.0
      %2205 = vmatprep.subr.mxu0 0.0
      %2206 = vmatpush1.msra.mxu0 0.0
      %2207 = vmatprep.subr.mxu0 %v2167
      %2208 = vmatpush1.msra.mxu0 %v2166
      %2209 = vmatprep.subr.mxu0 %v2165
      %2210 = vmatpush1.msra.mxu0 %v2164
      %2211 = vmatprep.subr.mxu0 %v2163
      %2212 = vmatpush1.msra.mxu0 %v2162
      %2213 = vmatprep.subr.mxu0 %v2161
      %2214 = vmatpush1.msra.mxu0 %v2160
      %2215 = vmatprep.subr.mxu0 0.0
      %2216 = vmatpush2.msra.mxu0 0.0
      %2217 = vmatprep.subr.mxu0 0.0
      %2218 = vmatpush2.msra.mxu0 0.0
      %2219 = vmatprep.subr.mxu0 0.0
      %2220 = vmatpush2.msra.mxu0 0.0
      %2221 = vmatprep.subr.mxu0 0.0
      %2222 = vmatpush2.msra.mxu0 0.0
      %2223 = vmatprep.subr.mxu0 0.0
      %2224 = vmatpush2.msra.mxu0 0.0
      %2225 = vmatprep.subr.mxu0 0.0
      %2226 = vmatpush2.msra.mxu0 0.0
      %2227 = vmatprep.subr.mxu0 0.0
      %2228 = vmatpush2.msra.mxu0 0.0
      %2229 = vmatprep.subr.mxu0 0.0
      %2230 = vmatpush2.msra.mxu0 0.0
      %2231 = vmatprep.subr.mxu0 0.0
      %2232 = vmatpush2.msra.mxu0 0.0
      %2233 = vmatprep.subr.mxu0 0.0
      %2234 = vmatpush2.msra.mxu0 0.0
      %2235 = vmatprep.subr.mxu0 0.0
      %2236 = vmatpush2.msra.mxu0 0.0
      %2237 = vmatprep.subr.mxu0 0.0
      %2238 = vmatpush2.msra.mxu0 0.0
      %2239 = vmatprep.subr.mxu0 0.0
      %2240 = vmatpush2.msra.mxu0 0.0
      %2241 = vmatprep.subr.mxu0 0.0
      %2242 = vmatpush2.msra.mxu0 0.0
      %2243 = vmatprep.subr.mxu0 0.0
      %2244 = vmatpush2.msra.mxu0 0.0
      %2245 = vmatprep.subr.mxu0 0.0
      %2246 = vmatpush2.msra.mxu0 0.0
      %2247 = vmatprep.mubr.f32.mxu0 0.0
      %2248 = vmatmul.mubr.f32.gmra.mxu0 %v2181
      %v2249 = vpop.f32.mrf.mxu0
      %v2250 = vadd.f32 %v2173, %v2249
      %v2251 = vpop.f32.mrf.mxu0
      %v2252 = vadd.f32 %v2177, %v2251
      %2253 = vdwg.mxu0
      %2254 = vst [vmem:[%s638] sm:$0xff] %v2250
      %2255 = vst [vmem:[%s638 + $0x8] sm:$0xff] %v2252
      %p2256 = scmp.lt.s32.totalorder %s38, 1
      %s2257 = scalar_select %p2256, %s38, 1
      %s2258 = smul.addr %s2257, 2
      %s2259 = smul.addr %s2258, 8
      %s2260 = scalar_lea.vmem %s21, %s2259
      // Predicated region
      $region101: #{bert_for_model_forward.1} parent=99 // pred_check
        %p2261 = pneg %p481
      $region102: #{bert_for_model_forward.1} parent=99 // pred_check_branch
        %2263 = sbr.rel (%p2261) target = $region104
      $region103: #{bert_for_model_forward.1} parent=99 // pred_region
        _
      $region104: #{bert_for_model_forward.1} parent=99 // pred_fallthru
        _
    $region100: #{bert_for_model_forward.1} parent=5 // pred_fallthru
      _
    %p2264 = scmp.le.s32.totalorder 2, %s33
    // Predicated region
    $region105: #{bert_for_model_forward.1} parent=5 // pred_check
      %p2265 = pneg %p2264
    $region106: #{bert_for_model_forward.1} parent=5 // pred_check_branch
      %2267 = sbr.rel (%p2265) target = $region108
    $region107: #{bert_for_model_forward.1} parent=5 // pred_region
      %s2268 = ssub.s32 %s33, 2
      // Predicated region
      $region109: #{bert_for_model_forward.1} parent=107 // pred_check
        %p2269 = pneg %p487
      $region110: #{bert_for_model_forward.1} parent=107 // pred_check_branch
        %2271 = sbr.rel (%p2269) target = $region112
      $region111: #{bert_for_model_forward.1} parent=107 // pred_region
        %p2272 = scmp.lt.s32.totalorder %s39, 1
        %s2273 = scalar_select %p2272, %s39, 1
        %s2274 = smul.addr %s2273, 2
        %s2275 = smul.addr %s2274, 8
        %s2276 = scalar_lea.vmem %s21, %s2275
      $region112: #{bert_for_model_forward.1} parent=107 // pred_fallthru
        _
    $region108: #{bert_for_model_forward.1} parent=5 // pred_fallthru
      _
  $region6: #{bert_for_model_forward.1} parent=0 // loop_footer
    %s37 = sadd.s32 1, %s33
  $region7: #{bert_for_model_forward.1} parent=0 // loop_footer_branch
    %32 = sbr.rel target = $region3
  $region8: #{bert_for_model_forward.1} parent=0 // loop_exit
    _

</llo_original>
